<compile_context>
chip_gen: v7x
topology: tpu7x:2x2x1
jax: 0.10.0
libtpu: 0.0.40
codegen_flags: <defaults>
</compile_context>

<pallas_src>
import functools

import jax
import jax.numpy as jnp
import numpy as np
from jax import lax
from jax.experimental import pallas as pl
from jax.experimental.pallas import tpu as pltpu


def _layernorm(x, gamma, beta, eps=1e-5):
    mu = jnp.mean(x, axis=-1, keepdims=True)
    var = jnp.mean((x - mu) ** 2, axis=-1, keepdims=True)
    return (x - mu) * lax.rsqrt(var + eps) * gamma + beta


# ---------------------------------------------------------------------------
# Stage 1: per-head Q/K/V projections, run once per token.
# Inputs are [1, TS, E] bf16 tiles; weights are host-built block-diagonal [E, E]
# bf16 matrices (one copy of W^T per head on the diagonal), so each projection is
# a single lane-dense matmul.  Outputs are head-split bf16 [1, H, TS, hd] tiles.
# ---------------------------------------------------------------------------
def qkv_proj_kernel(v_ref, k_ref, q_ref, wv_ref, wk_ref, wq_ref,
                    vo_ref, ko_ref, qo_ref, *, heads, head_dim):
    def project(x_ref, w_ref, o_ref):
        p = jnp.dot(x_ref[0], w_ref[...], preferred_element_type=jnp.float32)
        p = p.astype(jnp.bfloat16)
        for h in range(heads):  # static, lane-aligned column slices (hd multiple of 128 in real configs)
            o_ref[0, h] = p[:, h * head_dim:(h + 1) * head_dim]

    project(v_ref, wv_ref, vo_ref)
    project(k_ref, wk_ref, ko_ref)
    project(q_ref, wq_ref, qo_ref)


# ---------------------------------------------------------------------------
# Stage 2: flash-style attention over KV tiles + Wo + residual/LN1 + FFN +
# residual/LN2, fused in one kernel.  Grid = (N, q_tiles, kv_tiles).
# ---------------------------------------------------------------------------
def attn_ffn_kernel(
    qp_ref, kp_ref, vp_ref, mask_ref, qres_ref,
    wo_ref, bo_ref, g1_ref, be1_ref,
    w1t_ref, b1_ref, w2t_ref, b2_ref, g2_ref, be2_ref,
    out_ref,
    m_sc, l_sc, acc_sc,
    *, heads, head_dim, embed_size,
):
    ki = pl.program_id(2)
    n_kv = pl.num_programs(2)

    @pl.when(ki == 0)
    def _init():
        m_sc[...] = jnp.full(m_sc.shape, -jnp.inf, dtype=m_sc.dtype)
        l_sc[...] = jnp.zeros(l_sc.shape, dtype=l_sc.dtype)
        acc_sc[...] = jnp.zeros(acc_sc.shape, dtype=acc_sc.dtype)

    qp = qp_ref[0]                     # [H, TQ, hd] bf16 (pre-scaled by 1/sqrt(E))
    kp = kp_ref[0]                     # [H, TK, hd] bf16
    vp = vp_ref[0]                     # [H, TK, hd] bf16
    keep = mask_ref[0] != 0            # [TQ, TK]    bool (nonzero = attend)

    # Scores for this KV tile, batched over heads (MXU, f32 accumulation).
    energy = jnp.einsum("hqd,hkd->hqk", qp, kp,
                        preferred_element_type=jnp.float32)      # [H, TQ, TK]
    logits = jnp.where(keep[None, :, :], energy, jnp.float32(-1e20))

    # Online-softmax update.
    m_prev = m_sc[...]                                            # [H, TQ, 1]
    m_new = jnp.maximum(m_prev, jnp.max(logits, axis=-1, keepdims=True))
    alpha = jnp.exp(m_prev - m_new)
    p = jnp.exp(logits - m_new)                                   # [H, TQ, TK]
    l_sc[...] = alpha * l_sc[...] + jnp.sum(p, axis=-1, keepdims=True)
    acc_sc[...] = alpha * acc_sc[...] + jnp.einsum(
        "hqk,hkd->hqd", p.astype(jnp.bfloat16), vp,
        preferred_element_type=jnp.float32)                       # [H, TQ, hd]
    m_sc[...] = m_new

    # Finalize: Wo projection, residual + LN1, FFN, residual + LN2.
    @pl.when(ki == n_kv - 1)
    def _finalize():
        inv_l = 1.0 / l_sc[...]        # exact (runs once per q tile; negligible cost)
        attn_h = (acc_sc[...] * inv_l).astype(jnp.bfloat16)       # [H, TQ, hd]

        # Head-concat folded into Wo:  out = sum_h attn_h[h] @ Wo_h[h]  (+ bias).
        acc_out = jnp.dot(attn_h[0], wo_ref[0], preferred_element_type=jnp.float32)
        for h in range(1, heads):
            acc_out = acc_out + jnp.dot(attn_h[h], wo_ref[h],
                                        preferred_element_type=jnp.float32)
        attn_out = acc_out + bo_ref[...]                          # [TQ, E]

        q_res = qres_ref[0].astype(jnp.float32)                   # original query tile
        x = _layernorm(attn_out + q_res, g1_ref[...], be1_ref[...])

        h1 = jnp.dot(x.astype(jnp.bfloat16), w1t_ref[...],
                     preferred_element_type=jnp.float32) + b1_ref[...]
        h1 = jnp.maximum(h1, 0.0)
        ff = jnp.dot(h1.astype(jnp.bfloat16), w2t_ref[...],
                     preferred_element_type=jnp.float32) + b2_ref[...]

        out_ref[0] = _layernorm(x + ff, g2_ref[...], be2_ref[...]).astype(out_ref.dtype)


def transformer_block(value, key, query, mask, params, *, heads,
                      q_tile=256, kv_tile=256, proj_tile=256):
    N, S, E = query.shape
    assert E % heads == 0
    hd = E // heads
    hidden = params["w1"].shape[0]

    TQ = min(q_tile, S)
    TK = min(kv_tile, S)
    TS = min(proj_tile, S)
    assert S % TQ == 0 and S % TK == 0 and S % TS == 0

    scale = 1.0 / (float(E) ** 0.5)

    # Host prep (one-time): bf16 activations, int8 mask, block-diag per-head weights
    # (with the softmax scale folded into Wq), Wo reshaped per-head, FFN weights
    # transposed to [in, out].
    def block_diag(w):                                # w: [hd, hd] (out, in)
        wt = w.T                                      # [in, out]
        bd = jnp.zeros((E, E), wt.dtype)
        for h in range(heads):
            bd = bd.at[h * hd:(h + 1) * hd, h * hd:(h + 1) * hd].set(wt)
        return bd.astype(jnp.bfloat16)

    wv_bd = block_diag(params["wv"])
    wk_bd = block_diag(params["wk"])
    wq_bd = block_diag(params["wq"] * scale)          # fold 1/sqrt(E) into Q projection

    v_bf = value.astype(jnp.bfloat16)
    k_bf = key.astype(jnp.bfloat16)
    q_bf = query.astype(jnp.bfloat16)
    mask_i8 = (mask != 0).astype(jnp.int8)

    wo_h = params["wo"].T.reshape(heads, hd, E).astype(jnp.bfloat16)   # [H, hd, E]
    w1t = params["w1"].T.astype(jnp.bfloat16)                          # [E, hidden]
    w2t = params["w2"].T.astype(jnp.bfloat16)                          # [hidden, E]

    # ---------------- Stage 1: projections (once per token) ----------------
    proj_kernel = functools.partial(qkv_proj_kernel, heads=heads, head_dim=hd)
    act_spec = pl.BlockSpec((1, TS, E), lambda n, si: (n, si, 0))
    w_spec = pl.BlockSpec((E, E), lambda n, si: (0, 0))
    hs_spec = pl.BlockSpec((1, heads, TS, hd), lambda n, si: (n, 0, si, 0))

    vp, kp, qp = pl.pallas_call(
        proj_kernel,
        out_shape=[jax.ShapeDtypeStruct((N, heads, S, hd), jnp.bfloat16)] * 3,
        grid_spec=pltpu.PrefetchScalarGridSpec(
            num_scalar_prefetch=0,
            grid=(N, S // TS),
            in_specs=[act_spec, act_spec, act_spec, w_spec, w_spec, w_spec],
            out_specs=[hs_spec, hs_spec, hs_spec],
        ),
        compiler_params=pltpu.CompilerParams(
            dimension_semantics=("parallel", "parallel")),
    )(v_bf, k_bf, q_bf, wv_bd, wk_bd, wq_bd)

    # ---------------- Stage 2: attention + Wo + LN1 + FFN + LN2 ------------
    kernel = functools.partial(
        attn_ffn_kernel, heads=heads, head_dim=hd, embed_size=E)

    def const_spec(shape):
        nd = len(shape)
        return pl.BlockSpec(shape, lambda n, qi, ki, _nd=nd: (0,) * _nd)

    grid = (N, S // TQ, S // TK)

    grid_spec = pltpu.PrefetchScalarGridSpec(
        num_scalar_prefetch=0,
        grid=grid,
        in_specs=[
            pl.BlockSpec((1, heads, TQ, hd), lambda n, qi, ki: (n, 0, qi, 0)),  # Q proj
            pl.BlockSpec((1, heads, TK, hd), lambda n, qi, ki: (n, 0, ki, 0)),  # K proj
            pl.BlockSpec((1, heads, TK, hd), lambda n, qi, ki: (n, 0, ki, 0)),  # V proj
            pl.BlockSpec((1, TQ, TK), lambda n, qi, ki: (n, qi, ki)),           # mask (int8)
            pl.BlockSpec((1, TQ, E), lambda n, qi, ki: (n, qi, 0)),             # query residual
            const_spec((heads, hd, E)),   # Wo per-head (bf16)
            const_spec((1, E)),           # bo
            const_spec((1, E)),           # norm1 gamma
            const_spec((1, E)),           # norm1 beta
            const_spec((E, hidden)),      # W1T (bf16)
            const_spec((1, hidden)),      # b1
            const_spec((hidden, E)),      # W2T (bf16)
            const_spec((1, E)),           # b2
            const_spec((1, E)),           # norm2 gamma
            const_spec((1, E)),           # norm2 beta
        ],
        out_specs=pl.BlockSpec((1, TQ, E), lambda n, qi, ki: (n, qi, 0)),
        scratch_shapes=[
            pltpu.VMEM((heads, TQ, 1), jnp.float32),   # running max
            pltpu.VMEM((heads, TQ, 1), jnp.float32),   # running denominator
            pltpu.VMEM((heads, TQ, hd), jnp.float32),  # running P@V accumulator
        ],
    )

    return pl.pallas_call(
        kernel,
        out_shape=jax.ShapeDtypeStruct((N, S, E), jnp.float32),
        grid_spec=grid_spec,
        compiler_params=pltpu.CompilerParams(
            dimension_semantics=("parallel", "parallel", "arbitrary"),
            vmem_limit_bytes=48 * 1024 * 1024),
    )(qp, kp, vp, mask_i8, q_bf,
      wo_h, params["bo"], params["g1"], params["be1"],
      w1t, params["b1"], w2t, params["b2"],
      params["g2"], params["be2"])


def reference(value, key, query, mask, params, *, heads):
    """Pure-JAX f32 reference mirroring the PyTorch forward (dropout = identity)."""
    N, S, E = query.shape
    hd = E // heads
    scale = 1.0 / np.sqrt(E)

    def split(x):  # [N,S,E] -> [N,S,H,hd]
        return x.reshape(N, S, heads, hd)

    v = jnp.einsum("nshd,ed->nshe", split(value), params["wv"])
    k = jnp.einsum("nshd,ed->nshe", split(key), params["wk"])
    q = jnp.einsum("nshd,ed->nshe", split(query), params["wq"])
    energy = jnp.einsum("nqhd,nkhd->nhqk", q, k)
    energy = jnp.where(mask[:, None, :, :] == 0, -1e20, energy)
    attn = jax.nn.softmax(energy * scale, axis=-1)
    out = jnp.einsum("nhqk,nkhd->nqhd", attn, v).reshape(N, S, E)
    out = out @ params["wo"].T + params["bo"][0]

    def ln(x, g, b):
        mu = x.mean(-1, keepdims=True)
        var = ((x - mu) ** 2).mean(-1, keepdims=True)
        return (x - mu) / jnp.sqrt(var + 1e-5) * g[0] + b[0]

    x = ln(out + query, params["g1"], params["be1"])
    ff = jnp.maximum(x @ params["w1"].T + params["b1"][0], 0.0) @ params["w2"].T + params["b2"][0]
    return ln(x + ff, params["g2"], params["be2"])


if __name__ == "__main__":
    # Small config chosen so that hd = 128 (lane-dense head tiles) and the 256-wide
    # tiling path with multiple q/kv tiles is exercised: grid = (2, 2, 2).
    N, S, E, heads, fwd_exp = 2, 512, 256, 2, 4
    hd = E // heads
    hidden = fwd_exp * E

    key0 = jax.random.PRNGKey(0)
    ks = jax.random.split(key0, 12)

    def init(k, shape, scale=0.1):
        return (scale * jax.random.normal(k, shape)).astype(jnp.float32)

    params = {
        "wv": init(ks[0], (hd, hd)),
        "wk": init(ks[1], (hd, hd)),
        "wq": init(ks[2], (hd, hd)),
        "wo": init(ks[3], (E, E)),
        "bo": init(ks[4], (1, E)),
        "g1": jnp.ones((1, E), jnp.float32),
        "be1": jnp.zeros((1, E), jnp.float32),
        "w1": init(ks[5], (hidden, E)),
        "b1": init(ks[6], (1, hidden)),
        "w2": init(ks[7], (E, hidden)),
        "b2": init(ks[8], (1, E)),
        "g2": jnp.ones((1, E), jnp.float32),
        "be2": jnp.zeros((1, E), jnp.float32),
    }

    value = init(ks[9], (N, S, E), scale=1.0)
    keyx = init(ks[10], (N, S, E), scale=1.0)
    query = init(ks[11], (N, S, E), scale=1.0)
    # causal mask, broadcast across batch (nonzero = attend)
    mask = jnp.broadcast_to(jnp.tril(jnp.ones((S, S), jnp.float32)), (N, S, S))

    out = transformer_block(value, keyx, query, mask, params, heads=heads)
    out = jax.block_until_ready(out)

    ref = reference(value, keyx, query, mask, params, heads=heads)
    # Tolerance sized for bf16 MXU operands / bf16 activation streaming with f32
    # accumulation through attention + two LayerNorms + FFN (outputs ~unit variance).
    np.testing.assert_allclose(np.asarray(out), np.asarray(ref), rtol=5e-2, atol=5e-2)

    print("KERNEL_OK")
</pallas_src>

<mosaic_0001>
module attributes {stable_mosaic.version = 11 : i64} {
  func.func @qkv_proj_kernel(%arg0: i32, %arg1: i32, %arg2: memref<1x256x256xbf16, #tpu.memory_space<vmem>>, %arg3: memref<1x256x256xbf16, #tpu.memory_space<vmem>>, %arg4: memref<1x256x256xbf16, #tpu.memory_space<vmem>>, %arg5: memref<256x256xbf16, #tpu.memory_space<vmem>>, %arg6: memref<256x256xbf16, #tpu.memory_space<vmem>>, %arg7: memref<256x256xbf16, #tpu.memory_space<vmem>>, %arg8: memref<1x2x256x128xbf16, #tpu.memory_space<vmem>>, %arg9: memref<1x2x256x128xbf16, #tpu.memory_space<vmem>>, %arg10: memref<1x2x256x128xbf16, #tpu.memory_space<vmem>>) attributes {dimension_semantics = [#tpu.dimension_semantics<parallel>, #tpu.dimension_semantics<parallel>], iteration_bounds = array<i64: 2, 2>, scalar_prefetch = 0 : i64, scratch_operands = 0 : i64, tpu.core_type = #tpu.core_type<tc>, window_params = [{transform_indices = @transform_0, window_bounds = array<i64: 1, 256, 256>}, {transform_indices = @transform_1, window_bounds = array<i64: 1, 256, 256>}, {transform_indices = @transform_2, window_bounds = array<i64: 1, 256, 256>}, {pipeline_mode = #tpu.pipeline_mode<synchronous>, transform_indices = @transform_3, window_bounds = array<i64: 256, 256>}, {pipeline_mode = #tpu.pipeline_mode<synchronous>, transform_indices = @transform_4, window_bounds = array<i64: 256, 256>}, {pipeline_mode = #tpu.pipeline_mode<synchronous>, transform_indices = @transform_5, window_bounds = array<i64: 256, 256>}, {transform_indices = @transform_6, window_bounds = array<i64: 1, 2, 256, 128>}, {transform_indices = @transform_7, window_bounds = array<i64: 1, 2, 256, 128>}, {transform_indices = @transform_8, window_bounds = array<i64: 1, 2, 256, 128>}]} {
    %c0 = arith.constant 0 : index
    %c0_0 = arith.constant 0 : index
    %c0_1 = arith.constant 0 : index
    %0 = vector.load %arg2[%c0, %c0_0, %c0_1] : memref<1x256x256xbf16, #tpu.memory_space<vmem>>, vector<1x256x256xbf16>
    %1 = vector.shape_cast %0 : vector<1x256x256xbf16> to vector<256x256xbf16>
    %c0_2 = arith.constant 0 : index
    %c0_3 = arith.constant 0 : index
    %2 = vector.load %arg5[%c0_2, %c0_3] : memref<256x256xbf16, #tpu.memory_space<vmem>>, vector<256x256xbf16>
    %cst = arith.constant dense<0.000000e+00> : vector<256x256xf32>
    %3 = tpu.matmul %1, %2, %cst {dimension_numbers = #tpu.dot_dimension_numbers<[1], [0], [0], [1], [0, 0, 1, 1], [], []>} : vector<256x256xbf16>, vector<256x256xbf16>, vector<256x256xf32> -> vector<256x256xf32>
    %4 = arith.truncf %3 : vector<256x256xf32> to vector<256x256xbf16>
    %5 = vector.extract_strided_slice %4 {offsets = [0, 0], sizes = [256, 128], strides = [1, 1]} : vector<256x256xbf16> to vector<256x128xbf16>
    %c0_4 = arith.constant 0 : index
    %c0_5 = arith.constant 0 : index
    %c0_6 = arith.constant 0 : index
    %c0_7 = arith.constant 0 : index
    %6 = vector.load %arg8[%c0_4, %c0_5, %c0_6, %c0_7] : memref<1x2x256x128xbf16, #tpu.memory_space<vmem>>, vector<1x1x256x128xbf16>
    %7 = vector.shape_cast %6 : vector<1x1x256x128xbf16> to vector<256x128xbf16>
    %8 = vector.shape_cast %5 : vector<256x128xbf16> to vector<1x1x256x128xbf16>
    tpu.vector_store %arg8[%c0_4, %c0_5, %c0_6, %c0_7], %8 {strides = array<i32>} : memref<1x2x256x128xbf16, #tpu.memory_space<vmem>>, vector<1x1x256x128xbf16>,
    %9 = vector.extract_strided_slice %4 {offsets = [0, 128], sizes = [256, 128], strides = [1, 1]} : vector<256x256xbf16> to vector<256x128xbf16>
    %c0_8 = arith.constant 0 : index
    %c1 = arith.constant 1 : index
    %c0_9 = arith.constant 0 : index
    %c0_10 = arith.constant 0 : index
    %10 = vector.load %arg8[%c0_8, %c1, %c0_9, %c0_10] : memref<1x2x256x128xbf16, #tpu.memory_space<vmem>>, vector<1x1x256x128xbf16>
    %11 = vector.shape_cast %10 : vector<1x1x256x128xbf16> to vector<256x128xbf16>
    %12 = vector.shape_cast %9 : vector<256x128xbf16> to vector<1x1x256x128xbf16>
    tpu.vector_store %arg8[%c0_8, %c1, %c0_9, %c0_10], %12 {strides = array<i32>} : memref<1x2x256x128xbf16, #tpu.memory_space<vmem>>, vector<1x1x256x128xbf16>,
    %c0_11 = arith.constant 0 : index
    %c0_12 = arith.constant 0 : index
    %c0_13 = arith.constant 0 : index
    %13 = vector.load %arg3[%c0_11, %c0_12, %c0_13] : memref<1x256x256xbf16, #tpu.memory_space<vmem>>, vector<1x256x256xbf16>
    %14 = vector.shape_cast %13 : vector<1x256x256xbf16> to vector<256x256xbf16>
    %c0_14 = arith.constant 0 : index
    %c0_15 = arith.constant 0 : index
    %15 = vector.load %arg6[%c0_14, %c0_15] : memref<256x256xbf16, #tpu.memory_space<vmem>>, vector<256x256xbf16>
    %cst_16 = arith.constant dense<0.000000e+00> : vector<256x256xf32>
    %16 = tpu.matmul %14, %15, %cst_16 {dimension_numbers = #tpu.dot_dimension_numbers<[1], [0], [0], [1], [0, 0, 1, 1], [], []>} : vector<256x256xbf16>, vector<256x256xbf16>, vector<256x256xf32> -> vector<256x256xf32>
    %17 = arith.truncf %16 : vector<256x256xf32> to vector<256x256xbf16>
    %18 = vector.extract_strided_slice %17 {offsets = [0, 0], sizes = [256, 128], strides = [1, 1]} : vector<256x256xbf16> to vector<256x128xbf16>
    %c0_17 = arith.constant 0 : index
    %c0_18 = arith.constant 0 : index
    %c0_19 = arith.constant 0 : index
    %c0_20 = arith.constant 0 : index
    %19 = vector.load %arg9[%c0_17, %c0_18, %c0_19, %c0_20] : memref<1x2x256x128xbf16, #tpu.memory_space<vmem>>, vector<1x1x256x128xbf16>
    %20 = vector.shape_cast %19 : vector<1x1x256x128xbf16> to vector<256x128xbf16>
    %21 = vector.shape_cast %18 : vector<256x128xbf16> to vector<1x1x256x128xbf16>
    tpu.vector_store %arg9[%c0_17, %c0_18, %c0_19, %c0_20], %21 {strides = array<i32>} : memref<1x2x256x128xbf16, #tpu.memory_space<vmem>>, vector<1x1x256x128xbf16>,
    %22 = vector.extract_strided_slice %17 {offsets = [0, 128], sizes = [256, 128], strides = [1, 1]} : vector<256x256xbf16> to vector<256x128xbf16>
    %c0_21 = arith.constant 0 : index
    %c1_22 = arith.constant 1 : index
    %c0_23 = arith.constant 0 : index
    %c0_24 = arith.constant 0 : index
    %23 = vector.load %arg9[%c0_21, %c1_22, %c0_23, %c0_24] : memref<1x2x256x128xbf16, #tpu.memory_space<vmem>>, vector<1x1x256x128xbf16>
    %24 = vector.shape_cast %23 : vector<1x1x256x128xbf16> to vector<256x128xbf16>
    %25 = vector.shape_cast %22 : vector<256x128xbf16> to vector<1x1x256x128xbf16>
    tpu.vector_store %arg9[%c0_21, %c1_22, %c0_23, %c0_24], %25 {strides = array<i32>} : memref<1x2x256x128xbf16, #tpu.memory_space<vmem>>, vector<1x1x256x128xbf16>,
    %c0_25 = arith.constant 0 : index
    %c0_26 = arith.constant 0 : index
    %c0_27 = arith.constant 0 : index
    %26 = vector.load %arg4[%c0_25, %c0_26, %c0_27] : memref<1x256x256xbf16, #tpu.memory_space<vmem>>, vector<1x256x256xbf16>
    %27 = vector.shape_cast %26 : vector<1x256x256xbf16> to vector<256x256xbf16>
    %c0_28 = arith.constant 0 : index
    %c0_29 = arith.constant 0 : index
    %28 = vector.load %arg7[%c0_28, %c0_29] : memref<256x256xbf16, #tpu.memory_space<vmem>>, vector<256x256xbf16>
    %cst_30 = arith.constant dense<0.000000e+00> : vector<256x256xf32>
    %29 = tpu.matmul %27, %28, %cst_30 {dimension_numbers = #tpu.dot_dimension_numbers<[1], [0], [0], [1], [0, 0, 1, 1], [], []>} : vector<256x256xbf16>, vector<256x256xbf16>, vector<256x256xf32> -> vector<256x256xf32>
    %30 = arith.truncf %29 : vector<256x256xf32> to vector<256x256xbf16>
    %31 = vector.extract_strided_slice %30 {offsets = [0, 0], sizes = [256, 128], strides = [1, 1]} : vector<256x256xbf16> to vector<256x128xbf16>
    %c0_31 = arith.constant 0 : index
    %c0_32 = arith.constant 0 : index
    %c0_33 = arith.constant 0 : index
    %c0_34 = arith.constant 0 : index
    %32 = vector.load %arg10[%c0_31, %c0_32, %c0_33, %c0_34] : memref<1x2x256x128xbf16, #tpu.memory_space<vmem>>, vector<1x1x256x128xbf16>
    %33 = vector.shape_cast %32 : vector<1x1x256x128xbf16> to vector<256x128xbf16>
    %34 = vector.shape_cast %31 : vector<256x128xbf16> to vector<1x1x256x128xbf16>
    tpu.vector_store %arg10[%c0_31, %c0_32, %c0_33, %c0_34], %34 {strides = array<i32>} : memref<1x2x256x128xbf16, #tpu.memory_space<vmem>>, vector<1x1x256x128xbf16>,
    %35 = vector.extract_strided_slice %30 {offsets = [0, 128], sizes = [256, 128], strides = [1, 1]} : vector<256x256xbf16> to vector<256x128xbf16>
    %c0_35 = arith.constant 0 : index
    %c1_36 = arith.constant 1 : index
    %c0_37 = arith.constant 0 : index
    %c0_38 = arith.constant 0 : index
    %36 = vector.load %arg10[%c0_35, %c1_36, %c0_37, %c0_38] : memref<1x2x256x128xbf16, #tpu.memory_space<vmem>>, vector<1x1x256x128xbf16>
    %37 = vector.shape_cast %36 : vector<1x1x256x128xbf16> to vector<256x128xbf16>
    %38 = vector.shape_cast %35 : vector<256x128xbf16> to vector<1x1x256x128xbf16>
    tpu.vector_store %arg10[%c0_35, %c1_36, %c0_37, %c0_38], %38 {strides = array<i32>} : memref<1x2x256x128xbf16, #tpu.memory_space<vmem>>, vector<1x1x256x128xbf16>,
    return
  }
  func.func @transform_0(%arg0: i32, %arg1: i32) -> (i32, i32, i32) {
    %c0_i32 = arith.constant 0 : i32
    %c0_i32_0 = arith.constant 0 : i32
    return %arg0, %arg1, %c0_i32 : i32, i32, i32
  }
  func.func @transform_1(%arg0: i32, %arg1: i32) -> (i32, i32, i32) {
    %c0_i32 = arith.constant 0 : i32
    %c0_i32_0 = arith.constant 0 : i32
    return %arg0, %arg1, %c0_i32 : i32, i32, i32
  }
  func.func @transform_2(%arg0: i32, %arg1: i32) -> (i32, i32, i32) {
    %c0_i32 = arith.constant 0 : i32
    %c0_i32_0 = arith.constant 0 : i32
    return %arg0, %arg1, %c0_i32 : i32, i32, i32
  }
  func.func @transform_3(%arg0: i32, %arg1: i32) -> (i32, i32) {
    %c0_i32 = arith.constant 0 : i32
    %c0_i32_0 = arith.constant 0 : i32
    %c0_i32_1 = arith.constant 0 : i32
    return %c0_i32, %c0_i32_0 : i32, i32
  }
  func.func @transform_4(%arg0: i32, %arg1: i32) -> (i32, i32) {
    %c0_i32 = arith.constant 0 : i32
    %c0_i32_0 = arith.constant 0 : i32
    %c0_i32_1 = arith.constant 0 : i32
    return %c0_i32, %c0_i32_0 : i32, i32
  }
  func.func @transform_5(%arg0: i32, %arg1: i32) -> (i32, i32) {
    %c0_i32 = arith.constant 0 : i32
    %c0_i32_0 = arith.constant 0 : i32
    %c0_i32_1 = arith.constant 0 : i32
    return %c0_i32, %c0_i32_0 : i32, i32
  }
  func.func @transform_6(%arg0: i32, %arg1: i32) -> (i32, i32, i32, i32) {
    %c0_i32 = arith.constant 0 : i32
    %c0_i32_0 = arith.constant 0 : i32
    %c0_i32_1 = arith.constant 0 : i32
    return %arg0, %c0_i32, %arg1, %c0_i32_0 : i32, i32, i32, i32
  }
  func.func @transform_7(%arg0: i32, %arg1: i32) -> (i32, i32, i32, i32) {
    %c0_i32 = arith.constant 0 : i32
    %c0_i32_0 = arith.constant 0 : i32
    %c0_i32_1 = arith.constant 0 : i32
    return %arg0, %c0_i32, %arg1, %c0_i32_0 : i32, i32, i32, i32
  }
  func.func @transform_8(%arg0: i32, %arg1: i32) -> (i32, i32, i32, i32) {
    %c0_i32 = arith.constant 0 : i32
    %c0_i32_0 = arith.constant 0 : i32
    %c0_i32_1 = arith.constant 0 : i32
    return %arg0, %c0_i32, %arg1, %c0_i32_0 : i32, i32, i32, i32
  }
}

</mosaic_0001>

<llo_original>
// kernel: tpu_custom_call.1
$region0: #{tpu_custom_call.1}
  #allocation0 [shape = 'u32[]', space=smem, size = 0x4, offset = 0x4, fixed_abs, tag = 'smem constant byte address 0x4 - core index']
  #allocation1 [shape = 'u32[144,128]{1,0:T(1,128)}', space=vmem, size = 0x12000, scoped, tag = 'internal scratch']
  #allocation17 [shape = 's32[]', space=sflag, size = 0x4, offset = 0, fixed_abs, tag = 'sflag constant byte address 0x0 - dummy sync flag']
  #allocation19 [shape = 's32[]', space=sflag, size = 0x4, offset = 0, fixed_abs, tag = 'sflag constant byte address 0x0 - dummy sync flag']
  #allocation21 [shape = 's32[]', space=sflag, size = 0x4, offset = 0, fixed_abs, tag = 'sflag constant byte address 0x0 - dummy sync flag']
  %s0 = inlined_call_operand.hbm [shape: bf16[2,512,256], index: 0, kind: input, shape index: {}]
  %s1 = inlined_call_operand.hbm [shape: bf16[2,512,256], index: 1, kind: input, shape index: {}]
  %s2 = inlined_call_operand.hbm [shape: bf16[2,512,256], index: 2, kind: input, shape index: {}]
  %s3 = inlined_call_operand.hbm [shape: bf16[256,256], index: 3, kind: input, shape index: {}]
  %s4 = inlined_call_operand.hbm [shape: bf16[256,256], index: 4, kind: input, shape index: {}]
  %s5 = inlined_call_operand.hbm [shape: bf16[256,256], index: 5, kind: input, shape index: {}]
  %s6 = inlined_call_operand.hbm [shape: bf16[2,2,512,128], index: 6, kind: output, shape index: {0}]
  %s7 = inlined_call_operand.hbm [shape: bf16[2,2,512,128], index: 7, kind: output, shape index: {1}]
  %s8 = inlined_call_operand.hbm [shape: bf16[2,2,512,128], index: 8, kind: output, shape index: {2}]
  %9 = xla_tuple %s6, %s7, %s8
  %s10 = sld [smem:[#allocation0]]
  $region97: #{tpu_custom_call.1} parent=0
    _
  %s12 = ssub.s32 1, %s10
  %s13 = scalar_select 0, %s12, %s10
  $region1: #{tpu_custom_call.1} parent=0
    #allocation2 [shape = 'u8[262144]{0}', space=vmem, size = 0x40000, scoped, tag = 'input window, operand 0']
    #allocation3 [shape = 's32[2]{0}', space=sflag, size = 0x8, scoped, tag = 'scoped memory for tpu_custom_call.1']
    #allocation4 [shape = 's32[2]{0}', space=sflag, size = 0x8, scoped, tag = 'scoped memory for tpu_custom_call.1']
    #allocation5 [shape = 'u8[262144]{0}', space=vmem, size = 0x40000, scoped, tag = 'input window, operand 1']
    #allocation6 [shape = 's32[2]{0}', space=sflag, size = 0x8, scoped, tag = 'scoped memory for tpu_custom_call.1']
    #allocation7 [shape = 'u8[262144]{0}', space=vmem, size = 0x40000, scoped, tag = 'input window, operand 2']
    #allocation8 [shape = 'u8[131072]{0}', space=vmem, size = 0x20000, scoped, tag = 'input window, operand 3, single buffered']
    #allocation9 [shape = 's32[1]{0}', space=sflag, size = 0x4, scoped, tag = 'scoped memory for tpu_custom_call.1']
    #allocation10 [shape = 'u8[131072]{0}', space=vmem, size = 0x20000, scoped, tag = 'input window, operand 4, single buffered']
    #allocation11 [shape = 'u8[131072]{0}', space=vmem, size = 0x20000, scoped, tag = 'input window, operand 5, single buffered']
    #allocation12 [shape = 's32[1]{0}', space=sflag, size = 0x4, scoped, tag = 'scoped memory for tpu_custom_call.1']
    #allocation13 [shape = 'u8[262144]{0}', space=vmem, size = 0x40000, scoped, tag = 'output window, operand 0']
    #allocation14 [shape = 'u8[262144]{0}', space=vmem, size = 0x40000, scoped, tag = 'output window, operand 1']
    #allocation15 [shape = 's32[2]{0}', space=sflag, size = 0x8, scoped, tag = 'scoped memory for tpu_custom_call.1']
    #allocation16 [shape = 'u8[262144]{0}', space=vmem, size = 0x40000, scoped, tag = 'output window, operand 2']
    %14 = vsyncpa [#allocation3], 0
    %s15 = scalar_lea.sflag [#allocation3], 1
    %16 = vsyncpa %s15, 0
    %17 = vsyncpa [#allocation6], 0
    %s18 = scalar_lea.sflag [#allocation6], 1
    %19 = vsyncpa %s18, 0
    %20 = vsyncpa [#allocation9], 0
    %21 = vsyncpa [#allocation12], 0
    %22 = vsyncpa [#allocation4], 0
    %s23 = scalar_lea.sflag [#allocation4], 1
    %24 = vsyncpa %s23, 0
    %25 = vsyncpa [#allocation15], 0
    %s26 = scalar_lea.sflag [#allocation15], 1
    %27 = vsyncpa %s26, 0
    loop: start=0, step=1, limit=6
    $region2: #{tpu_custom_call.1} parent=1 // loop_pre_header
      _
    $region3: #{tpu_custom_call.1} parent=1 // loop_header
      %s29 = sphi 0, %s33
      %p30 = scmp.ge.s32.totalorder %s29, 6
      %s36 = sphi 0, %s48
      %s37 = sphi 0, %s44
      %s38 = sphi 0, %s36
      %s39 = sphi 0, %s37
      %s40 = sphi 0, %s38
      %s41 = sphi 0, %s39
      %s53 = sphi 0, %s55
      %s56 = sphi 0, %s53
      %s57 = sphi 0, %s56
      %s73 = sphi 0, %s57
      %s81 = sphi 0, %s83
      %s84 = sphi 0, %s81
      %s85 = sphi 0, %s84
      %s101 = sphi 0, %s85
      %s109 = sphi 0, %s111
      %s112 = sphi 0, %s109
      %s113 = sphi 0, %s112
      %s129 = sphi 0, %s113
      %s133 = sphi 0, %s133
      %s135 = sphi 0, %s133
      %s136 = sphi 0, %s135
      %s150 = sphi 0, %s136
      %s154 = sphi 0, %s154
      %s156 = sphi 0, %s154
      %s157 = sphi 0, %s156
      %s171 = sphi 0, %s157
      %s175 = sphi 0, %s175
      %s177 = sphi 0, %s175
      %s178 = sphi 0, %s177
      %s192 = sphi 0, %s178
      %s200 = sphi 0, %s202
      %s203 = sphi 0, %s200
      %s204 = sphi 0, %s203
      %s220 = sphi 0, %s204
      %s228 = sphi 0, %s230
      %s231 = sphi 0, %s228
      %s232 = sphi 0, %s231
      %s248 = sphi 0, %s232
      %s256 = sphi 0, %s258
      %s259 = sphi 0, %s256
      %s260 = sphi 0, %s259
      %s276 = sphi 0, %s260
    $region4: #{tpu_custom_call.1} parent=1 // loop_header_branch
      %32 = sbr.rel (%p30) target = $region8
    $region5: #{tpu_custom_call.1} parent=1 // loop_body
      %s34 = ssub.s32 %s29, 1
      %s35 = ssub.s32 %s29, 2
      %s42 = sadd.s32 1, %s37
      %p43 = scmp.ge.s32.totalorder %s42, 2
      %s44 = scalar_select %p43, 0, %s42
      %s45 = sadd.s32 1, %s36
      %s46 = scalar_select %p43, %s45, %s36
      %p47 = scmp.ge.s32.totalorder %s46, 2
      %s48 = scalar_select %p47, 0, %s46
      %s49 = ssub.s32 %s36, %s48
      %s50 = ssub.s32 %s37, %s44
      %s51 = sor.u32 %s49, %s50
      %p52 = scmp.eq.s32.totalorder %s51, 0
      %s54 = sadd.s32 %s53, 1
      %s55 = scalar_select %p52, %s53, %s54
      %p58 = pneg %p52
      %p59 = scmp.eq.s32.totalorder %s29, 3
      %p60 = por %p58, %p59
      %p61 = scmp.ne.s32.totalorder %s53, %s56
      %p62 = scmp.eq.s32.totalorder %s29, 0
      %p63 = por %p61, %p62
      %p64 = scmp.ne.s32.totalorder %s53, %s56
      %p65 = scmp.eq.s32.totalorder %s34, 3
      %p66 = por %p64, %p65
      %p67 = scmp.ne.s32.totalorder %s56, %s57
      %p68 = scmp.eq.s32.totalorder %s34, 0
      %p69 = por %p67, %p68
      %p70 = scmp.ne.s32.totalorder %s56, %s57
      %p71 = scmp.eq.s32.totalorder %s35, 3
      %p72 = por %p70, %p71
      %p74 = scmp.ne.s32.totalorder %s57, %s73
      %p75 = scmp.eq.s32.totalorder %s35, 0
      %p76 = por %p74, %p75
      %s77 = ssub.s32 %s36, %s48
      %s78 = ssub.s32 %s37, %s44
      %s79 = sor.u32 %s77, %s78
      %p80 = scmp.eq.s32.totalorder %s79, 0
      %s82 = sadd.s32 %s81, 1
      %s83 = scalar_select %p80, %s81, %s82
      %p86 = pneg %p80
      %p87 = scmp.eq.s32.totalorder %s29, 3
      %p88 = por %p86, %p87
      %p89 = scmp.ne.s32.totalorder %s81, %s84
      %p90 = scmp.eq.s32.totalorder %s29, 0
      %p91 = por %p89, %p90
      %p92 = scmp.ne.s32.totalorder %s81, %s84
      %p93 = scmp.eq.s32.totalorder %s34, 3
      %p94 = por %p92, %p93
      %p95 = scmp.ne.s32.totalorder %s84, %s85
      %p96 = scmp.eq.s32.totalorder %s34, 0
      %p97 = por %p95, %p96
      %p98 = scmp.ne.s32.totalorder %s84, %s85
      %p99 = scmp.eq.s32.totalorder %s35, 3
      %p100 = por %p98, %p99
      %p102 = scmp.ne.s32.totalorder %s85, %s101
      %p103 = scmp.eq.s32.totalorder %s35, 0
      %p104 = por %p102, %p103
      %s105 = ssub.s32 %s36, %s48
      %s106 = ssub.s32 %s37, %s44
      %s107 = sor.u32 %s105, %s106
      %p108 = scmp.eq.s32.totalorder %s107, 0
      %s110 = sadd.s32 %s109, 1
      %s111 = scalar_select %p108, %s109, %s110
      %p114 = pneg %p108
      %p115 = scmp.eq.s32.totalorder %s29, 3
      %p116 = por %p114, %p115
      %p117 = scmp.ne.s32.totalorder %s109, %s112
      %p118 = scmp.eq.s32.totalorder %s29, 0
      %p119 = por %p117, %p118
      %p120 = scmp.ne.s32.totalorder %s109, %s112
      %p121 = scmp.eq.s32.totalorder %s34, 3
      %p122 = por %p120, %p121
      %p123 = scmp.ne.s32.totalorder %s112, %s113
      %p124 = scmp.eq.s32.totalorder %s34, 0
      %p125 = por %p123, %p124
      %p126 = scmp.ne.s32.totalorder %s112, %s113
      %p127 = scmp.eq.s32.totalorder %s35, 3
      %p128 = por %p126, %p127
      %p130 = scmp.ne.s32.totalorder %s113, %s129
      %p131 = scmp.eq.s32.totalorder %s35, 0
      %p132 = por %p130, %p131
      %s134 = sadd.s32 %s133, 1
      %p137 = scmp.eq.s32.totalorder %s29, 3
      %p138 = scmp.ne.s32.totalorder %s133, %s135
      %p139 = scmp.eq.s32.totalorder %s29, 0
      %p140 = por %p138, %p139
      %p141 = scmp.ne.s32.totalorder %s133, %s135
      %p142 = scmp.eq.s32.totalorder %s34, 3
      %p143 = por %p141, %p142
      %p144 = scmp.ne.s32.totalorder %s135, %s136
      %p145 = scmp.eq.s32.totalorder %s34, 0
      %p146 = por %p144, %p145
      %p147 = scmp.ne.s32.totalorder %s135, %s136
      %p148 = scmp.eq.s32.totalorder %s35, 3
      %p149 = por %p147, %p148
      %p151 = scmp.ne.s32.totalorder %s136, %s150
      %p152 = scmp.eq.s32.totalorder %s35, 0
      %p153 = por %p151, %p152
      %s155 = sadd.s32 %s154, 1
      %p158 = scmp.eq.s32.totalorder %s29, 3
      %p159 = scmp.ne.s32.totalorder %s154, %s156
      %p160 = scmp.eq.s32.totalorder %s29, 0
      %p161 = por %p159, %p160
      %p162 = scmp.ne.s32.totalorder %s154, %s156
      %p163 = scmp.eq.s32.totalorder %s34, 3
      %p164 = por %p162, %p163
      %p165 = scmp.ne.s32.totalorder %s156, %s157
      %p166 = scmp.eq.s32.totalorder %s34, 0
      %p167 = por %p165, %p166
      %p168 = scmp.ne.s32.totalorder %s156, %s157
      %p169 = scmp.eq.s32.totalorder %s35, 3
      %p170 = por %p168, %p169
      %p172 = scmp.ne.s32.totalorder %s157, %s171
      %p173 = scmp.eq.s32.totalorder %s35, 0
      %p174 = por %p172, %p173
      %s176 = sadd.s32 %s175, 1
      %p179 = scmp.eq.s32.totalorder %s29, 3
      %p180 = scmp.ne.s32.totalorder %s175, %s177
      %p181 = scmp.eq.s32.totalorder %s29, 0
      %p182 = por %p180, %p181
      %p183 = scmp.ne.s32.totalorder %s175, %s177
      %p184 = scmp.eq.s32.totalorder %s34, 3
      %p185 = por %p183, %p184
      %p186 = scmp.ne.s32.totalorder %s177, %s178
      %p187 = scmp.eq.s32.totalorder %s34, 0
      %p188 = por %p186, %p187
      %p189 = scmp.ne.s32.totalorder %s177, %s178
      %p190 = scmp.eq.s32.totalorder %s35, 3
      %p191 = por %p189, %p190
      %p193 = scmp.ne.s32.totalorder %s178, %s192
      %p194 = scmp.eq.s32.totalorder %s35, 0
      %p195 = por %p193, %p194
      %s196 = ssub.s32 %s36, %s48
      %s197 = ssub.s32 %s37, %s44
      %s198 = sor.u32 %s196, %s197
      %p199 = scmp.eq.s32.totalorder %s198, 0
      %s201 = sadd.s32 %s200, 1
      %s202 = scalar_select %p199, %s200, %s201
      %p205 = pneg %p199
      %p206 = scmp.eq.s32.totalorder %s29, 3
      %p207 = por %p205, %p206
      %p208 = scmp.ne.s32.totalorder %s200, %s203
      %p209 = scmp.eq.s32.totalorder %s29, 0
      %p210 = por %p208, %p209
      %p211 = scmp.ne.s32.totalorder %s200, %s203
      %p212 = scmp.eq.s32.totalorder %s34, 3
      %p213 = por %p211, %p212
      %p214 = scmp.ne.s32.totalorder %s203, %s204
      %p215 = scmp.eq.s32.totalorder %s34, 0
      %p216 = por %p214, %p215
      %p217 = scmp.ne.s32.totalorder %s203, %s204
      %p218 = scmp.eq.s32.totalorder %s35, 3
      %p219 = por %p217, %p218
      %p221 = scmp.ne.s32.totalorder %s204, %s220
      %p222 = scmp.eq.s32.totalorder %s35, 0
      %p223 = por %p221, %p222
      %s224 = ssub.s32 %s36, %s48
      %s225 = ssub.s32 %s37, %s44
      %s226 = sor.u32 %s224, %s225
      %p227 = scmp.eq.s32.totalorder %s226, 0
      %s229 = sadd.s32 %s228, 1
      %s230 = scalar_select %p227, %s228, %s229
      %p233 = pneg %p227
      %p234 = scmp.eq.s32.totalorder %s29, 3
      %p235 = por %p233, %p234
      %p236 = scmp.ne.s32.totalorder %s228, %s231
      %p237 = scmp.eq.s32.totalorder %s29, 0
      %p238 = por %p236, %p237
      %p239 = scmp.ne.s32.totalorder %s228, %s231
      %p240 = scmp.eq.s32.totalorder %s34, 3
      %p241 = por %p239, %p240
      %p242 = scmp.ne.s32.totalorder %s231, %s232
      %p243 = scmp.eq.s32.totalorder %s34, 0
      %p244 = por %p242, %p243
      %p245 = scmp.ne.s32.totalorder %s231, %s232
      %p246 = scmp.eq.s32.totalorder %s35, 3
      %p247 = por %p245, %p246
      %p249 = scmp.ne.s32.totalorder %s232, %s248
      %p250 = scmp.eq.s32.totalorder %s35, 0
      %p251 = por %p249, %p250
      %s252 = ssub.s32 %s36, %s48
      %s253 = ssub.s32 %s37, %s44
      %s254 = sor.u32 %s252, %s253
      %p255 = scmp.eq.s32.totalorder %s254, 0
      %s257 = sadd.s32 %s256, 1
      %s258 = scalar_select %p255, %s256, %s257
      %p261 = pneg %p255
      %p262 = scmp.eq.s32.totalorder %s29, 3
      %p263 = por %p261, %p262
      %p264 = scmp.ne.s32.totalorder %s256, %s259
      %p265 = scmp.eq.s32.totalorder %s29, 0
      %p266 = por %p264, %p265
      %p267 = scmp.ne.s32.totalorder %s256, %s259
      %p268 = scmp.eq.s32.totalorder %s34, 3
      %p269 = por %p267, %p268
      %p270 = scmp.ne.s32.totalorder %s259, %s260
      %p271 = scmp.eq.s32.totalorder %s34, 0
      %p272 = por %p270, %p271
      %p273 = scmp.ne.s32.totalorder %s259, %s260
      %p274 = scmp.eq.s32.totalorder %s35, 3
      %p275 = por %p273, %p274
      %p277 = scmp.ne.s32.totalorder %s260, %s276
      %p278 = scmp.eq.s32.totalorder %s35, 0
      %p279 = por %p277, %p278
      %p280 = scmp.le.s32.totalorder 1, %s29
      %p281 = scmp.lt.s32.totalorder %s29, 5
      %p282 = pnand %p280, %p281
      %p283 = pneg %p282
      // Predicated region
      $region9: #{tpu_custom_call.1} parent=5 // pred_check
        _
      $region10: #{tpu_custom_call.1} parent=5 // pred_check_branch
        %285 = sbr.rel (%p282) target = $region12
      $region11: #{tpu_custom_call.1} parent=5 // pred_region
        %s286 = ssub.s32 %s29, 1
        // Predicated region
        $region13: #{tpu_custom_call.1} parent=11 // pred_check
          %p287 = pneg %p146
        $region14: #{tpu_custom_call.1} parent=11 // pred_check_branch
          %289 = sbr.rel (%p287) target = $region16
        $region15: #{tpu_custom_call.1} parent=11 // pred_region
          %s291 = ssub.s32 4096, 4096
          %292 = vsyncadd [#allocation9], %s291
          %s293 = sshll.u32 [#allocation8], 4
          %s294 = int_to_ptr.vmem [resolvable:$true] %s293
          %299 = dma.hbm_to_vmem [thread:$0]  %s3, 4096, %s294, [#allocation9], 128, 128, 8
        $region16: #{tpu_custom_call.1} parent=11 // pred_fallthru
          _
        // Predicated region
        $region17: #{tpu_custom_call.1} parent=11 // pred_check
          %p300 = pneg %p167
        $region18: #{tpu_custom_call.1} parent=11 // pred_check_branch
          %302 = sbr.rel (%p300) target = $region20
        $region19: #{tpu_custom_call.1} parent=11 // pred_region
          %s304 = ssub.s32 4096, 4096
          %305 = vsyncadd [#allocation9], %s304
          %s306 = sshll.u32 [#allocation10], 4
          %s307 = int_to_ptr.vmem [resolvable:$true] %s306
          %312 = dma.hbm_to_vmem [thread:$0]  %s4, 4096, %s307, [#allocation9], 128, 128, 8
        $region20: #{tpu_custom_call.1} parent=11 // pred_fallthru
          _
        // Predicated region
        $region21: #{tpu_custom_call.1} parent=11 // pred_check
          %p313 = pneg %p188
        $region22: #{tpu_custom_call.1} parent=11 // pred_check_branch
          %315 = sbr.rel (%p313) target = $region24
        $region23: #{tpu_custom_call.1} parent=11 // pred_region
          %s317 = ssub.s32 4096, 4096
          %318 = vsyncadd [#allocation12], %s317
          %s319 = sshll.u32 [#allocation11], 4
          %s320 = int_to_ptr.vmem [resolvable:$true] %s319
          %325 = dma.hbm_to_vmem [thread:$0]  %s5, 4096, %s320, [#allocation12], 128, 128, 8
        $region24: #{tpu_custom_call.1} parent=11 // pred_fallthru
          _
      $region12: #{tpu_custom_call.1} parent=5 // pred_fallthru
        _
      %p326 = scmp.lt.s32.totalorder %s29, 4
      // Predicated region
      $region25: #{tpu_custom_call.1} parent=5 // pred_check
        %p327 = pneg %p326
      $region26: #{tpu_custom_call.1} parent=5 // pred_check_branch
        %329 = sbr.rel (%p327) target = $region28
      $region27: #{tpu_custom_call.1} parent=5 // pred_region
        // Predicated region
        $region29: #{tpu_custom_call.1} parent=27 // pred_check
          %p330 = pneg %p63
        $region30: #{tpu_custom_call.1} parent=27 // pred_check_branch
          %332 = sbr.rel (%p330) target = $region32
        $region31: #{tpu_custom_call.1} parent=27 // pred_region
          %s333 = sand.u32 %s53, 1
          %s334 = scalar_lea.sflag [#allocation3], %s333
          %s335 = sand.u32 %s53, 1
          %s336 = smul.addr %s335, 256
          %s337 = scalar_lea.vmem [#allocation2], %s336
          %s338 = smul.u32 32, %s37
          %s340 = ssub.s32 4096, 4096
          %341 = vsyncadd %s334, %s340
          %s342 = smul.addr %s338, 2
          %s343 = smul.addr %s36, 128
          %s344 = sadd.s32 %s342, %s343
          %s345 = smul.addr %s344, 64
          %s346 = scalar_lea.hbm %s0, %s345
          %s347 = sshll.u32 %s337, 4
          %s348 = int_to_ptr.vmem [resolvable:$true] %s347
          %353 = dma.hbm_to_vmem [thread:$0]  %s346, 4096, %s348, %s334, 128, 128, 8
        $region32: #{tpu_custom_call.1} parent=27 // pred_fallthru
          _
        // Predicated region
        $region33: #{tpu_custom_call.1} parent=27 // pred_check
          %p354 = pneg %p91
        $region34: #{tpu_custom_call.1} parent=27 // pred_check_branch
          %356 = sbr.rel (%p354) target = $region36
        $region35: #{tpu_custom_call.1} parent=27 // pred_region
          %s357 = sand.u32 %s29, 1
          %s358 = scalar_lea.sflag [#allocation6], %s357
          %s359 = sand.u32 %s81, 1
          %s360 = smul.addr %s359, 256
          %s361 = scalar_lea.vmem [#allocation5], %s360
          %s362 = smul.u32 32, %s37
          %s364 = ssub.s32 4096, 4096
          %365 = vsyncadd %s358, %s364
          %s366 = smul.addr %s362, 2
          %s367 = smul.addr %s36, 128
          %s368 = sadd.s32 %s366, %s367
          %s369 = smul.addr %s368, 64
          %s370 = scalar_lea.hbm %s1, %s369
          %s371 = sshll.u32 %s361, 4
          %s372 = int_to_ptr.vmem [resolvable:$true] %s371
          %377 = dma.hbm_to_vmem [thread:$0]  %s370, 4096, %s372, %s358, 128, 128, 8
        $region36: #{tpu_custom_call.1} parent=27 // pred_fallthru
          _
        // Predicated region
        $region37: #{tpu_custom_call.1} parent=27 // pred_check
          %p378 = pneg %p119
        $region38: #{tpu_custom_call.1} parent=27 // pred_check_branch
          %380 = sbr.rel (%p378) target = $region40
        $region39: #{tpu_custom_call.1} parent=27 // pred_region
          %s381 = sand.u32 %s29, 1
          %s382 = scalar_lea.sflag [#allocation6], %s381
          %s383 = sand.u32 %s109, 1
          %s384 = smul.addr %s383, 256
          %s385 = scalar_lea.vmem [#allocation7], %s384
          %s386 = smul.u32 32, %s37
          %s388 = ssub.s32 4096, 4096
          %389 = vsyncadd %s382, %s388
          %s390 = smul.addr %s386, 2
          %s391 = smul.addr %s36, 128
          %s392 = sadd.s32 %s390, %s391
          %s393 = smul.addr %s392, 64
          %s394 = scalar_lea.hbm %s2, %s393
          %s395 = sshll.u32 %s385, 4
          %s396 = int_to_ptr.vmem [resolvable:$true] %s395
          %401 = dma.hbm_to_vmem [thread:$0]  %s394, 4096, %s396, %s382, 128, 128, 8
        $region40: #{tpu_custom_call.1} parent=27 // pred_fallthru
          _
      $region28: #{tpu_custom_call.1} parent=5 // pred_fallthru
        _
      %p402 = scmp.le.s32.totalorder 1, %s29
      %p403 = scmp.lt.s32.totalorder %s29, 5
      %p404 = pnand %p402, %p403
      %p405 = pneg %p404
      // Predicated region
      $region41: #{tpu_custom_call.1} parent=5 // pred_check
        _
      $region42: #{tpu_custom_call.1} parent=5 // pred_check_branch
        %407 = sbr.rel (%p404) target = $region44
      $region43: #{tpu_custom_call.1} parent=5 // pred_region
        %s408 = ssub.s32 %s29, 1
        %s409 = sand.u32 %s56, 1
        %s410 = scalar_lea.sflag [#allocation3], %s409
        %s411 = sand.u32 %s56, 1
        %s412 = smul.addr %s411, 256
        %s413 = scalar_lea.vmem [#allocation2], %s412
        // Predicated region
        $region45: #{tpu_custom_call.1} parent=43 // pred_check
          %p414 = pneg %p69
        $region46: #{tpu_custom_call.1} parent=43 // pred_check_branch
          %416 = sbr.rel (%p414) target = $region48
        $region47: #{tpu_custom_call.1} parent=43 // pred_region
          %417 = dma.done %s410, 4096
        $region48: #{tpu_custom_call.1} parent=43 // pred_fallthru
          _
        %s418 = sand.u32 %s34, 1
        %s419 = scalar_lea.sflag [#allocation6], %s418
        %s420 = sand.u32 %s84, 1
        %s421 = smul.addr %s420, 256
        %s422 = scalar_lea.vmem [#allocation5], %s421
        // Predicated region
        $region49: #{tpu_custom_call.1} parent=43 // pred_check
          %p423 = pneg %p97
        $region50: #{tpu_custom_call.1} parent=43 // pred_check_branch
          %425 = sbr.rel (%p423) target = $region52
        $region51: #{tpu_custom_call.1} parent=43 // pred_region
          %426 = dma.done %s419, 4096
        $region52: #{tpu_custom_call.1} parent=43 // pred_fallthru
          _
        %s427 = sand.u32 %s34, 1
        %s428 = scalar_lea.sflag [#allocation6], %s427
        %s429 = sand.u32 %s112, 1
        %s430 = smul.addr %s429, 256
        %s431 = scalar_lea.vmem [#allocation7], %s430
        // Predicated region
        $region53: #{tpu_custom_call.1} parent=43 // pred_check
          %p432 = pneg %p125
        $region54: #{tpu_custom_call.1} parent=43 // pred_check_branch
          %434 = sbr.rel (%p432) target = $region56
        $region55: #{tpu_custom_call.1} parent=43 // pred_region
          %435 = dma.done %s428, 4096
        $region56: #{tpu_custom_call.1} parent=43 // pred_fallthru
          _
        // Predicated region
        $region57: #{tpu_custom_call.1} parent=43 // pred_check
          %p436 = pneg %p146
        $region58: #{tpu_custom_call.1} parent=43 // pred_check_branch
          %438 = sbr.rel (%p436) target = $region60
        $region59: #{tpu_custom_call.1} parent=43 // pred_region
          %439 = dma.done [#allocation9], 4096
        $region60: #{tpu_custom_call.1} parent=43 // pred_fallthru
          _
        // Predicated region
        $region61: #{tpu_custom_call.1} parent=43 // pred_check
          %p440 = pneg %p167
        $region62: #{tpu_custom_call.1} parent=43 // pred_check_branch
          %442 = sbr.rel (%p440) target = $region64
        $region63: #{tpu_custom_call.1} parent=43 // pred_region
          %443 = dma.done [#allocation9], 4096
        $region64: #{tpu_custom_call.1} parent=43 // pred_fallthru
          _
        // Predicated region
        $region65: #{tpu_custom_call.1} parent=43 // pred_check
          %p444 = pneg %p188
        $region66: #{tpu_custom_call.1} parent=43 // pred_check_branch
          %446 = sbr.rel (%p444) target = $region68
        $region67: #{tpu_custom_call.1} parent=43 // pred_region
          %447 = dma.done [#allocation12], 4096
        $region68: #{tpu_custom_call.1} parent=43 // pred_fallthru
          _
        %s448 = sand.u32 %s56, 1
        %s449 = scalar_lea.sflag [#allocation3], %s448
        %s450 = sand.u32 %s56, 1
        %s451 = smul.addr %s450, 256
        %s452 = scalar_lea.vmem [#allocation2], %s451
        %p453 = pneg %p69
        %p454 = pneg %p66
        %s455 = sand.u32 %s34, 1
        %s456 = scalar_lea.sflag [#allocation6], %s455
        %s457 = sand.u32 %s84, 1
        %s458 = smul.addr %s457, 256
        %s459 = scalar_lea.vmem [#allocation5], %s458
        %p460 = pneg %p97
        %p461 = pneg %p94
        %s462 = sand.u32 %s34, 1
        %s463 = scalar_lea.sflag [#allocation6], %s462
        %s464 = sand.u32 %s112, 1
        %s465 = smul.addr %s464, 256
        %s466 = scalar_lea.vmem [#allocation7], %s465
        %p467 = pneg %p125
        %p468 = pneg %p122
        %p469 = pneg %p146
        %p470 = pneg %p143
        %p471 = pneg %p167
        %p472 = pneg %p164
        %p473 = pneg %p188
        %p474 = pneg %p185
        %p475 = pneg %p216
        %p476 = pneg %p213
        %s477 = sand.u32 %s203, 1
        %s478 = scalar_lea.sflag [#allocation4], %s477
        %s479 = sand.u32 %s203, 1
        %s480 = smul.addr %s479, 256
        %s481 = scalar_lea.vmem [#allocation13], %s480
        %p482 = pneg %p244
        %p483 = pneg %p241
        %s484 = sand.u32 %s34, 1
        %s485 = scalar_lea.sflag [#allocation15], %s484
        %s486 = sand.u32 %s231, 1
        %s487 = smul.addr %s486, 256
        %s488 = scalar_lea.vmem [#allocation14], %s487
        %p489 = pneg %p272
        %p490 = pneg %p269
        %s491 = sand.u32 %s34, 1
        %s492 = scalar_lea.sflag [#allocation15], %s491
        %s493 = sand.u32 %s259, 1
        %s494 = smul.addr %s493, 256
        %s495 = scalar_lea.vmem [#allocation16], %s494
        %s496 = smul.u32 32, %s39
        %s497 = smul.u32 32, %s39
        %s498 = smul.u32 32, %s39
        %s499 = smul.u32 32, %s39
        %s500 = smul.u32 32, %s39
        %s501 = smul.u32 32, %s39
        %v502 = vld [vmem:[%s413] sm:$0xff]
        %v503 = vld [vmem:[%s413 + $0x8] sm:$0xff]
        %v504 = vld [vmem:[%s413 + $0x10] sm:$0xff]
        %v505 = vld [vmem:[%s413 + $0x18] sm:$0xff]
        %v506 = vld [vmem:[%s413 + $0x20] sm:$0xff]
        %v507 = vld [vmem:[%s413 + $0x28] sm:$0xff]
        %v508 = vld [vmem:[%s413 + $0x30] sm:$0xff]
        %v509 = vld [vmem:[%s413 + $0x38] sm:$0xff]
        %v510 = vld [vmem:[%s413 + $0x40] sm:$0xff]
        %v511 = vld [vmem:[%s413 + $0x48] sm:$0xff]
        %v512 = vld [vmem:[%s413 + $0x50] sm:$0xff]
        %v513 = vld [vmem:[%s413 + $0x58] sm:$0xff]
        %v514 = vld [vmem:[%s413 + $0x60] sm:$0xff]
        %v515 = vld [vmem:[%s413 + $0x68] sm:$0xff]
        %v516 = vld [vmem:[%s413 + $0x70] sm:$0xff]
        %v517 = vld [vmem:[%s413 + $0x78] sm:$0xff]
        %v518 = vld [vmem:[%s413 + $0x80] sm:$0xff]
        %v519 = vld [vmem:[%s413 + $0x88] sm:$0xff]
        %v520 = vld [vmem:[%s413 + $0x90] sm:$0xff]
        %v521 = vld [vmem:[%s413 + $0x98] sm:$0xff]
        %v522 = vld [vmem:[%s413 + $0xa0] sm:$0xff]
        %v523 = vld [vmem:[%s413 + $0xa8] sm:$0xff]
        %v524 = vld [vmem:[%s413 + $0xb0] sm:$0xff]
        %v525 = vld [vmem:[%s413 + $0xb8] sm:$0xff]
        %v526 = vld [vmem:[%s413 + $0xc0] sm:$0xff]
        %v527 = vld [vmem:[%s413 + $0xc8] sm:$0xff]
        %v528 = vld [vmem:[%s413 + $0xd0] sm:$0xff]
        %v529 = vld [vmem:[%s413 + $0xd8] sm:$0xff]
        %v530 = vld [vmem:[%s413 + $0xe0] sm:$0xff]
        %v531 = vld [vmem:[%s413 + $0xe8] sm:$0xff]
        %v532 = vld [vmem:[%s413 + $0xf0] sm:$0xff]
        %v533 = vld [vmem:[%s413 + $0xf8] sm:$0xff]
        %v534 = vld [vmem:[#allocation8] sm:$0xff]
        %v535 = vld [vmem:[#allocation8 + $0x8] sm:$0xff]
        %v536 = vld [vmem:[#allocation8 + $0x10] sm:$0xff]
        %v537 = vld [vmem:[#allocation8 + $0x18] sm:$0xff]
        %v538 = vld [vmem:[#allocation8 + $0x20] sm:$0xff]
        %v539 = vld [vmem:[#allocation8 + $0x28] sm:$0xff]
        %v540 = vld [vmem:[#allocation8 + $0x30] sm:$0xff]
        %v541 = vld [vmem:[#allocation8 + $0x38] sm:$0xff]
        %v542 = vld [vmem:[#allocation8 + $0x40] sm:$0xff]
        %v543 = vld [vmem:[#allocation8 + $0x48] sm:$0xff]
        %v544 = vld [vmem:[#allocation8 + $0x50] sm:$0xff]
        %v545 = vld [vmem:[#allocation8 + $0x58] sm:$0xff]
        %v546 = vld [vmem:[#allocation8 + $0x60] sm:$0xff]
        %v547 = vld [vmem:[#allocation8 + $0x68] sm:$0xff]
        %v548 = vld [vmem:[#allocation8 + $0x70] sm:$0xff]
        %v549 = vld [vmem:[#allocation8 + $0x78] sm:$0xff]
        %v550 = vld [vmem:[#allocation8 + $0x80] sm:$0xff]
        %v551 = vld [vmem:[#allocation8 + $0x88] sm:$0xff]
        %v552 = vld [vmem:[#allocation8 + $0x90] sm:$0xff]
        %v553 = vld [vmem:[#allocation8 + $0x98] sm:$0xff]
        %v554 = vld [vmem:[#allocation8 + $0xa0] sm:$0xff]
        %v555 = vld [vmem:[#allocation8 + $0xa8] sm:$0xff]
        %v556 = vld [vmem:[#allocation8 + $0xb0] sm:$0xff]
        %v557 = vld [vmem:[#allocation8 + $0xb8] sm:$0xff]
        %v558 = vld [vmem:[#allocation8 + $0xc0] sm:$0xff]
        %v559 = vld [vmem:[#allocation8 + $0xc8] sm:$0xff]
        %v560 = vld [vmem:[#allocation8 + $0xd0] sm:$0xff]
        %v561 = vld [vmem:[#allocation8 + $0xd8] sm:$0xff]
        %v562 = vld [vmem:[#allocation8 + $0xe0] sm:$0xff]
        %v563 = vld [vmem:[#allocation8 + $0xe8] sm:$0xff]
        %v564 = vld [vmem:[#allocation8 + $0xf0] sm:$0xff]
        %v565 = vld [vmem:[#allocation8 + $0xf8] sm:$0xff]
        %v598 = vunpack.c.l.b16 %v502
        %v599 = vunpack.c.h.b16 %v502
        %v600 = vunpack.c.l.b16 %v503
        %v601 = vunpack.c.h.b16 %v503
        %v602 = vunpack.c.l.b16 %v504
        %v603 = vunpack.c.h.b16 %v504
        %v604 = vunpack.c.l.b16 %v505
        %v605 = vunpack.c.h.b16 %v505
        %v606 = vunpack.c.l.b16 %v506
        %v607 = vunpack.c.h.b16 %v506
        %v608 = vunpack.c.l.b16 %v507
        %v609 = vunpack.c.h.b16 %v507
        %v610 = vunpack.c.l.b16 %v508
        %v611 = vunpack.c.h.b16 %v508
        %v612 = vunpack.c.l.b16 %v509
        %v613 = vunpack.c.h.b16 %v509
        %v614 = vunpack.c.l.b16 %v510
        %v615 = vunpack.c.h.b16 %v510
        %v616 = vunpack.c.l.b16 %v511
        %v617 = vunpack.c.h.b16 %v511
        %v618 = vunpack.c.l.b16 %v512
        %v619 = vunpack.c.h.b16 %v512
        %v620 = vunpack.c.l.b16 %v513
        %v621 = vunpack.c.h.b16 %v513
        %v622 = vunpack.c.l.b16 %v514
        %v623 = vunpack.c.h.b16 %v514
        %v624 = vunpack.c.l.b16 %v515
        %v625 = vunpack.c.h.b16 %v515
        %v626 = vunpack.c.l.b16 %v516
        %v627 = vunpack.c.h.b16 %v516
        %v628 = vunpack.c.l.b16 %v517
        %v629 = vunpack.c.h.b16 %v517
        %v630 = vunpack.c.l.b16 %v518
        %v631 = vunpack.c.h.b16 %v518
        %v632 = vunpack.c.l.b16 %v519
        %v633 = vunpack.c.h.b16 %v519
        %v634 = vunpack.c.l.b16 %v520
        %v635 = vunpack.c.h.b16 %v520
        %v636 = vunpack.c.l.b16 %v521
        %v637 = vunpack.c.h.b16 %v521
        %v638 = vunpack.c.l.b16 %v522
        %v639 = vunpack.c.h.b16 %v522
        %v640 = vunpack.c.l.b16 %v523
        %v641 = vunpack.c.h.b16 %v523
        %v642 = vunpack.c.l.b16 %v524
        %v643 = vunpack.c.h.b16 %v524
        %v644 = vunpack.c.l.b16 %v525
        %v645 = vunpack.c.h.b16 %v525
        %v646 = vunpack.c.l.b16 %v526
        %v647 = vunpack.c.h.b16 %v526
        %v648 = vunpack.c.l.b16 %v527
        %v649 = vunpack.c.h.b16 %v527
        %v650 = vunpack.c.l.b16 %v528
        %v651 = vunpack.c.h.b16 %v528
        %v652 = vunpack.c.l.b16 %v529
        %v653 = vunpack.c.h.b16 %v529
        %v654 = vunpack.c.l.b16 %v530
        %v655 = vunpack.c.h.b16 %v530
        %v656 = vunpack.c.l.b16 %v531
        %v657 = vunpack.c.h.b16 %v531
        %v658 = vunpack.c.l.b16 %v532
        %v659 = vunpack.c.h.b16 %v532
        %v660 = vunpack.c.l.b16 %v533
        %v661 = vunpack.c.h.b16 %v533
        %v662 = vpack.c.b16 %v600, %v598
        %v663 = vpack.c.b16 %v601, %v599
        %v664 = vpack.c.b16 %v604, %v602
        %v665 = vpack.c.b16 %v605, %v603
        %v666 = vpack.c.b16 %v608, %v606
        %v667 = vpack.c.b16 %v609, %v607
        %v668 = vpack.c.b16 %v612, %v610
        %v669 = vpack.c.b16 %v613, %v611
        %v670 = vpack.c.b16 %v616, %v614
        %v671 = vpack.c.b16 %v617, %v615
        %v672 = vpack.c.b16 %v620, %v618
        %v673 = vpack.c.b16 %v621, %v619
        %v674 = vpack.c.b16 %v624, %v622
        %v675 = vpack.c.b16 %v625, %v623
        %v676 = vpack.c.b16 %v628, %v626
        %v677 = vpack.c.b16 %v629, %v627
        %v678 = vpack.c.b16 %v632, %v630
        %v679 = vpack.c.b16 %v633, %v631
        %v680 = vpack.c.b16 %v636, %v634
        %v681 = vpack.c.b16 %v637, %v635
        %v682 = vpack.c.b16 %v640, %v638
        %v683 = vpack.c.b16 %v641, %v639
        %v684 = vpack.c.b16 %v644, %v642
        %v685 = vpack.c.b16 %v645, %v643
        %v686 = vpack.c.b16 %v648, %v646
        %v687 = vpack.c.b16 %v649, %v647
        %v688 = vpack.c.b16 %v652, %v650
        %v689 = vpack.c.b16 %v653, %v651
        %v690 = vpack.c.b16 %v656, %v654
        %v691 = vpack.c.b16 %v657, %v655
        %v692 = vpack.c.b16 %v660, %v658
        %v693 = vpack.c.b16 %v661, %v659
        %v758 = vunpack.c.l.b16 %v534
        %v759 = vunpack.c.h.b16 %v534
        %v760 = vunpack.c.l.b16 %v535
        %v761 = vunpack.c.h.b16 %v535
        %v762 = vunpack.c.l.b16 %v536
        %v763 = vunpack.c.h.b16 %v536
        %v764 = vunpack.c.l.b16 %v537
        %v765 = vunpack.c.h.b16 %v537
        %v766 = vunpack.c.l.b16 %v538
        %v767 = vunpack.c.h.b16 %v538
        %v768 = vunpack.c.l.b16 %v539
        %v769 = vunpack.c.h.b16 %v539
        %v770 = vunpack.c.l.b16 %v540
        %v771 = vunpack.c.h.b16 %v540
        %v772 = vunpack.c.l.b16 %v541
        %v773 = vunpack.c.h.b16 %v541
        %v774 = vunpack.c.l.b16 %v542
        %v775 = vunpack.c.h.b16 %v542
        %v776 = vunpack.c.l.b16 %v543
        %v777 = vunpack.c.h.b16 %v543
        %v778 = vunpack.c.l.b16 %v544
        %v779 = vunpack.c.h.b16 %v544
        %v780 = vunpack.c.l.b16 %v545
        %v781 = vunpack.c.h.b16 %v545
        %v782 = vunpack.c.l.b16 %v546
        %v783 = vunpack.c.h.b16 %v546
        %v784 = vunpack.c.l.b16 %v547
        %v785 = vunpack.c.h.b16 %v547
        %v786 = vunpack.c.l.b16 %v548
        %v787 = vunpack.c.h.b16 %v548
        %v788 = vunpack.c.l.b16 %v549
        %v789 = vunpack.c.h.b16 %v549
        %v790 = vunpack.c.l.b16 %v550
        %v791 = vunpack.c.h.b16 %v550
        %v792 = vunpack.c.l.b16 %v551
        %v793 = vunpack.c.h.b16 %v551
        %v794 = vunpack.c.l.b16 %v552
        %v795 = vunpack.c.h.b16 %v552
        %v796 = vunpack.c.l.b16 %v553
        %v797 = vunpack.c.h.b16 %v553
        %v798 = vunpack.c.l.b16 %v554
        %v799 = vunpack.c.h.b16 %v554
        %v800 = vunpack.c.l.b16 %v555
        %v801 = vunpack.c.h.b16 %v555
        %v802 = vunpack.c.l.b16 %v556
        %v803 = vunpack.c.h.b16 %v556
        %v804 = vunpack.c.l.b16 %v557
        %v805 = vunpack.c.h.b16 %v557
        %v806 = vunpack.c.l.b16 %v558
        %v807 = vunpack.c.h.b16 %v558
        %v808 = vunpack.c.l.b16 %v559
        %v809 = vunpack.c.h.b16 %v559
        %v810 = vunpack.c.l.b16 %v560
        %v811 = vunpack.c.h.b16 %v560
        %v812 = vunpack.c.l.b16 %v561
        %v813 = vunpack.c.h.b16 %v561
        %v814 = vunpack.c.l.b16 %v562
        %v815 = vunpack.c.h.b16 %v562
        %v816 = vunpack.c.l.b16 %v563
        %v817 = vunpack.c.h.b16 %v563
        %v818 = vunpack.c.l.b16 %v564
        %v819 = vunpack.c.h.b16 %v564
        %v820 = vunpack.c.l.b16 %v565
        %v821 = vunpack.c.h.b16 %v565
        %v822 = vpack.c.b16 %v760, %v758
        %v823 = vpack.c.b16 %v761, %v759
        %v824 = vpack.c.b16 %v764, %v762
        %v825 = vpack.c.b16 %v765, %v763
        %v826 = vpack.c.b16 %v768, %v766
        %v827 = vpack.c.b16 %v769, %v767
        %v828 = vpack.c.b16 %v772, %v770
        %v829 = vpack.c.b16 %v773, %v771
        %v830 = vpack.c.b16 %v776, %v774
        %v831 = vpack.c.b16 %v777, %v775
        %v832 = vpack.c.b16 %v780, %v778
        %v833 = vpack.c.b16 %v781, %v779
        %v834 = vpack.c.b16 %v784, %v782
        %v835 = vpack.c.b16 %v785, %v783
        %v836 = vpack.c.b16 %v788, %v786
        %v837 = vpack.c.b16 %v789, %v787
        %v838 = vpack.c.b16 %v792, %v790
        %v839 = vpack.c.b16 %v793, %v791
        %v840 = vpack.c.b16 %v796, %v794
        %v841 = vpack.c.b16 %v797, %v795
        %v842 = vpack.c.b16 %v800, %v798
        %v843 = vpack.c.b16 %v801, %v799
        %v844 = vpack.c.b16 %v804, %v802
        %v845 = vpack.c.b16 %v805, %v803
        %v846 = vpack.c.b16 %v808, %v806
        %v847 = vpack.c.b16 %v809, %v807
        %v848 = vpack.c.b16 %v812, %v810
        %v849 = vpack.c.b16 %v813, %v811
        %v850 = vpack.c.b16 %v816, %v814
        %v851 = vpack.c.b16 %v817, %v815
        %v852 = vpack.c.b16 %v820, %v818
        %v853 = vpack.c.b16 %v821, %v819
        %886 = vmatprep.subr.bf16.mxu0 %v823
        %887 = vmatpush1.bf16.msra.mxu0 %v822
        %888 = vmatprep.subr.bf16.mxu0 %v825
        %889 = vmatpush1.bf16.msra.mxu0 %v824
        %890 = vmatprep.subr.bf16.mxu0 %v827
        %891 = vmatpush1.bf16.msra.mxu0 %v826
        %892 = vmatprep.subr.bf16.mxu0 %v829
        %893 = vmatpush1.bf16.msra.mxu0 %v828
        %894 = vmatprep.subr.bf16.mxu0 %v831
        %895 = vmatpush1.bf16.msra.mxu0 %v830
        %896 = vmatprep.subr.bf16.mxu0 %v833
        %897 = vmatpush1.bf16.msra.mxu0 %v832
        %898 = vmatprep.subr.bf16.mxu0 %v835
        %899 = vmatpush1.bf16.msra.mxu0 %v834
        %900 = vmatprep.subr.bf16.mxu0 %v837
        %901 = vmatpush1.bf16.msra.mxu0 %v836
        %902 = vmatprep.subr.bf16.mxu0 %v839
        %903 = vmatpush1.bf16.msra.mxu0 %v838
        %904 = vmatprep.subr.bf16.mxu0 %v841
        %905 = vmatpush1.bf16.msra.mxu0 %v840
        %906 = vmatprep.subr.bf16.mxu0 %v843
        %907 = vmatpush1.bf16.msra.mxu0 %v842
        %908 = vmatprep.subr.bf16.mxu0 %v845
        %909 = vmatpush1.bf16.msra.mxu0 %v844
        %910 = vmatprep.subr.bf16.mxu0 %v847
        %911 = vmatpush1.bf16.msra.mxu0 %v846
        %912 = vmatprep.subr.bf16.mxu0 %v849
        %913 = vmatpush1.bf16.msra.mxu0 %v848
        %914 = vmatprep.subr.bf16.mxu0 %v851
        %915 = vmatpush1.bf16.msra.mxu0 %v850
        %916 = vmatprep.subr.bf16.mxu0 %v853
        %917 = vmatpush1.bf16.msra.mxu0 %v852
        %918 = vmatprep.mubr.bf16.mxu0 %v663
        %919 = vmatmul.mubr.bf16.gmra.mrb[0].mxu0 %v662
        %v920 = vpop.f32.mrb[0].mxu0
        %v921 = vadd.f32 0.0, %v920
        %v922 = vpop.f32.mrb[0].mxu0
        %v923 = vadd.f32 0.0, %v922
        %v924 = vpop.f32.mrb[0].mxu0
        %v925 = vadd.f32 0.0, %v924
        %v926 = vpop.f32.mrb[0].mxu0
        %v927 = vadd.f32 0.0, %v926
        %928 = vmatprep.mubr.bf16.mxu0 %v665
        %929 = vmatmul.mubr.bf16.gmra.mrb[0].mxu0 %v664
        %v930 = vpop.f32.mrb[0].mxu0
        %v931 = vadd.f32 0.0, %v930
        %v932 = vpop.f32.mrb[0].mxu0
        %v933 = vadd.f32 0.0, %v932
        %v934 = vpop.f32.mrb[0].mxu0
        %v935 = vadd.f32 0.0, %v934
        %v936 = vpop.f32.mrb[0].mxu0
        %v937 = vadd.f32 0.0, %v936
        %938 = vmatprep.mubr.bf16.mxu0 %v667
        %939 = vmatmul.mubr.bf16.gmra.mrb[0].mxu0 %v666
        %v940 = vpop.f32.mrb[0].mxu0
        %v941 = vadd.f32 0.0, %v940
        %v942 = vpop.f32.mrb[0].mxu0
        %v943 = vadd.f32 0.0, %v942
        %v944 = vpop.f32.mrb[0].mxu0
        %v945 = vadd.f32 0.0, %v944
        %v946 = vpop.f32.mrb[0].mxu0
        %v947 = vadd.f32 0.0, %v946
        %948 = vmatprep.mubr.bf16.mxu0 %v669
        %949 = vmatmul.mubr.bf16.gmra.mrb[0].mxu0 %v668
        %v950 = vpop.f32.mrb[0].mxu0
        %v951 = vadd.f32 0.0, %v950
        %v952 = vpop.f32.mrb[0].mxu0
        %v953 = vadd.f32 0.0, %v952
        %v954 = vpop.f32.mrb[0].mxu0
        %v955 = vadd.f32 0.0, %v954
        %v956 = vpop.f32.mrb[0].mxu0
        %v957 = vadd.f32 0.0, %v956
        %958 = vmatprep.mubr.bf16.mxu0 %v671
        %959 = vmatmul.mubr.bf16.gmra.mrb[0].mxu0 %v670
        %v960 = vpop.f32.mrb[0].mxu0
        %v961 = vadd.f32 0.0, %v960
        %v962 = vpop.f32.mrb[0].mxu0
        %v963 = vadd.f32 0.0, %v962
        %v964 = vpop.f32.mrb[0].mxu0
        %v965 = vadd.f32 0.0, %v964
        %v966 = vpop.f32.mrb[0].mxu0
        %v967 = vadd.f32 0.0, %v966
        %968 = vmatprep.mubr.bf16.mxu0 %v673
        %969 = vmatmul.mubr.bf16.gmra.mrb[0].mxu0 %v672
        %v970 = vpop.f32.mrb[0].mxu0
        %v971 = vadd.f32 0.0, %v970
        %v972 = vpop.f32.mrb[0].mxu0
        %v973 = vadd.f32 0.0, %v972
        %v974 = vpop.f32.mrb[0].mxu0
        %v975 = vadd.f32 0.0, %v974
        %v976 = vpop.f32.mrb[0].mxu0
        %v977 = vadd.f32 0.0, %v976
        %978 = vmatprep.mubr.bf16.mxu0 %v675
        %979 = vmatmul.mubr.bf16.gmra.mrb[0].mxu0 %v674
        %v980 = vpop.f32.mrb[0].mxu0
        %v981 = vadd.f32 0.0, %v980
        %v982 = vpop.f32.mrb[0].mxu0
        %v983 = vadd.f32 0.0, %v982
        %v984 = vpop.f32.mrb[0].mxu0
        %v985 = vadd.f32 0.0, %v984
        %v986 = vpop.f32.mrb[0].mxu0
        %v987 = vadd.f32 0.0, %v986
        %988 = vmatprep.mubr.bf16.mxu0 %v677
        %989 = vmatmul.mubr.bf16.gmra.mrb[0].mxu0 %v676
        %v990 = vpop.f32.mrb[0].mxu0
        %v991 = vadd.f32 0.0, %v990
        %v992 = vpop.f32.mrb[0].mxu0
        %v993 = vadd.f32 0.0, %v992
        %v994 = vpop.f32.mrb[0].mxu0
        %v995 = vadd.f32 0.0, %v994
        %v996 = vpop.f32.mrb[0].mxu0
        %v997 = vadd.f32 0.0, %v996
        %998 = vmatprep.mubr.bf16.mxu0 %v679
        %999 = vmatmul.mubr.bf16.gmra.mrb[0].mxu0 %v678
        %v1000 = vpop.f32.mrb[0].mxu0
        %v1001 = vadd.f32 0.0, %v1000
        %v1002 = vpop.f32.mrb[0].mxu0
        %v1003 = vadd.f32 0.0, %v1002
        %v1004 = vpop.f32.mrb[0].mxu0
        %v1005 = vadd.f32 0.0, %v1004
        %v1006 = vpop.f32.mrb[0].mxu0
        %v1007 = vadd.f32 0.0, %v1006
        %1008 = vmatprep.mubr.bf16.mxu0 %v681
        %1009 = vmatmul.mubr.bf16.gmra.mrb[0].mxu0 %v680
        %v1010 = vpop.f32.mrb[0].mxu0
        %v1011 = vadd.f32 0.0, %v1010
        %v1012 = vpop.f32.mrb[0].mxu0
        %v1013 = vadd.f32 0.0, %v1012
        %v1014 = vpop.f32.mrb[0].mxu0
        %v1015 = vadd.f32 0.0, %v1014
        %v1016 = vpop.f32.mrb[0].mxu0
        %v1017 = vadd.f32 0.0, %v1016
        %1018 = vmatprep.mubr.bf16.mxu0 %v683
        %1019 = vmatmul.mubr.bf16.gmra.mrb[0].mxu0 %v682
        %v1020 = vpop.f32.mrb[0].mxu0
        %v1021 = vadd.f32 0.0, %v1020
        %v1022 = vpop.f32.mrb[0].mxu0
        %v1023 = vadd.f32 0.0, %v1022
        %v1024 = vpop.f32.mrb[0].mxu0
        %v1025 = vadd.f32 0.0, %v1024
        %v1026 = vpop.f32.mrb[0].mxu0
        %v1027 = vadd.f32 0.0, %v1026
        %1028 = vmatprep.mubr.bf16.mxu0 %v685
        %1029 = vmatmul.mubr.bf16.gmra.mrb[0].mxu0 %v684
        %v1030 = vpop.f32.mrb[0].mxu0
        %v1031 = vadd.f32 0.0, %v1030
        %v1032 = vpop.f32.mrb[0].mxu0
        %v1033 = vadd.f32 0.0, %v1032
        %v1034 = vpop.f32.mrb[0].mxu0
        %v1035 = vadd.f32 0.0, %v1034
        %v1036 = vpop.f32.mrb[0].mxu0
        %v1037 = vadd.f32 0.0, %v1036
        %1038 = vmatprep.mubr.bf16.mxu0 %v687
        %1039 = vmatmul.mubr.bf16.gmra.mrb[0].mxu0 %v686
        %v1040 = vpop.f32.mrb[0].mxu0
        %v1041 = vadd.f32 0.0, %v1040
        %v1042 = vpop.f32.mrb[0].mxu0
        %v1043 = vadd.f32 0.0, %v1042
        %v1044 = vpop.f32.mrb[0].mxu0
        %v1045 = vadd.f32 0.0, %v1044
        %v1046 = vpop.f32.mrb[0].mxu0
        %v1047 = vadd.f32 0.0, %v1046
        %1048 = vmatprep.mubr.bf16.mxu0 %v689
        %1049 = vmatmul.mubr.bf16.gmra.mrb[0].mxu0 %v688
        %v1050 = vpop.f32.mrb[0].mxu0
        %v1051 = vadd.f32 0.0, %v1050
        %v1052 = vpop.f32.mrb[0].mxu0
        %v1053 = vadd.f32 0.0, %v1052
        %v1054 = vpop.f32.mrb[0].mxu0
        %v1055 = vadd.f32 0.0, %v1054
        %v1056 = vpop.f32.mrb[0].mxu0
        %v1057 = vadd.f32 0.0, %v1056
        %1058 = vmatprep.mubr.bf16.mxu0 %v691
        %1059 = vmatmul.mubr.bf16.gmra.mrb[0].mxu0 %v690
        %v1060 = vpop.f32.mrb[0].mxu0
        %v1061 = vadd.f32 0.0, %v1060
        %v1062 = vpop.f32.mrb[0].mxu0
        %v1063 = vadd.f32 0.0, %v1062
        %v1064 = vpop.f32.mrb[0].mxu0
        %v1065 = vadd.f32 0.0, %v1064
        %v1066 = vpop.f32.mrb[0].mxu0
        %v1067 = vadd.f32 0.0, %v1066
        %1068 = vmatprep.mubr.bf16.mxu0 %v693
        %1069 = vmatmul.mubr.bf16.gmra.mrb[0].mxu0 %v692
        %v1070 = vpop.f32.mrb[0].mxu0
        %v1071 = vadd.f32 0.0, %v1070
        %v1072 = vpop.f32.mrb[0].mxu0
        %v1073 = vadd.f32 0.0, %v1072
        %v1074 = vpop.f32.mrb[0].mxu0
        %v1075 = vadd.f32 0.0, %v1074
        %v1076 = vpop.f32.mrb[0].mxu0
        %v1077 = vadd.f32 0.0, %v1076
        %1078 = vdwg.mxu0
        %v1079 = vpack.c.bf16 %v925, %v921
        %v1080 = vpack.c.bf16 %v927, %v923
        %v1081 = vpack.c.bf16 %v935, %v931
        %v1082 = vpack.c.bf16 %v937, %v933
        %v1083 = vpack.c.bf16 %v945, %v941
        %v1084 = vpack.c.bf16 %v947, %v943
        %v1085 = vpack.c.bf16 %v955, %v951
        %v1086 = vpack.c.bf16 %v957, %v953
        %v1087 = vpack.c.bf16 %v965, %v961
        %v1088 = vpack.c.bf16 %v967, %v963
        %v1089 = vpack.c.bf16 %v975, %v971
        %v1090 = vpack.c.bf16 %v977, %v973
        %v1091 = vpack.c.bf16 %v985, %v981
        %v1092 = vpack.c.bf16 %v987, %v983
        %v1093 = vpack.c.bf16 %v995, %v991
        %v1094 = vpack.c.bf16 %v997, %v993
        %v1095 = vpack.c.bf16 %v1005, %v1001
        %v1096 = vpack.c.bf16 %v1007, %v1003
        %v1097 = vpack.c.bf16 %v1015, %v1011
        %v1098 = vpack.c.bf16 %v1017, %v1013
        %v1099 = vpack.c.bf16 %v1025, %v1021
        %v1100 = vpack.c.bf16 %v1027, %v1023
        %v1101 = vpack.c.bf16 %v1035, %v1031
        %v1102 = vpack.c.bf16 %v1037, %v1033
        %v1103 = vpack.c.bf16 %v1045, %v1041
        %v1104 = vpack.c.bf16 %v1047, %v1043
        %v1105 = vpack.c.bf16 %v1055, %v1051
        %v1106 = vpack.c.bf16 %v1057, %v1053
        %v1107 = vpack.c.bf16 %v1065, %v1061
        %v1108 = vpack.c.bf16 %v1067, %v1063
        %v1109 = vpack.c.bf16 %v1075, %v1071
        %v1110 = vpack.c.bf16 %v1077, %v1073
        %v1127 = vunpack.c.l.b16 %v1079
        %v1128 = vunpack.c.h.b16 %v1079
        %v1129 = vunpack.c.l.b16 %v1081
        %v1130 = vunpack.c.h.b16 %v1081
        %v1131 = vunpack.c.l.b16 %v1083
        %v1132 = vunpack.c.h.b16 %v1083
        %v1133 = vunpack.c.l.b16 %v1085
        %v1134 = vunpack.c.h.b16 %v1085
        %v1135 = vunpack.c.l.b16 %v1087
        %v1136 = vunpack.c.h.b16 %v1087
        %v1137 = vunpack.c.l.b16 %v1089
        %v1138 = vunpack.c.h.b16 %v1089
        %v1139 = vunpack.c.l.b16 %v1091
        %v1140 = vunpack.c.h.b16 %v1091
        %v1141 = vunpack.c.l.b16 %v1093
        %v1142 = vunpack.c.h.b16 %v1093
        %v1143 = vunpack.c.l.b16 %v1095
        %v1144 = vunpack.c.h.b16 %v1095
        %v1145 = vunpack.c.l.b16 %v1097
        %v1146 = vunpack.c.h.b16 %v1097
        %v1147 = vunpack.c.l.b16 %v1099
        %v1148 = vunpack.c.h.b16 %v1099
        %v1149 = vunpack.c.l.b16 %v1101
        %v1150 = vunpack.c.h.b16 %v1101
        %v1151 = vunpack.c.l.b16 %v1103
        %v1152 = vunpack.c.h.b16 %v1103
        %v1153 = vunpack.c.l.b16 %v1105
        %v1154 = vunpack.c.h.b16 %v1105
        %v1155 = vunpack.c.l.b16 %v1107
        %v1156 = vunpack.c.h.b16 %v1107
        %v1157 = vunpack.c.l.b16 %v1109
        %v1158 = vunpack.c.h.b16 %v1109
        %v1159 = vpack.c.b16 %v1127, %v1127
        %v1160 = vpack.c.b16 %v1128, %v1128
        %v1161 = vpack.c.b16 %v1129, %v1129
        %v1162 = vpack.c.b16 %v1130, %v1130
        %v1163 = vpack.c.b16 %v1131, %v1131
        %v1164 = vpack.c.b16 %v1132, %v1132
        %v1165 = vpack.c.b16 %v1133, %v1133
        %v1166 = vpack.c.b16 %v1134, %v1134
        %v1167 = vpack.c.b16 %v1135, %v1135
        %v1168 = vpack.c.b16 %v1136, %v1136
        %v1169 = vpack.c.b16 %v1137, %v1137
        %v1170 = vpack.c.b16 %v1138, %v1138
        %v1171 = vpack.c.b16 %v1139, %v1139
        %v1172 = vpack.c.b16 %v1140, %v1140
        %v1173 = vpack.c.b16 %v1141, %v1141
        %v1174 = vpack.c.b16 %v1142, %v1142
        %v1175 = vpack.c.b16 %v1143, %v1143
        %v1176 = vpack.c.b16 %v1144, %v1144
        %v1177 = vpack.c.b16 %v1145, %v1145
        %v1178 = vpack.c.b16 %v1146, %v1146
        %v1179 = vpack.c.b16 %v1147, %v1147
        %v1180 = vpack.c.b16 %v1148, %v1148
        %v1181 = vpack.c.b16 %v1149, %v1149
        %v1182 = vpack.c.b16 %v1150, %v1150
        %v1183 = vpack.c.b16 %v1151, %v1151
        %v1184 = vpack.c.b16 %v1152, %v1152
        %v1185 = vpack.c.b16 %v1153, %v1153
        %v1186 = vpack.c.b16 %v1154, %v1154
        %v1187 = vpack.c.b16 %v1155, %v1155
        %v1188 = vpack.c.b16 %v1156, %v1156
        %v1189 = vpack.c.b16 %v1157, %v1157
        %v1190 = vpack.c.b16 %v1158, %v1158
        %1223 = vst [vmem:[%s481] sm:$0xf] %v1159
        %1224 = vst [vmem:[%s481 + $0x4] sm:$0xf] %v1160
        %1225 = vst [vmem:[%s481 + $0x8] sm:$0xf] %v1161
        %1226 = vst [vmem:[%s481 + $0xc] sm:$0xf] %v1162
        %1227 = vst [vmem:[%s481 + $0x10] sm:$0xf] %v1163
        %1228 = vst [vmem:[%s481 + $0x14] sm:$0xf] %v1164
        %1229 = vst [vmem:[%s481 + $0x18] sm:$0xf] %v1165
        %1230 = vst [vmem:[%s481 + $0x1c] sm:$0xf] %v1166
        %1231 = vst [vmem:[%s481 + $0x20] sm:$0xf] %v1167
        %1232 = vst [vmem:[%s481 + $0x24] sm:$0xf] %v1168
        %1233 = vst [vmem:[%s481 + $0x28] sm:$0xf] %v1169
        %1234 = vst [vmem:[%s481 + $0x2c] sm:$0xf] %v1170
        %1235 = vst [vmem:[%s481 + $0x30] sm:$0xf] %v1171
        %1236 = vst [vmem:[%s481 + $0x34] sm:$0xf] %v1172
        %1237 = vst [vmem:[%s481 + $0x38] sm:$0xf] %v1173
        %1238 = vst [vmem:[%s481 + $0x3c] sm:$0xf] %v1174
        %1239 = vst [vmem:[%s481 + $0x40] sm:$0xf] %v1175
        %1240 = vst [vmem:[%s481 + $0x44] sm:$0xf] %v1176
        %1241 = vst [vmem:[%s481 + $0x48] sm:$0xf] %v1177
        %1242 = vst [vmem:[%s481 + $0x4c] sm:$0xf] %v1178
        %1243 = vst [vmem:[%s481 + $0x50] sm:$0xf] %v1179
        %1244 = vst [vmem:[%s481 + $0x54] sm:$0xf] %v1180
        %1245 = vst [vmem:[%s481 + $0x58] sm:$0xf] %v1181
        %1246 = vst [vmem:[%s481 + $0x5c] sm:$0xf] %v1182
        %1247 = vst [vmem:[%s481 + $0x60] sm:$0xf] %v1183
        %1248 = vst [vmem:[%s481 + $0x64] sm:$0xf] %v1184
        %1249 = vst [vmem:[%s481 + $0x68] sm:$0xf] %v1185
        %1250 = vst [vmem:[%s481 + $0x6c] sm:$0xf] %v1186
        %1251 = vst [vmem:[%s481 + $0x70] sm:$0xf] %v1187
        %1252 = vst [vmem:[%s481 + $0x74] sm:$0xf] %v1188
        %1253 = vst [vmem:[%s481 + $0x78] sm:$0xf] %v1189
        %1254 = vst [vmem:[%s481 + $0x7c] sm:$0xf] %v1190
        %v1271 = vunpack.c.l.b16 %v1080
        %v1272 = vunpack.c.h.b16 %v1080
        %v1273 = vunpack.c.l.b16 %v1082
        %v1274 = vunpack.c.h.b16 %v1082
        %v1275 = vunpack.c.l.b16 %v1084
        %v1276 = vunpack.c.h.b16 %v1084
        %v1277 = vunpack.c.l.b16 %v1086
        %v1278 = vunpack.c.h.b16 %v1086
        %v1279 = vunpack.c.l.b16 %v1088
        %v1280 = vunpack.c.h.b16 %v1088
        %v1281 = vunpack.c.l.b16 %v1090
        %v1282 = vunpack.c.h.b16 %v1090
        %v1283 = vunpack.c.l.b16 %v1092
        %v1284 = vunpack.c.h.b16 %v1092
        %v1285 = vunpack.c.l.b16 %v1094
        %v1286 = vunpack.c.h.b16 %v1094
        %v1287 = vunpack.c.l.b16 %v1096
        %v1288 = vunpack.c.h.b16 %v1096
        %v1289 = vunpack.c.l.b16 %v1098
        %v1290 = vunpack.c.h.b16 %v1098
        %v1291 = vunpack.c.l.b16 %v1100
        %v1292 = vunpack.c.h.b16 %v1100
        %v1293 = vunpack.c.l.b16 %v1102
        %v1294 = vunpack.c.h.b16 %v1102
        %v1295 = vunpack.c.l.b16 %v1104
        %v1296 = vunpack.c.h.b16 %v1104
        %v1297 = vunpack.c.l.b16 %v1106
        %v1298 = vunpack.c.h.b16 %v1106
        %v1299 = vunpack.c.l.b16 %v1108
        %v1300 = vunpack.c.h.b16 %v1108
        %v1301 = vunpack.c.l.b16 %v1110
        %v1302 = vunpack.c.h.b16 %v1110
        %v1303 = vpack.c.b16 %v1271, %v1271
        %v1304 = vpack.c.b16 %v1272, %v1272
        %v1305 = vpack.c.b16 %v1273, %v1273
        %v1306 = vpack.c.b16 %v1274, %v1274
        %v1307 = vpack.c.b16 %v1275, %v1275
        %v1308 = vpack.c.b16 %v1276, %v1276
        %v1309 = vpack.c.b16 %v1277, %v1277
        %v1310 = vpack.c.b16 %v1278, %v1278
        %v1311 = vpack.c.b16 %v1279, %v1279
        %v1312 = vpack.c.b16 %v1280, %v1280
        %v1313 = vpack.c.b16 %v1281, %v1281
        %v1314 = vpack.c.b16 %v1282, %v1282
        %v1315 = vpack.c.b16 %v1283, %v1283
        %v1316 = vpack.c.b16 %v1284, %v1284
        %v1317 = vpack.c.b16 %v1285, %v1285
        %v1318 = vpack.c.b16 %v1286, %v1286
        %v1319 = vpack.c.b16 %v1287, %v1287
        %v1320 = vpack.c.b16 %v1288, %v1288
        %v1321 = vpack.c.b16 %v1289, %v1289
        %v1322 = vpack.c.b16 %v1290, %v1290
        %v1323 = vpack.c.b16 %v1291, %v1291
        %v1324 = vpack.c.b16 %v1292, %v1292
        %v1325 = vpack.c.b16 %v1293, %v1293
        %v1326 = vpack.c.b16 %v1294, %v1294
        %v1327 = vpack.c.b16 %v1295, %v1295
        %v1328 = vpack.c.b16 %v1296, %v1296
        %v1329 = vpack.c.b16 %v1297, %v1297
        %v1330 = vpack.c.b16 %v1298, %v1298
        %v1331 = vpack.c.b16 %v1299, %v1299
        %v1332 = vpack.c.b16 %v1300, %v1300
        %v1333 = vpack.c.b16 %v1301, %v1301
        %v1334 = vpack.c.b16 %v1302, %v1302
        %s1367 = scalar_lea.vmem %s481, 128 [#allocation13]
        %1368 = vst [vmem:[%s1367] sm:$0xf] %v1303
        %1369 = vst [vmem:[%s1367 + $0x4] sm:$0xf] %v1304
        %1370 = vst [vmem:[%s1367 + $0x8] sm:$0xf] %v1305
        %1371 = vst [vmem:[%s1367 + $0xc] sm:$0xf] %v1306
        %1372 = vst [vmem:[%s1367 + $0x10] sm:$0xf] %v1307
        %1373 = vst [vmem:[%s1367 + $0x14] sm:$0xf] %v1308
        %1374 = vst [vmem:[%s1367 + $0x18] sm:$0xf] %v1309
        %1375 = vst [vmem:[%s1367 + $0x1c] sm:$0xf] %v1310
        %1376 = vst [vmem:[%s1367 + $0x20] sm:$0xf] %v1311
        %1377 = vst [vmem:[%s1367 + $0x24] sm:$0xf] %v1312
        %1378 = vst [vmem:[%s1367 + $0x28] sm:$0xf] %v1313
        %1379 = vst [vmem:[%s1367 + $0x2c] sm:$0xf] %v1314
        %1380 = vst [vmem:[%s1367 + $0x30] sm:$0xf] %v1315
        %1381 = vst [vmem:[%s1367 + $0x34] sm:$0xf] %v1316
        %1382 = vst [vmem:[%s1367 + $0x38] sm:$0xf] %v1317
        %1383 = vst [vmem:[%s1367 + $0x3c] sm:$0xf] %v1318
        %1384 = vst [vmem:[%s1367 + $0x40] sm:$0xf] %v1319
        %1385 = vst [vmem:[%s1367 + $0x44] sm:$0xf] %v1320
        %1386 = vst [vmem:[%s1367 + $0x48] sm:$0xf] %v1321
        %1387 = vst [vmem:[%s1367 + $0x4c] sm:$0xf] %v1322
        %1388 = vst [vmem:[%s1367 + $0x50] sm:$0xf] %v1323
        %1389 = vst [vmem:[%s1367 + $0x54] sm:$0xf] %v1324
        %1390 = vst [vmem:[%s1367 + $0x58] sm:$0xf] %v1325
        %1391 = vst [vmem:[%s1367 + $0x5c] sm:$0xf] %v1326
        %1392 = vst [vmem:[%s1367 + $0x60] sm:$0xf] %v1327
        %1393 = vst [vmem:[%s1367 + $0x64] sm:$0xf] %v1328
        %1394 = vst [vmem:[%s1367 + $0x68] sm:$0xf] %v1329
        %1395 = vst [vmem:[%s1367 + $0x6c] sm:$0xf] %v1330
        %1396 = vst [vmem:[%s1367 + $0x70] sm:$0xf] %v1331
        %1397 = vst [vmem:[%s1367 + $0x74] sm:$0xf] %v1332
        %1398 = vst [vmem:[%s1367 + $0x78] sm:$0xf] %v1333
        %1399 = vst [vmem:[%s1367 + $0x7c] sm:$0xf] %v1334
        %v1400 = vld [vmem:[%s422] sm:$0xff]
        %v1401 = vld [vmem:[%s422 + $0x8] sm:$0xff]
        %v1402 = vld [vmem:[%s422 + $0x10] sm:$0xff]
        %v1403 = vld [vmem:[%s422 + $0x18] sm:$0xff]
        %v1404 = vld [vmem:[%s422 + $0x20] sm:$0xff]
        %v1405 = vld [vmem:[%s422 + $0x28] sm:$0xff]
        %v1406 = vld [vmem:[%s422 + $0x30] sm:$0xff]
        %v1407 = vld [vmem:[%s422 + $0x38] sm:$0xff]
        %v1408 = vld [vmem:[%s422 + $0x40] sm:$0xff]
        %v1409 = vld [vmem:[%s422 + $0x48] sm:$0xff]
        %v1410 = vld [vmem:[%s422 + $0x50] sm:$0xff]
        %v1411 = vld [vmem:[%s422 + $0x58] sm:$0xff]
        %v1412 = vld [vmem:[%s422 + $0x60] sm:$0xff]
        %v1413 = vld [vmem:[%s422 + $0x68] sm:$0xff]
        %v1414 = vld [vmem:[%s422 + $0x70] sm:$0xff]
        %v1415 = vld [vmem:[%s422 + $0x78] sm:$0xff]
        %v1416 = vld [vmem:[%s422 + $0x80] sm:$0xff]
        %v1417 = vld [vmem:[%s422 + $0x88] sm:$0xff]
        %v1418 = vld [vmem:[%s422 + $0x90] sm:$0xff]
        %v1419 = vld [vmem:[%s422 + $0x98] sm:$0xff]
        %v1420 = vld [vmem:[%s422 + $0xa0] sm:$0xff]
        %v1421 = vld [vmem:[%s422 + $0xa8] sm:$0xff]
        %v1422 = vld [vmem:[%s422 + $0xb0] sm:$0xff]
        %v1423 = vld [vmem:[%s422 + $0xb8] sm:$0xff]
        %v1424 = vld [vmem:[%s422 + $0xc0] sm:$0xff]
        %v1425 = vld [vmem:[%s422 + $0xc8] sm:$0xff]
        %v1426 = vld [vmem:[%s422 + $0xd0] sm:$0xff]
        %v1427 = vld [vmem:[%s422 + $0xd8] sm:$0xff]
        %v1428 = vld [vmem:[%s422 + $0xe0] sm:$0xff]
        %v1429 = vld [vmem:[%s422 + $0xe8] sm:$0xff]
        %v1430 = vld [vmem:[%s422 + $0xf0] sm:$0xff]
        %v1431 = vld [vmem:[%s422 + $0xf8] sm:$0xff]
        %v1432 = vld [vmem:[#allocation10] sm:$0xff]
        %v1433 = vld [vmem:[#allocation10 + $0x8] sm:$0xff]
        %v1434 = vld [vmem:[#allocation10 + $0x10] sm:$0xff]
        %v1435 = vld [vmem:[#allocation10 + $0x18] sm:$0xff]
        %v1436 = vld [vmem:[#allocation10 + $0x20] sm:$0xff]
        %v1437 = vld [vmem:[#allocation10 + $0x28] sm:$0xff]
        %v1438 = vld [vmem:[#allocation10 + $0x30] sm:$0xff]
        %v1439 = vld [vmem:[#allocation10 + $0x38] sm:$0xff]
        %v1440 = vld [vmem:[#allocation10 + $0x40] sm:$0xff]
        %v1441 = vld [vmem:[#allocation10 + $0x48] sm:$0xff]
        %v1442 = vld [vmem:[#allocation10 + $0x50] sm:$0xff]
        %v1443 = vld [vmem:[#allocation10 + $0x58] sm:$0xff]
        %v1444 = vld [vmem:[#allocation10 + $0x60] sm:$0xff]
        %v1445 = vld [vmem:[#allocation10 + $0x68] sm:$0xff]
        %v1446 = vld [vmem:[#allocation10 + $0x70] sm:$0xff]
        %v1447 = vld [vmem:[#allocation10 + $0x78] sm:$0xff]
        %v1448 = vld [vmem:[#allocation10 + $0x80] sm:$0xff]
        %v1449 = vld [vmem:[#allocation10 + $0x88] sm:$0xff]
        %v1450 = vld [vmem:[#allocation10 + $0x90] sm:$0xff]
        %v1451 = vld [vmem:[#allocation10 + $0x98] sm:$0xff]
        %v1452 = vld [vmem:[#allocation10 + $0xa0] sm:$0xff]
        %v1453 = vld [vmem:[#allocation10 + $0xa8] sm:$0xff]
        %v1454 = vld [vmem:[#allocation10 + $0xb0] sm:$0xff]
        %v1455 = vld [vmem:[#allocation10 + $0xb8] sm:$0xff]
        %v1456 = vld [vmem:[#allocation10 + $0xc0] sm:$0xff]
        %v1457 = vld [vmem:[#allocation10 + $0xc8] sm:$0xff]
        %v1458 = vld [vmem:[#allocation10 + $0xd0] sm:$0xff]
        %v1459 = vld [vmem:[#allocation10 + $0xd8] sm:$0xff]
        %v1460 = vld [vmem:[#allocation10 + $0xe0] sm:$0xff]
        %v1461 = vld [vmem:[#allocation10 + $0xe8] sm:$0xff]
        %v1462 = vld [vmem:[#allocation10 + $0xf0] sm:$0xff]
        %v1463 = vld [vmem:[#allocation10 + $0xf8] sm:$0xff]
        %v1496 = vunpack.c.l.b16 %v1400
        %v1497 = vunpack.c.h.b16 %v1400
        %v1498 = vunpack.c.l.b16 %v1401
        %v1499 = vunpack.c.h.b16 %v1401
        %v1500 = vunpack.c.l.b16 %v1402
        %v1501 = vunpack.c.h.b16 %v1402
        %v1502 = vunpack.c.l.b16 %v1403
        %v1503 = vunpack.c.h.b16 %v1403
        %v1504 = vunpack.c.l.b16 %v1404
        %v1505 = vunpack.c.h.b16 %v1404
        %v1506 = vunpack.c.l.b16 %v1405
        %v1507 = vunpack.c.h.b16 %v1405
        %v1508 = vunpack.c.l.b16 %v1406
        %v1509 = vunpack.c.h.b16 %v1406
        %v1510 = vunpack.c.l.b16 %v1407
        %v1511 = vunpack.c.h.b16 %v1407
        %v1512 = vunpack.c.l.b16 %v1408
        %v1513 = vunpack.c.h.b16 %v1408
        %v1514 = vunpack.c.l.b16 %v1409
        %v1515 = vunpack.c.h.b16 %v1409
        %v1516 = vunpack.c.l.b16 %v1410
        %v1517 = vunpack.c.h.b16 %v1410
        %v1518 = vunpack.c.l.b16 %v1411
        %v1519 = vunpack.c.h.b16 %v1411
        %v1520 = vunpack.c.l.b16 %v1412
        %v1521 = vunpack.c.h.b16 %v1412
        %v1522 = vunpack.c.l.b16 %v1413
        %v1523 = vunpack.c.h.b16 %v1413
        %v1524 = vunpack.c.l.b16 %v1414
        %v1525 = vunpack.c.h.b16 %v1414
        %v1526 = vunpack.c.l.b16 %v1415
        %v1527 = vunpack.c.h.b16 %v1415
        %v1528 = vunpack.c.l.b16 %v1416
        %v1529 = vunpack.c.h.b16 %v1416
        %v1530 = vunpack.c.l.b16 %v1417
        %v1531 = vunpack.c.h.b16 %v1417
        %v1532 = vunpack.c.l.b16 %v1418
        %v1533 = vunpack.c.h.b16 %v1418
        %v1534 = vunpack.c.l.b16 %v1419
        %v1535 = vunpack.c.h.b16 %v1419
        %v1536 = vunpack.c.l.b16 %v1420
        %v1537 = vunpack.c.h.b16 %v1420
        %v1538 = vunpack.c.l.b16 %v1421
        %v1539 = vunpack.c.h.b16 %v1421
        %v1540 = vunpack.c.l.b16 %v1422
        %v1541 = vunpack.c.h.b16 %v1422
        %v1542 = vunpack.c.l.b16 %v1423
        %v1543 = vunpack.c.h.b16 %v1423
        %v1544 = vunpack.c.l.b16 %v1424
        %v1545 = vunpack.c.h.b16 %v1424
        %v1546 = vunpack.c.l.b16 %v1425
        %v1547 = vunpack.c.h.b16 %v1425
        %v1548 = vunpack.c.l.b16 %v1426
        %v1549 = vunpack.c.h.b16 %v1426
        %v1550 = vunpack.c.l.b16 %v1427
        %v1551 = vunpack.c.h.b16 %v1427
        %v1552 = vunpack.c.l.b16 %v1428
        %v1553 = vunpack.c.h.b16 %v1428
        %v1554 = vunpack.c.l.b16 %v1429
        %v1555 = vunpack.c.h.b16 %v1429
        %v1556 = vunpack.c.l.b16 %v1430
        %v1557 = vunpack.c.h.b16 %v1430
        %v1558 = vunpack.c.l.b16 %v1431
        %v1559 = vunpack.c.h.b16 %v1431
        %v1560 = vpack.c.b16 %v1498, %v1496
        %v1561 = vpack.c.b16 %v1499, %v1497
        %v1562 = vpack.c.b16 %v1502, %v1500
        %v1563 = vpack.c.b16 %v1503, %v1501
        %v1564 = vpack.c.b16 %v1506, %v1504
        %v1565 = vpack.c.b16 %v1507, %v1505
        %v1566 = vpack.c.b16 %v1510, %v1508
        %v1567 = vpack.c.b16 %v1511, %v1509
        %v1568 = vpack.c.b16 %v1514, %v1512
        %v1569 = vpack.c.b16 %v1515, %v1513
        %v1570 = vpack.c.b16 %v1518, %v1516
        %v1571 = vpack.c.b16 %v1519, %v1517
        %v1572 = vpack.c.b16 %v1522, %v1520
        %v1573 = vpack.c.b16 %v1523, %v1521
        %v1574 = vpack.c.b16 %v1526, %v1524
        %v1575 = vpack.c.b16 %v1527, %v1525
        %v1576 = vpack.c.b16 %v1530, %v1528
        %v1577 = vpack.c.b16 %v1531, %v1529
        %v1578 = vpack.c.b16 %v1534, %v1532
        %v1579 = vpack.c.b16 %v1535, %v1533
        %v1580 = vpack.c.b16 %v1538, %v1536
        %v1581 = vpack.c.b16 %v1539, %v1537
        %v1582 = vpack.c.b16 %v1542, %v1540
        %v1583 = vpack.c.b16 %v1543, %v1541
        %v1584 = vpack.c.b16 %v1546, %v1544
        %v1585 = vpack.c.b16 %v1547, %v1545
        %v1586 = vpack.c.b16 %v1550, %v1548
        %v1587 = vpack.c.b16 %v1551, %v1549
        %v1588 = vpack.c.b16 %v1554, %v1552
        %v1589 = vpack.c.b16 %v1555, %v1553
        %v1590 = vpack.c.b16 %v1558, %v1556
        %v1591 = vpack.c.b16 %v1559, %v1557
        %v1656 = vunpack.c.l.b16 %v1432
        %v1657 = vunpack.c.h.b16 %v1432
        %v1658 = vunpack.c.l.b16 %v1433
        %v1659 = vunpack.c.h.b16 %v1433
        %v1660 = vunpack.c.l.b16 %v1434
        %v1661 = vunpack.c.h.b16 %v1434
        %v1662 = vunpack.c.l.b16 %v1435
        %v1663 = vunpack.c.h.b16 %v1435
        %v1664 = vunpack.c.l.b16 %v1436
        %v1665 = vunpack.c.h.b16 %v1436
        %v1666 = vunpack.c.l.b16 %v1437
        %v1667 = vunpack.c.h.b16 %v1437
        %v1668 = vunpack.c.l.b16 %v1438
        %v1669 = vunpack.c.h.b16 %v1438
        %v1670 = vunpack.c.l.b16 %v1439
        %v1671 = vunpack.c.h.b16 %v1439
        %v1672 = vunpack.c.l.b16 %v1440
        %v1673 = vunpack.c.h.b16 %v1440
        %v1674 = vunpack.c.l.b16 %v1441
        %v1675 = vunpack.c.h.b16 %v1441
        %v1676 = vunpack.c.l.b16 %v1442
        %v1677 = vunpack.c.h.b16 %v1442
        %v1678 = vunpack.c.l.b16 %v1443
        %v1679 = vunpack.c.h.b16 %v1443
        %v1680 = vunpack.c.l.b16 %v1444
        %v1681 = vunpack.c.h.b16 %v1444
        %v1682 = vunpack.c.l.b16 %v1445
        %v1683 = vunpack.c.h.b16 %v1445
        %v1684 = vunpack.c.l.b16 %v1446
        %v1685 = vunpack.c.h.b16 %v1446
        %v1686 = vunpack.c.l.b16 %v1447
        %v1687 = vunpack.c.h.b16 %v1447
        %v1688 = vunpack.c.l.b16 %v1448
        %v1689 = vunpack.c.h.b16 %v1448
        %v1690 = vunpack.c.l.b16 %v1449
        %v1691 = vunpack.c.h.b16 %v1449
        %v1692 = vunpack.c.l.b16 %v1450
        %v1693 = vunpack.c.h.b16 %v1450
        %v1694 = vunpack.c.l.b16 %v1451
        %v1695 = vunpack.c.h.b16 %v1451
        %v1696 = vunpack.c.l.b16 %v1452
        %v1697 = vunpack.c.h.b16 %v1452
        %v1698 = vunpack.c.l.b16 %v1453
        %v1699 = vunpack.c.h.b16 %v1453
        %v1700 = vunpack.c.l.b16 %v1454
        %v1701 = vunpack.c.h.b16 %v1454
        %v1702 = vunpack.c.l.b16 %v1455
        %v1703 = vunpack.c.h.b16 %v1455
        %v1704 = vunpack.c.l.b16 %v1456
        %v1705 = vunpack.c.h.b16 %v1456
        %v1706 = vunpack.c.l.b16 %v1457
        %v1707 = vunpack.c.h.b16 %v1457
        %v1708 = vunpack.c.l.b16 %v1458
        %v1709 = vunpack.c.h.b16 %v1458
        %v1710 = vunpack.c.l.b16 %v1459
        %v1711 = vunpack.c.h.b16 %v1459
        %v1712 = vunpack.c.l.b16 %v1460
        %v1713 = vunpack.c.h.b16 %v1460
        %v1714 = vunpack.c.l.b16 %v1461
        %v1715 = vunpack.c.h.b16 %v1461
        %v1716 = vunpack.c.l.b16 %v1462
        %v1717 = vunpack.c.h.b16 %v1462
        %v1718 = vunpack.c.l.b16 %v1463
        %v1719 = vunpack.c.h.b16 %v1463
        %v1720 = vpack.c.b16 %v1658, %v1656
        %v1721 = vpack.c.b16 %v1659, %v1657
        %v1722 = vpack.c.b16 %v1662, %v1660
        %v1723 = vpack.c.b16 %v1663, %v1661
        %v1724 = vpack.c.b16 %v1666, %v1664
        %v1725 = vpack.c.b16 %v1667, %v1665
        %v1726 = vpack.c.b16 %v1670, %v1668
        %v1727 = vpack.c.b16 %v1671, %v1669
        %v1728 = vpack.c.b16 %v1674, %v1672
        %v1729 = vpack.c.b16 %v1675, %v1673
        %v1730 = vpack.c.b16 %v1678, %v1676
        %v1731 = vpack.c.b16 %v1679, %v1677
        %v1732 = vpack.c.b16 %v1682, %v1680
        %v1733 = vpack.c.b16 %v1683, %v1681
        %v1734 = vpack.c.b16 %v1686, %v1684
        %v1735 = vpack.c.b16 %v1687, %v1685
        %v1736 = vpack.c.b16 %v1690, %v1688
        %v1737 = vpack.c.b16 %v1691, %v1689
        %v1738 = vpack.c.b16 %v1694, %v1692
        %v1739 = vpack.c.b16 %v1695, %v1693
        %v1740 = vpack.c.b16 %v1698, %v1696
        %v1741 = vpack.c.b16 %v1699, %v1697
        %v1742 = vpack.c.b16 %v1702, %v1700
        %v1743 = vpack.c.b16 %v1703, %v1701
        %v1744 = vpack.c.b16 %v1706, %v1704
        %v1745 = vpack.c.b16 %v1707, %v1705
        %v1746 = vpack.c.b16 %v1710, %v1708
        %v1747 = vpack.c.b16 %v1711, %v1709
        %v1748 = vpack.c.b16 %v1714, %v1712
        %v1749 = vpack.c.b16 %v1715, %v1713
        %v1750 = vpack.c.b16 %v1718, %v1716
        %v1751 = vpack.c.b16 %v1719, %v1717
        %1784 = vmatprep.subr.bf16.mxu0 %v1721
        %1785 = vmatpush1.bf16.msra.mxu0 %v1720
        %1786 = vmatprep.subr.bf16.mxu0 %v1723
        %1787 = vmatpush1.bf16.msra.mxu0 %v1722
        %1788 = vmatprep.subr.bf16.mxu0 %v1725
        %1789 = vmatpush1.bf16.msra.mxu0 %v1724
        %1790 = vmatprep.subr.bf16.mxu0 %v1727
        %1791 = vmatpush1.bf16.msra.mxu0 %v1726
        %1792 = vmatprep.subr.bf16.mxu0 %v1729
        %1793 = vmatpush1.bf16.msra.mxu0 %v1728
        %1794 = vmatprep.subr.bf16.mxu0 %v1731
        %1795 = vmatpush1.bf16.msra.mxu0 %v1730
        %1796 = vmatprep.subr.bf16.mxu0 %v1733
        %1797 = vmatpush1.bf16.msra.mxu0 %v1732
        %1798 = vmatprep.subr.bf16.mxu0 %v1735
        %1799 = vmatpush1.bf16.msra.mxu0 %v1734
        %1800 = vmatprep.subr.bf16.mxu0 %v1737
        %1801 = vmatpush1.bf16.msra.mxu0 %v1736
        %1802 = vmatprep.subr.bf16.mxu0 %v1739
        %1803 = vmatpush1.bf16.msra.mxu0 %v1738
        %1804 = vmatprep.subr.bf16.mxu0 %v1741
        %1805 = vmatpush1.bf16.msra.mxu0 %v1740
        %1806 = vmatprep.subr.bf16.mxu0 %v1743
        %1807 = vmatpush1.bf16.msra.mxu0 %v1742
        %1808 = vmatprep.subr.bf16.mxu0 %v1745
        %1809 = vmatpush1.bf16.msra.mxu0 %v1744
        %1810 = vmatprep.subr.bf16.mxu0 %v1747
        %1811 = vmatpush1.bf16.msra.mxu0 %v1746
        %1812 = vmatprep.subr.bf16.mxu0 %v1749
        %1813 = vmatpush1.bf16.msra.mxu0 %v1748
        %1814 = vmatprep.subr.bf16.mxu0 %v1751
        %1815 = vmatpush1.bf16.msra.mxu0 %v1750
        %1816 = vmatprep.mubr.bf16.mxu0 %v1561
        %1817 = vmatmul.mubr.bf16.gmra.mrb[0].mxu0 %v1560
        %v1818 = vpop.f32.mrb[0].mxu0
        %v1819 = vadd.f32 0.0, %v1818
        %v1820 = vpop.f32.mrb[0].mxu0
        %v1821 = vadd.f32 0.0, %v1820
        %v1822 = vpop.f32.mrb[0].mxu0
        %v1823 = vadd.f32 0.0, %v1822
        %v1824 = vpop.f32.mrb[0].mxu0
        %v1825 = vadd.f32 0.0, %v1824
        %1826 = vmatprep.mubr.bf16.mxu0 %v1563
        %1827 = vmatmul.mubr.bf16.gmra.mrb[0].mxu0 %v1562
        %v1828 = vpop.f32.mrb[0].mxu0
        %v1829 = vadd.f32 0.0, %v1828
        %v1830 = vpop.f32.mrb[0].mxu0
        %v1831 = vadd.f32 0.0, %v1830
        %v1832 = vpop.f32.mrb[0].mxu0
        %v1833 = vadd.f32 0.0, %v1832
        %v1834 = vpop.f32.mrb[0].mxu0
        %v1835 = vadd.f32 0.0, %v1834
        %1836 = vmatprep.mubr.bf16.mxu0 %v1565
        %1837 = vmatmul.mubr.bf16.gmra.mrb[0].mxu0 %v1564
        %v1838 = vpop.f32.mrb[0].mxu0
        %v1839 = vadd.f32 0.0, %v1838
        %v1840 = vpop.f32.mrb[0].mxu0
        %v1841 = vadd.f32 0.0, %v1840
        %v1842 = vpop.f32.mrb[0].mxu0
        %v1843 = vadd.f32 0.0, %v1842
        %v1844 = vpop.f32.mrb[0].mxu0
        %v1845 = vadd.f32 0.0, %v1844
        %1846 = vmatprep.mubr.bf16.mxu0 %v1567
        %1847 = vmatmul.mubr.bf16.gmra.mrb[0].mxu0 %v1566
        %v1848 = vpop.f32.mrb[0].mxu0
        %v1849 = vadd.f32 0.0, %v1848
        %v1850 = vpop.f32.mrb[0].mxu0
        %v1851 = vadd.f32 0.0, %v1850
        %v1852 = vpop.f32.mrb[0].mxu0
        %v1853 = vadd.f32 0.0, %v1852
        %v1854 = vpop.f32.mrb[0].mxu0
        %v1855 = vadd.f32 0.0, %v1854
        %1856 = vmatprep.mubr.bf16.mxu0 %v1569
        %1857 = vmatmul.mubr.bf16.gmra.mrb[0].mxu0 %v1568
        %v1858 = vpop.f32.mrb[0].mxu0
        %v1859 = vadd.f32 0.0, %v1858
        %v1860 = vpop.f32.mrb[0].mxu0
        %v1861 = vadd.f32 0.0, %v1860
        %v1862 = vpop.f32.mrb[0].mxu0
        %v1863 = vadd.f32 0.0, %v1862
        %v1864 = vpop.f32.mrb[0].mxu0
        %v1865 = vadd.f32 0.0, %v1864
        %1866 = vmatprep.mubr.bf16.mxu0 %v1571
        %1867 = vmatmul.mubr.bf16.gmra.mrb[0].mxu0 %v1570
        %v1868 = vpop.f32.mrb[0].mxu0
        %v1869 = vadd.f32 0.0, %v1868
        %v1870 = vpop.f32.mrb[0].mxu0
        %v1871 = vadd.f32 0.0, %v1870
        %v1872 = vpop.f32.mrb[0].mxu0
        %v1873 = vadd.f32 0.0, %v1872
        %v1874 = vpop.f32.mrb[0].mxu0
        %v1875 = vadd.f32 0.0, %v1874
        %1876 = vmatprep.mubr.bf16.mxu0 %v1573
        %1877 = vmatmul.mubr.bf16.gmra.mrb[0].mxu0 %v1572
        %v1878 = vpop.f32.mrb[0].mxu0
        %v1879 = vadd.f32 0.0, %v1878
        %v1880 = vpop.f32.mrb[0].mxu0
        %v1881 = vadd.f32 0.0, %v1880
        %v1882 = vpop.f32.mrb[0].mxu0
        %v1883 = vadd.f32 0.0, %v1882
        %v1884 = vpop.f32.mrb[0].mxu0
        %v1885 = vadd.f32 0.0, %v1884
        %1886 = vmatprep.mubr.bf16.mxu0 %v1575
        %1887 = vmatmul.mubr.bf16.gmra.mrb[0].mxu0 %v1574
        %v1888 = vpop.f32.mrb[0].mxu0
        %v1889 = vadd.f32 0.0, %v1888
        %v1890 = vpop.f32.mrb[0].mxu0
        %v1891 = vadd.f32 0.0, %v1890
        %v1892 = vpop.f32.mrb[0].mxu0
        %v1893 = vadd.f32 0.0, %v1892
        %v1894 = vpop.f32.mrb[0].mxu0
        %v1895 = vadd.f32 0.0, %v1894
        %1896 = vmatprep.mubr.bf16.mxu0 %v1577
        %1897 = vmatmul.mubr.bf16.gmra.mrb[0].mxu0 %v1576
        %v1898 = vpop.f32.mrb[0].mxu0
        %v1899 = vadd.f32 0.0, %v1898
        %v1900 = vpop.f32.mrb[0].mxu0
        %v1901 = vadd.f32 0.0, %v1900
        %v1902 = vpop.f32.mrb[0].mxu0
        %v1903 = vadd.f32 0.0, %v1902
        %v1904 = vpop.f32.mrb[0].mxu0
        %v1905 = vadd.f32 0.0, %v1904
        %1906 = vmatprep.mubr.bf16.mxu0 %v1579
        %1907 = vmatmul.mubr.bf16.gmra.mrb[0].mxu0 %v1578
        %v1908 = vpop.f32.mrb[0].mxu0
        %v1909 = vadd.f32 0.0, %v1908
        %v1910 = vpop.f32.mrb[0].mxu0
        %v1911 = vadd.f32 0.0, %v1910
        %v1912 = vpop.f32.mrb[0].mxu0
        %v1913 = vadd.f32 0.0, %v1912
        %v1914 = vpop.f32.mrb[0].mxu0
        %v1915 = vadd.f32 0.0, %v1914
        %1916 = vmatprep.mubr.bf16.mxu0 %v1581
        %1917 = vmatmul.mubr.bf16.gmra.mrb[0].mxu0 %v1580
        %v1918 = vpop.f32.mrb[0].mxu0
        %v1919 = vadd.f32 0.0, %v1918
        %v1920 = vpop.f32.mrb[0].mxu0
        %v1921 = vadd.f32 0.0, %v1920
        %v1922 = vpop.f32.mrb[0].mxu0
        %v1923 = vadd.f32 0.0, %v1922
        %v1924 = vpop.f32.mrb[0].mxu0
        %v1925 = vadd.f32 0.0, %v1924
        %1926 = vmatprep.mubr.bf16.mxu0 %v1583
        %1927 = vmatmul.mubr.bf16.gmra.mrb[0].mxu0 %v1582
        %v1928 = vpop.f32.mrb[0].mxu0
        %v1929 = vadd.f32 0.0, %v1928
        %v1930 = vpop.f32.mrb[0].mxu0
        %v1931 = vadd.f32 0.0, %v1930
        %v1932 = vpop.f32.mrb[0].mxu0
        %v1933 = vadd.f32 0.0, %v1932
        %v1934 = vpop.f32.mrb[0].mxu0
        %v1935 = vadd.f32 0.0, %v1934
        %1936 = vmatprep.mubr.bf16.mxu0 %v1585
        %1937 = vmatmul.mubr.bf16.gmra.mrb[0].mxu0 %v1584
        %v1938 = vpop.f32.mrb[0].mxu0
        %v1939 = vadd.f32 0.0, %v1938
        %v1940 = vpop.f32.mrb[0].mxu0
        %v1941 = vadd.f32 0.0, %v1940
        %v1942 = vpop.f32.mrb[0].mxu0
        %v1943 = vadd.f32 0.0, %v1942
        %v1944 = vpop.f32.mrb[0].mxu0
        %v1945 = vadd.f32 0.0, %v1944
        %1946 = vmatprep.mubr.bf16.mxu0 %v1587
        %1947 = vmatmul.mubr.bf16.gmra.mrb[0].mxu0 %v1586
        %v1948 = vpop.f32.mrb[0].mxu0
        %v1949 = vadd.f32 0.0, %v1948
        %v1950 = vpop.f32.mrb[0].mxu0
        %v1951 = vadd.f32 0.0, %v1950
        %v1952 = vpop.f32.mrb[0].mxu0
        %v1953 = vadd.f32 0.0, %v1952
        %v1954 = vpop.f32.mrb[0].mxu0
        %v1955 = vadd.f32 0.0, %v1954
        %1956 = vmatprep.mubr.bf16.mxu0 %v1589
        %1957 = vmatmul.mubr.bf16.gmra.mrb[0].mxu0 %v1588
        %v1958 = vpop.f32.mrb[0].mxu0
        %v1959 = vadd.f32 0.0, %v1958
        %v1960 = vpop.f32.mrb[0].mxu0
        %v1961 = vadd.f32 0.0, %v1960
        %v1962 = vpop.f32.mrb[0].mxu0
        %v1963 = vadd.f32 0.0, %v1962
        %v1964 = vpop.f32.mrb[0].mxu0
        %v1965 = vadd.f32 0.0, %v1964
        %1966 = vmatprep.mubr.bf16.mxu0 %v1591
        %1967 = vmatmul.mubr.bf16.gmra.mrb[0].mxu0 %v1590
        %v1968 = vpop.f32.mrb[0].mxu0
        %v1969 = vadd.f32 0.0, %v1968
        %v1970 = vpop.f32.mrb[0].mxu0
        %v1971 = vadd.f32 0.0, %v1970
        %v1972 = vpop.f32.mrb[0].mxu0
        %v1973 = vadd.f32 0.0, %v1972
        %v1974 = vpop.f32.mrb[0].mxu0
        %v1975 = vadd.f32 0.0, %v1974
        %1976 = vdwg.mxu0
        %v1977 = vpack.c.bf16 %v1823, %v1819
        %v1978 = vpack.c.bf16 %v1825, %v1821
        %v1979 = vpack.c.bf16 %v1833, %v1829
        %v1980 = vpack.c.bf16 %v1835, %v1831
        %v1981 = vpack.c.bf16 %v1843, %v1839
        %v1982 = vpack.c.bf16 %v1845, %v1841
        %v1983 = vpack.c.bf16 %v1853, %v1849
        %v1984 = vpack.c.bf16 %v1855, %v1851
        %v1985 = vpack.c.bf16 %v1863, %v1859
        %v1986 = vpack.c.bf16 %v1865, %v1861
        %v1987 = vpack.c.bf16 %v1873, %v1869
        %v1988 = vpack.c.bf16 %v1875, %v1871
        %v1989 = vpack.c.bf16 %v1883, %v1879
        %v1990 = vpack.c.bf16 %v1885, %v1881
        %v1991 = vpack.c.bf16 %v1893, %v1889
        %v1992 = vpack.c.bf16 %v1895, %v1891
        %v1993 = vpack.c.bf16 %v1903, %v1899
        %v1994 = vpack.c.bf16 %v1905, %v1901
        %v1995 = vpack.c.bf16 %v1913, %v1909
        %v1996 = vpack.c.bf16 %v1915, %v1911
        %v1997 = vpack.c.bf16 %v1923, %v1919
        %v1998 = vpack.c.bf16 %v1925, %v1921
        %v1999 = vpack.c.bf16 %v1933, %v1929
        %v2000 = vpack.c.bf16 %v1935, %v1931
        %v2001 = vpack.c.bf16 %v1943, %v1939
        %v2002 = vpack.c.bf16 %v1945, %v1941
        %v2003 = vpack.c.bf16 %v1953, %v1949
        %v2004 = vpack.c.bf16 %v1955, %v1951
        %v2005 = vpack.c.bf16 %v1963, %v1959
        %v2006 = vpack.c.bf16 %v1965, %v1961
        %v2007 = vpack.c.bf16 %v1973, %v1969
        %v2008 = vpack.c.bf16 %v1975, %v1971
        %v2025 = vunpack.c.l.b16 %v1977
        %v2026 = vunpack.c.h.b16 %v1977
        %v2027 = vunpack.c.l.b16 %v1979
        %v2028 = vunpack.c.h.b16 %v1979
        %v2029 = vunpack.c.l.b16 %v1981
        %v2030 = vunpack.c.h.b16 %v1981
        %v2031 = vunpack.c.l.b16 %v1983
        %v2032 = vunpack.c.h.b16 %v1983
        %v2033 = vunpack.c.l.b16 %v1985
        %v2034 = vunpack.c.h.b16 %v1985
        %v2035 = vunpack.c.l.b16 %v1987
        %v2036 = vunpack.c.h.b16 %v1987
        %v2037 = vunpack.c.l.b16 %v1989
        %v2038 = vunpack.c.h.b16 %v1989
        %v2039 = vunpack.c.l.b16 %v1991
        %v2040 = vunpack.c.h.b16 %v1991
        %v2041 = vunpack.c.l.b16 %v1993
        %v2042 = vunpack.c.h.b16 %v1993
        %v2043 = vunpack.c.l.b16 %v1995
        %v2044 = vunpack.c.h.b16 %v1995
        %v2045 = vunpack.c.l.b16 %v1997
        %v2046 = vunpack.c.h.b16 %v1997
        %v2047 = vunpack.c.l.b16 %v1999
        %v2048 = vunpack.c.h.b16 %v1999
        %v2049 = vunpack.c.l.b16 %v2001
        %v2050 = vunpack.c.h.b16 %v2001
        %v2051 = vunpack.c.l.b16 %v2003
        %v2052 = vunpack.c.h.b16 %v2003
        %v2053 = vunpack.c.l.b16 %v2005
        %v2054 = vunpack.c.h.b16 %v2005
        %v2055 = vunpack.c.l.b16 %v2007
        %v2056 = vunpack.c.h.b16 %v2007
        %v2057 = vpack.c.b16 %v2025, %v2025
        %v2058 = vpack.c.b16 %v2026, %v2026
        %v2059 = vpack.c.b16 %v2027, %v2027
        %v2060 = vpack.c.b16 %v2028, %v2028
        %v2061 = vpack.c.b16 %v2029, %v2029
        %v2062 = vpack.c.b16 %v2030, %v2030
        %v2063 = vpack.c.b16 %v2031, %v2031
        %v2064 = vpack.c.b16 %v2032, %v2032
        %v2065 = vpack.c.b16 %v2033, %v2033
        %v2066 = vpack.c.b16 %v2034, %v2034
        %v2067 = vpack.c.b16 %v2035, %v2035
        %v2068 = vpack.c.b16 %v2036, %v2036
        %v2069 = vpack.c.b16 %v2037, %v2037
        %v2070 = vpack.c.b16 %v2038, %v2038
        %v2071 = vpack.c.b16 %v2039, %v2039
        %v2072 = vpack.c.b16 %v2040, %v2040
        %v2073 = vpack.c.b16 %v2041, %v2041
        %v2074 = vpack.c.b16 %v2042, %v2042
        %v2075 = vpack.c.b16 %v2043, %v2043
        %v2076 = vpack.c.b16 %v2044, %v2044
        %v2077 = vpack.c.b16 %v2045, %v2045
        %v2078 = vpack.c.b16 %v2046, %v2046
        %v2079 = vpack.c.b16 %v2047, %v2047
        %v2080 = vpack.c.b16 %v2048, %v2048
        %v2081 = vpack.c.b16 %v2049, %v2049
        %v2082 = vpack.c.b16 %v2050, %v2050
        %v2083 = vpack.c.b16 %v2051, %v2051
        %v2084 = vpack.c.b16 %v2052, %v2052
        %v2085 = vpack.c.b16 %v2053, %v2053
        %v2086 = vpack.c.b16 %v2054, %v2054
        %v2087 = vpack.c.b16 %v2055, %v2055
        %v2088 = vpack.c.b16 %v2056, %v2056
        %2121 = vst [vmem:[%s488] sm:$0xf] %v2057
        %2122 = vst [vmem:[%s488 + $0x4] sm:$0xf] %v2058
        %2123 = vst [vmem:[%s488 + $0x8] sm:$0xf] %v2059
        %2124 = vst [vmem:[%s488 + $0xc] sm:$0xf] %v2060
        %2125 = vst [vmem:[%s488 + $0x10] sm:$0xf] %v2061
        %2126 = vst [vmem:[%s488 + $0x14] sm:$0xf] %v2062
        %2127 = vst [vmem:[%s488 + $0x18] sm:$0xf] %v2063
        %2128 = vst [vmem:[%s488 + $0x1c] sm:$0xf] %v2064
        %2129 = vst [vmem:[%s488 + $0x20] sm:$0xf] %v2065
        %2130 = vst [vmem:[%s488 + $0x24] sm:$0xf] %v2066
        %2131 = vst [vmem:[%s488 + $0x28] sm:$0xf] %v2067
        %2132 = vst [vmem:[%s488 + $0x2c] sm:$0xf] %v2068
        %2133 = vst [vmem:[%s488 + $0x30] sm:$0xf] %v2069
        %2134 = vst [vmem:[%s488 + $0x34] sm:$0xf] %v2070
        %2135 = vst [vmem:[%s488 + $0x38] sm:$0xf] %v2071
        %2136 = vst [vmem:[%s488 + $0x3c] sm:$0xf] %v2072
        %2137 = vst [vmem:[%s488 + $0x40] sm:$0xf] %v2073
        %2138 = vst [vmem:[%s488 + $0x44] sm:$0xf] %v2074
        %2139 = vst [vmem:[%s488 + $0x48] sm:$0xf] %v2075
        %2140 = vst [vmem:[%s488 + $0x4c] sm:$0xf] %v2076
        %2141 = vst [vmem:[%s488 + $0x50] sm:$0xf] %v2077
        %2142 = vst [vmem:[%s488 + $0x54] sm:$0xf] %v2078
        %2143 = vst [vmem:[%s488 + $0x58] sm:$0xf] %v2079
        %2144 = vst [vmem:[%s488 + $0x5c] sm:$0xf] %v2080
        %2145 = vst [vmem:[%s488 + $0x60] sm:$0xf] %v2081
        %2146 = vst [vmem:[%s488 + $0x64] sm:$0xf] %v2082
        %2147 = vst [vmem:[%s488 + $0x68] sm:$0xf] %v2083
        %2148 = vst [vmem:[%s488 + $0x6c] sm:$0xf] %v2084
        %2149 = vst [vmem:[%s488 + $0x70] sm:$0xf] %v2085
        %2150 = vst [vmem:[%s488 + $0x74] sm:$0xf] %v2086
        %2151 = vst [vmem:[%s488 + $0x78] sm:$0xf] %v2087
        %2152 = vst [vmem:[%s488 + $0x7c] sm:$0xf] %v2088
        %v2169 = vunpack.c.l.b16 %v1978
        %v2170 = vunpack.c.h.b16 %v1978
        %v2171 = vunpack.c.l.b16 %v1980
        %v2172 = vunpack.c.h.b16 %v1980
        %v2173 = vunpack.c.l.b16 %v1982
        %v2174 = vunpack.c.h.b16 %v1982
        %v2175 = vunpack.c.l.b16 %v1984
        %v2176 = vunpack.c.h.b16 %v1984
        %v2177 = vunpack.c.l.b16 %v1986
        %v2178 = vunpack.c.h.b16 %v1986
        %v2179 = vunpack.c.l.b16 %v1988
        %v2180 = vunpack.c.h.b16 %v1988
        %v2181 = vunpack.c.l.b16 %v1990
        %v2182 = vunpack.c.h.b16 %v1990
        %v2183 = vunpack.c.l.b16 %v1992
        %v2184 = vunpack.c.h.b16 %v1992
        %v2185 = vunpack.c.l.b16 %v1994
        %v2186 = vunpack.c.h.b16 %v1994
        %v2187 = vunpack.c.l.b16 %v1996
        %v2188 = vunpack.c.h.b16 %v1996
        %v2189 = vunpack.c.l.b16 %v1998
        %v2190 = vunpack.c.h.b16 %v1998
        %v2191 = vunpack.c.l.b16 %v2000
        %v2192 = vunpack.c.h.b16 %v2000
        %v2193 = vunpack.c.l.b16 %v2002
        %v2194 = vunpack.c.h.b16 %v2002
        %v2195 = vunpack.c.l.b16 %v2004
        %v2196 = vunpack.c.h.b16 %v2004
        %v2197 = vunpack.c.l.b16 %v2006
        %v2198 = vunpack.c.h.b16 %v2006
        %v2199 = vunpack.c.l.b16 %v2008
        %v2200 = vunpack.c.h.b16 %v2008
        %v2201 = vpack.c.b16 %v2169, %v2169
        %v2202 = vpack.c.b16 %v2170, %v2170
        %v2203 = vpack.c.b16 %v2171, %v2171
        %v2204 = vpack.c.b16 %v2172, %v2172
        %v2205 = vpack.c.b16 %v2173, %v2173
        %v2206 = vpack.c.b16 %v2174, %v2174
        %v2207 = vpack.c.b16 %v2175, %v2175
        %v2208 = vpack.c.b16 %v2176, %v2176
        %v2209 = vpack.c.b16 %v2177, %v2177
        %v2210 = vpack.c.b16 %v2178, %v2178
        %v2211 = vpack.c.b16 %v2179, %v2179
        %v2212 = vpack.c.b16 %v2180, %v2180
        %v2213 = vpack.c.b16 %v2181, %v2181
        %v2214 = vpack.c.b16 %v2182, %v2182
        %v2215 = vpack.c.b16 %v2183, %v2183
        %v2216 = vpack.c.b16 %v2184, %v2184
        %v2217 = vpack.c.b16 %v2185, %v2185
        %v2218 = vpack.c.b16 %v2186, %v2186
        %v2219 = vpack.c.b16 %v2187, %v2187
        %v2220 = vpack.c.b16 %v2188, %v2188
        %v2221 = vpack.c.b16 %v2189, %v2189
        %v2222 = vpack.c.b16 %v2190, %v2190
        %v2223 = vpack.c.b16 %v2191, %v2191
        %v2224 = vpack.c.b16 %v2192, %v2192
        %v2225 = vpack.c.b16 %v2193, %v2193
        %v2226 = vpack.c.b16 %v2194, %v2194
        %v2227 = vpack.c.b16 %v2195, %v2195
        %v2228 = vpack.c.b16 %v2196, %v2196
        %v2229 = vpack.c.b16 %v2197, %v2197
        %v2230 = vpack.c.b16 %v2198, %v2198
        %v2231 = vpack.c.b16 %v2199, %v2199
        %v2232 = vpack.c.b16 %v2200, %v2200
        %s2265 = scalar_lea.vmem %s488, 128 [#allocation14]
        %2266 = vst [vmem:[%s2265] sm:$0xf] %v2201
        %2267 = vst [vmem:[%s2265 + $0x4] sm:$0xf] %v2202
        %2268 = vst [vmem:[%s2265 + $0x8] sm:$0xf] %v2203
        %2269 = vst [vmem:[%s2265 + $0xc] sm:$0xf] %v2204
        %2270 = vst [vmem:[%s2265 + $0x10] sm:$0xf] %v2205
        %2271 = vst [vmem:[%s2265 + $0x14] sm:$0xf] %v2206
        %2272 = vst [vmem:[%s2265 + $0x18] sm:$0xf] %v2207
        %2273 = vst [vmem:[%s2265 + $0x1c] sm:$0xf] %v2208
        %2274 = vst [vmem:[%s2265 + $0x20] sm:$0xf] %v2209
        %2275 = vst [vmem:[%s2265 + $0x24] sm:$0xf] %v2210
        %2276 = vst [vmem:[%s2265 + $0x28] sm:$0xf] %v2211
        %2277 = vst [vmem:[%s2265 + $0x2c] sm:$0xf] %v2212
        %2278 = vst [vmem:[%s2265 + $0x30] sm:$0xf] %v2213
        %2279 = vst [vmem:[%s2265 + $0x34] sm:$0xf] %v2214
        %2280 = vst [vmem:[%s2265 + $0x38] sm:$0xf] %v2215
        %2281 = vst [vmem:[%s2265 + $0x3c] sm:$0xf] %v2216
        %2282 = vst [vmem:[%s2265 + $0x40] sm:$0xf] %v2217
        %2283 = vst [vmem:[%s2265 + $0x44] sm:$0xf] %v2218
        %2284 = vst [vmem:[%s2265 + $0x48] sm:$0xf] %v2219
        %2285 = vst [vmem:[%s2265 + $0x4c] sm:$0xf] %v2220
        %2286 = vst [vmem:[%s2265 + $0x50] sm:$0xf] %v2221
        %2287 = vst [vmem:[%s2265 + $0x54] sm:$0xf] %v2222
        %2288 = vst [vmem:[%s2265 + $0x58] sm:$0xf] %v2223
        %2289 = vst [vmem:[%s2265 + $0x5c] sm:$0xf] %v2224
        %2290 = vst [vmem:[%s2265 + $0x60] sm:$0xf] %v2225
        %2291 = vst [vmem:[%s2265 + $0x64] sm:$0xf] %v2226
        %2292 = vst [vmem:[%s2265 + $0x68] sm:$0xf] %v2227
        %2293 = vst [vmem:[%s2265 + $0x6c] sm:$0xf] %v2228
        %2294 = vst [vmem:[%s2265 + $0x70] sm:$0xf] %v2229
        %2295 = vst [vmem:[%s2265 + $0x74] sm:$0xf] %v2230
        %2296 = vst [vmem:[%s2265 + $0x78] sm:$0xf] %v2231
        %2297 = vst [vmem:[%s2265 + $0x7c] sm:$0xf] %v2232
        %v2298 = vld [vmem:[%s431] sm:$0xff]
        %v2299 = vld [vmem:[%s431 + $0x8] sm:$0xff]
        %v2300 = vld [vmem:[%s431 + $0x10] sm:$0xff]
        %v2301 = vld [vmem:[%s431 + $0x18] sm:$0xff]
        %v2302 = vld [vmem:[%s431 + $0x20] sm:$0xff]
        %v2303 = vld [vmem:[%s431 + $0x28] sm:$0xff]
        %v2304 = vld [vmem:[%s431 + $0x30] sm:$0xff]
        %v2305 = vld [vmem:[%s431 + $0x38] sm:$0xff]
        %v2306 = vld [vmem:[%s431 + $0x40] sm:$0xff]
        %v2307 = vld [vmem:[%s431 + $0x48] sm:$0xff]
        %v2308 = vld [vmem:[%s431 + $0x50] sm:$0xff]
        %v2309 = vld [vmem:[%s431 + $0x58] sm:$0xff]
        %v2310 = vld [vmem:[%s431 + $0x60] sm:$0xff]
        %v2311 = vld [vmem:[%s431 + $0x68] sm:$0xff]
        %v2312 = vld [vmem:[%s431 + $0x70] sm:$0xff]
        %v2313 = vld [vmem:[%s431 + $0x78] sm:$0xff]
        %v2314 = vld [vmem:[%s431 + $0x80] sm:$0xff]
        %v2315 = vld [vmem:[%s431 + $0x88] sm:$0xff]
        %v2316 = vld [vmem:[%s431 + $0x90] sm:$0xff]
        %v2317 = vld [vmem:[%s431 + $0x98] sm:$0xff]
        %v2318 = vld [vmem:[%s431 + $0xa0] sm:$0xff]
        %v2319 = vld [vmem:[%s431 + $0xa8] sm:$0xff]
        %v2320 = vld [vmem:[%s431 + $0xb0] sm:$0xff]
        %v2321 = vld [vmem:[%s431 + $0xb8] sm:$0xff]
        %v2322 = vld [vmem:[%s431 + $0xc0] sm:$0xff]
        %v2323 = vld [vmem:[%s431 + $0xc8] sm:$0xff]
        %v2324 = vld [vmem:[%s431 + $0xd0] sm:$0xff]
        %v2325 = vld [vmem:[%s431 + $0xd8] sm:$0xff]
        %v2326 = vld [vmem:[%s431 + $0xe0] sm:$0xff]
        %v2327 = vld [vmem:[%s431 + $0xe8] sm:$0xff]
        %v2328 = vld [vmem:[%s431 + $0xf0] sm:$0xff]
        %v2329 = vld [vmem:[%s431 + $0xf8] sm:$0xff]
        %v2330 = vld [vmem:[#allocation11] sm:$0xff]
        %v2331 = vld [vmem:[#allocation11 + $0x8] sm:$0xff]
        %v2332 = vld [vmem:[#allocation11 + $0x10] sm:$0xff]
        %v2333 = vld [vmem:[#allocation11 + $0x18] sm:$0xff]
        %v2334 = vld [vmem:[#allocation11 + $0x20] sm:$0xff]
        %v2335 = vld [vmem:[#allocation11 + $0x28] sm:$0xff]
        %v2336 = vld [vmem:[#allocation11 + $0x30] sm:$0xff]
        %v2337 = vld [vmem:[#allocation11 + $0x38] sm:$0xff]
        %v2338 = vld [vmem:[#allocation11 + $0x40] sm:$0xff]
        %v2339 = vld [vmem:[#allocation11 + $0x48] sm:$0xff]
        %v2340 = vld [vmem:[#allocation11 + $0x50] sm:$0xff]
        %v2341 = vld [vmem:[#allocation11 + $0x58] sm:$0xff]
        %v2342 = vld [vmem:[#allocation11 + $0x60] sm:$0xff]
        %v2343 = vld [vmem:[#allocation11 + $0x68] sm:$0xff]
        %v2344 = vld [vmem:[#allocation11 + $0x70] sm:$0xff]
        %v2345 = vld [vmem:[#allocation11 + $0x78] sm:$0xff]
        %v2346 = vld [vmem:[#allocation11 + $0x80] sm:$0xff]
        %v2347 = vld [vmem:[#allocation11 + $0x88] sm:$0xff]
        %v2348 = vld [vmem:[#allocation11 + $0x90] sm:$0xff]
        %v2349 = vld [vmem:[#allocation11 + $0x98] sm:$0xff]
        %v2350 = vld [vmem:[#allocation11 + $0xa0] sm:$0xff]
        %v2351 = vld [vmem:[#allocation11 + $0xa8] sm:$0xff]
        %v2352 = vld [vmem:[#allocation11 + $0xb0] sm:$0xff]
        %v2353 = vld [vmem:[#allocation11 + $0xb8] sm:$0xff]
        %v2354 = vld [vmem:[#allocation11 + $0xc0] sm:$0xff]
        %v2355 = vld [vmem:[#allocation11 + $0xc8] sm:$0xff]
        %v2356 = vld [vmem:[#allocation11 + $0xd0] sm:$0xff]
        %v2357 = vld [vmem:[#allocation11 + $0xd8] sm:$0xff]
        %v2358 = vld [vmem:[#allocation11 + $0xe0] sm:$0xff]
        %v2359 = vld [vmem:[#allocation11 + $0xe8] sm:$0xff]
        %v2360 = vld [vmem:[#allocation11 + $0xf0] sm:$0xff]
        %v2361 = vld [vmem:[#allocation11 + $0xf8] sm:$0xff]
        %v2394 = vunpack.c.l.b16 %v2298
        %v2395 = vunpack.c.h.b16 %v2298
        %v2396 = vunpack.c.l.b16 %v2299
        %v2397 = vunpack.c.h.b16 %v2299
        %v2398 = vunpack.c.l.b16 %v2300
        %v2399 = vunpack.c.h.b16 %v2300
        %v2400 = vunpack.c.l.b16 %v2301
        %v2401 = vunpack.c.h.b16 %v2301
        %v2402 = vunpack.c.l.b16 %v2302
        %v2403 = vunpack.c.h.b16 %v2302
        %v2404 = vunpack.c.l.b16 %v2303
        %v2405 = vunpack.c.h.b16 %v2303
        %v2406 = vunpack.c.l.b16 %v2304
        %v2407 = vunpack.c.h.b16 %v2304
        %v2408 = vunpack.c.l.b16 %v2305
        %v2409 = vunpack.c.h.b16 %v2305
        %v2410 = vunpack.c.l.b16 %v2306
        %v2411 = vunpack.c.h.b16 %v2306
        %v2412 = vunpack.c.l.b16 %v2307
        %v2413 = vunpack.c.h.b16 %v2307
        %v2414 = vunpack.c.l.b16 %v2308
        %v2415 = vunpack.c.h.b16 %v2308
        %v2416 = vunpack.c.l.b16 %v2309
        %v2417 = vunpack.c.h.b16 %v2309
        %v2418 = vunpack.c.l.b16 %v2310
        %v2419 = vunpack.c.h.b16 %v2310
        %v2420 = vunpack.c.l.b16 %v2311
        %v2421 = vunpack.c.h.b16 %v2311
        %v2422 = vunpack.c.l.b16 %v2312
        %v2423 = vunpack.c.h.b16 %v2312
        %v2424 = vunpack.c.l.b16 %v2313
        %v2425 = vunpack.c.h.b16 %v2313
        %v2426 = vunpack.c.l.b16 %v2314
        %v2427 = vunpack.c.h.b16 %v2314
        %v2428 = vunpack.c.l.b16 %v2315
        %v2429 = vunpack.c.h.b16 %v2315
        %v2430 = vunpack.c.l.b16 %v2316
        %v2431 = vunpack.c.h.b16 %v2316
        %v2432 = vunpack.c.l.b16 %v2317
        %v2433 = vunpack.c.h.b16 %v2317
        %v2434 = vunpack.c.l.b16 %v2318
        %v2435 = vunpack.c.h.b16 %v2318
        %v2436 = vunpack.c.l.b16 %v2319
        %v2437 = vunpack.c.h.b16 %v2319
        %v2438 = vunpack.c.l.b16 %v2320
        %v2439 = vunpack.c.h.b16 %v2320
        %v2440 = vunpack.c.l.b16 %v2321
        %v2441 = vunpack.c.h.b16 %v2321
        %v2442 = vunpack.c.l.b16 %v2322
        %v2443 = vunpack.c.h.b16 %v2322
        %v2444 = vunpack.c.l.b16 %v2323
        %v2445 = vunpack.c.h.b16 %v2323
        %v2446 = vunpack.c.l.b16 %v2324
        %v2447 = vunpack.c.h.b16 %v2324
        %v2448 = vunpack.c.l.b16 %v2325
        %v2449 = vunpack.c.h.b16 %v2325
        %v2450 = vunpack.c.l.b16 %v2326
        %v2451 = vunpack.c.h.b16 %v2326
        %v2452 = vunpack.c.l.b16 %v2327
        %v2453 = vunpack.c.h.b16 %v2327
        %v2454 = vunpack.c.l.b16 %v2328
        %v2455 = vunpack.c.h.b16 %v2328
        %v2456 = vunpack.c.l.b16 %v2329
        %v2457 = vunpack.c.h.b16 %v2329
        %v2458 = vpack.c.b16 %v2396, %v2394
        %v2459 = vpack.c.b16 %v2397, %v2395
        %v2460 = vpack.c.b16 %v2400, %v2398
        %v2461 = vpack.c.b16 %v2401, %v2399
        %v2462 = vpack.c.b16 %v2404, %v2402
        %v2463 = vpack.c.b16 %v2405, %v2403
        %v2464 = vpack.c.b16 %v2408, %v2406
        %v2465 = vpack.c.b16 %v2409, %v2407
        %v2466 = vpack.c.b16 %v2412, %v2410
        %v2467 = vpack.c.b16 %v2413, %v2411
        %v2468 = vpack.c.b16 %v2416, %v2414
        %v2469 = vpack.c.b16 %v2417, %v2415
        %v2470 = vpack.c.b16 %v2420, %v2418
        %v2471 = vpack.c.b16 %v2421, %v2419
        %v2472 = vpack.c.b16 %v2424, %v2422
        %v2473 = vpack.c.b16 %v2425, %v2423
        %v2474 = vpack.c.b16 %v2428, %v2426
        %v2475 = vpack.c.b16 %v2429, %v2427
        %v2476 = vpack.c.b16 %v2432, %v2430
        %v2477 = vpack.c.b16 %v2433, %v2431
        %v2478 = vpack.c.b16 %v2436, %v2434
        %v2479 = vpack.c.b16 %v2437, %v2435
        %v2480 = vpack.c.b16 %v2440, %v2438
        %v2481 = vpack.c.b16 %v2441, %v2439
        %v2482 = vpack.c.b16 %v2444, %v2442
        %v2483 = vpack.c.b16 %v2445, %v2443
        %v2484 = vpack.c.b16 %v2448, %v2446
        %v2485 = vpack.c.b16 %v2449, %v2447
        %v2486 = vpack.c.b16 %v2452, %v2450
        %v2487 = vpack.c.b16 %v2453, %v2451
        %v2488 = vpack.c.b16 %v2456, %v2454
        %v2489 = vpack.c.b16 %v2457, %v2455
        %v2554 = vunpack.c.l.b16 %v2330
        %v2555 = vunpack.c.h.b16 %v2330
        %v2556 = vunpack.c.l.b16 %v2331
        %v2557 = vunpack.c.h.b16 %v2331
        %v2558 = vunpack.c.l.b16 %v2332
        %v2559 = vunpack.c.h.b16 %v2332
        %v2560 = vunpack.c.l.b16 %v2333
        %v2561 = vunpack.c.h.b16 %v2333
        %v2562 = vunpack.c.l.b16 %v2334
        %v2563 = vunpack.c.h.b16 %v2334
        %v2564 = vunpack.c.l.b16 %v2335
        %v2565 = vunpack.c.h.b16 %v2335
        %v2566 = vunpack.c.l.b16 %v2336
        %v2567 = vunpack.c.h.b16 %v2336
        %v2568 = vunpack.c.l.b16 %v2337
        %v2569 = vunpack.c.h.b16 %v2337
        %v2570 = vunpack.c.l.b16 %v2338
        %v2571 = vunpack.c.h.b16 %v2338
        %v2572 = vunpack.c.l.b16 %v2339
        %v2573 = vunpack.c.h.b16 %v2339
        %v2574 = vunpack.c.l.b16 %v2340
        %v2575 = vunpack.c.h.b16 %v2340
        %v2576 = vunpack.c.l.b16 %v2341
        %v2577 = vunpack.c.h.b16 %v2341
        %v2578 = vunpack.c.l.b16 %v2342
        %v2579 = vunpack.c.h.b16 %v2342
        %v2580 = vunpack.c.l.b16 %v2343
        %v2581 = vunpack.c.h.b16 %v2343
        %v2582 = vunpack.c.l.b16 %v2344
        %v2583 = vunpack.c.h.b16 %v2344
        %v2584 = vunpack.c.l.b16 %v2345
        %v2585 = vunpack.c.h.b16 %v2345
        %v2586 = vunpack.c.l.b16 %v2346
        %v2587 = vunpack.c.h.b16 %v2346
        %v2588 = vunpack.c.l.b16 %v2347
        %v2589 = vunpack.c.h.b16 %v2347
        %v2590 = vunpack.c.l.b16 %v2348
        %v2591 = vunpack.c.h.b16 %v2348
        %v2592 = vunpack.c.l.b16 %v2349
        %v2593 = vunpack.c.h.b16 %v2349
        %v2594 = vunpack.c.l.b16 %v2350
        %v2595 = vunpack.c.h.b16 %v2350
        %v2596 = vunpack.c.l.b16 %v2351
        %v2597 = vunpack.c.h.b16 %v2351
        %v2598 = vunpack.c.l.b16 %v2352
        %v2599 = vunpack.c.h.b16 %v2352
        %v2600 = vunpack.c.l.b16 %v2353
        %v2601 = vunpack.c.h.b16 %v2353
        %v2602 = vunpack.c.l.b16 %v2354
        %v2603 = vunpack.c.h.b16 %v2354
        %v2604 = vunpack.c.l.b16 %v2355
        %v2605 = vunpack.c.h.b16 %v2355
        %v2606 = vunpack.c.l.b16 %v2356
        %v2607 = vunpack.c.h.b16 %v2356
        %v2608 = vunpack.c.l.b16 %v2357
        %v2609 = vunpack.c.h.b16 %v2357
        %v2610 = vunpack.c.l.b16 %v2358
        %v2611 = vunpack.c.h.b16 %v2358
        %v2612 = vunpack.c.l.b16 %v2359
        %v2613 = vunpack.c.h.b16 %v2359
        %v2614 = vunpack.c.l.b16 %v2360
        %v2615 = vunpack.c.h.b16 %v2360
        %v2616 = vunpack.c.l.b16 %v2361
        %v2617 = vunpack.c.h.b16 %v2361
        %v2618 = vpack.c.b16 %v2556, %v2554
        %v2619 = vpack.c.b16 %v2557, %v2555
        %v2620 = vpack.c.b16 %v2560, %v2558
        %v2621 = vpack.c.b16 %v2561, %v2559
        %v2622 = vpack.c.b16 %v2564, %v2562
        %v2623 = vpack.c.b16 %v2565, %v2563
        %v2624 = vpack.c.b16 %v2568, %v2566
        %v2625 = vpack.c.b16 %v2569, %v2567
        %v2626 = vpack.c.b16 %v2572, %v2570
        %v2627 = vpack.c.b16 %v2573, %v2571
        %v2628 = vpack.c.b16 %v2576, %v2574
        %v2629 = vpack.c.b16 %v2577, %v2575
        %v2630 = vpack.c.b16 %v2580, %v2578
        %v2631 = vpack.c.b16 %v2581, %v2579
        %v2632 = vpack.c.b16 %v2584, %v2582
        %v2633 = vpack.c.b16 %v2585, %v2583
        %v2634 = vpack.c.b16 %v2588, %v2586
        %v2635 = vpack.c.b16 %v2589, %v2587
        %v2636 = vpack.c.b16 %v2592, %v2590
        %v2637 = vpack.c.b16 %v2593, %v2591
        %v2638 = vpack.c.b16 %v2596, %v2594
        %v2639 = vpack.c.b16 %v2597, %v2595
        %v2640 = vpack.c.b16 %v2600, %v2598
        %v2641 = vpack.c.b16 %v2601, %v2599
        %v2642 = vpack.c.b16 %v2604, %v2602
        %v2643 = vpack.c.b16 %v2605, %v2603
        %v2644 = vpack.c.b16 %v2608, %v2606
        %v2645 = vpack.c.b16 %v2609, %v2607
        %v2646 = vpack.c.b16 %v2612, %v2610
        %v2647 = vpack.c.b16 %v2613, %v2611
        %v2648 = vpack.c.b16 %v2616, %v2614
        %v2649 = vpack.c.b16 %v2617, %v2615
        %2682 = vmatprep.subr.bf16.mxu0 %v2619
        %2683 = vmatpush1.bf16.msra.mxu0 %v2618
        %2684 = vmatprep.subr.bf16.mxu0 %v2621
        %2685 = vmatpush1.bf16.msra.mxu0 %v2620
        %2686 = vmatprep.subr.bf16.mxu0 %v2623
        %2687 = vmatpush1.bf16.msra.mxu0 %v2622
        %2688 = vmatprep.subr.bf16.mxu0 %v2625
        %2689 = vmatpush1.bf16.msra.mxu0 %v2624
        %2690 = vmatprep.subr.bf16.mxu0 %v2627
        %2691 = vmatpush1.bf16.msra.mxu0 %v2626
        %2692 = vmatprep.subr.bf16.mxu0 %v2629
        %2693 = vmatpush1.bf16.msra.mxu0 %v2628
        %2694 = vmatprep.subr.bf16.mxu0 %v2631
        %2695 = vmatpush1.bf16.msra.mxu0 %v2630
        %2696 = vmatprep.subr.bf16.mxu0 %v2633
        %2697 = vmatpush1.bf16.msra.mxu0 %v2632
        %2698 = vmatprep.subr.bf16.mxu0 %v2635
        %2699 = vmatpush1.bf16.msra.mxu0 %v2634
        %2700 = vmatprep.subr.bf16.mxu0 %v2637
        %2701 = vmatpush1.bf16.msra.mxu0 %v2636
        %2702 = vmatprep.subr.bf16.mxu0 %v2639
        %2703 = vmatpush1.bf16.msra.mxu0 %v2638
        %2704 = vmatprep.subr.bf16.mxu0 %v2641
        %2705 = vmatpush1.bf16.msra.mxu0 %v2640
        %2706 = vmatprep.subr.bf16.mxu0 %v2643
        %2707 = vmatpush1.bf16.msra.mxu0 %v2642
        %2708 = vmatprep.subr.bf16.mxu0 %v2645
        %2709 = vmatpush1.bf16.msra.mxu0 %v2644
        %2710 = vmatprep.subr.bf16.mxu0 %v2647
        %2711 = vmatpush1.bf16.msra.mxu0 %v2646
        %2712 = vmatprep.subr.bf16.mxu0 %v2649
        %2713 = vmatpush1.bf16.msra.mxu0 %v2648
        %2714 = vmatprep.mubr.bf16.mxu0 %v2459
        %2715 = vmatmul.mubr.bf16.gmra.mrb[0].mxu0 %v2458
        %v2716 = vpop.f32.mrb[0].mxu0
        %v2717 = vadd.f32 0.0, %v2716
        %v2718 = vpop.f32.mrb[0].mxu0
        %v2719 = vadd.f32 0.0, %v2718
        %v2720 = vpop.f32.mrb[0].mxu0
        %v2721 = vadd.f32 0.0, %v2720
        %v2722 = vpop.f32.mrb[0].mxu0
        %v2723 = vadd.f32 0.0, %v2722
        %2724 = vmatprep.mubr.bf16.mxu0 %v2461
        %2725 = vmatmul.mubr.bf16.gmra.mrb[0].mxu0 %v2460
        %v2726 = vpop.f32.mrb[0].mxu0
        %v2727 = vadd.f32 0.0, %v2726
        %v2728 = vpop.f32.mrb[0].mxu0
        %v2729 = vadd.f32 0.0, %v2728
        %v2730 = vpop.f32.mrb[0].mxu0
        %v2731 = vadd.f32 0.0, %v2730
        %v2732 = vpop.f32.mrb[0].mxu0
        %v2733 = vadd.f32 0.0, %v2732
        %2734 = vmatprep.mubr.bf16.mxu0 %v2463
        %2735 = vmatmul.mubr.bf16.gmra.mrb[0].mxu0 %v2462
        %v2736 = vpop.f32.mrb[0].mxu0
        %v2737 = vadd.f32 0.0, %v2736
        %v2738 = vpop.f32.mrb[0].mxu0
        %v2739 = vadd.f32 0.0, %v2738
        %v2740 = vpop.f32.mrb[0].mxu0
        %v2741 = vadd.f32 0.0, %v2740
        %v2742 = vpop.f32.mrb[0].mxu0
        %v2743 = vadd.f32 0.0, %v2742
        %2744 = vmatprep.mubr.bf16.mxu0 %v2465
        %2745 = vmatmul.mubr.bf16.gmra.mrb[0].mxu0 %v2464
        %v2746 = vpop.f32.mrb[0].mxu0
        %v2747 = vadd.f32 0.0, %v2746
        %v2748 = vpop.f32.mrb[0].mxu0
        %v2749 = vadd.f32 0.0, %v2748
        %v2750 = vpop.f32.mrb[0].mxu0
        %v2751 = vadd.f32 0.0, %v2750
        %v2752 = vpop.f32.mrb[0].mxu0
        %v2753 = vadd.f32 0.0, %v2752
        %2754 = vmatprep.mubr.bf16.mxu0 %v2467
        %2755 = vmatmul.mubr.bf16.gmra.mrb[0].mxu0 %v2466
        %v2756 = vpop.f32.mrb[0].mxu0
        %v2757 = vadd.f32 0.0, %v2756
        %v2758 = vpop.f32.mrb[0].mxu0
        %v2759 = vadd.f32 0.0, %v2758
        %v2760 = vpop.f32.mrb[0].mxu0
        %v2761 = vadd.f32 0.0, %v2760
        %v2762 = vpop.f32.mrb[0].mxu0
        %v2763 = vadd.f32 0.0, %v2762
        %2764 = vmatprep.mubr.bf16.mxu0 %v2469
        %2765 = vmatmul.mubr.bf16.gmra.mrb[0].mxu0 %v2468
        %v2766 = vpop.f32.mrb[0].mxu0
        %v2767 = vadd.f32 0.0, %v2766
        %v2768 = vpop.f32.mrb[0].mxu0
        %v2769 = vadd.f32 0.0, %v2768
        %v2770 = vpop.f32.mrb[0].mxu0
        %v2771 = vadd.f32 0.0, %v2770
        %v2772 = vpop.f32.mrb[0].mxu0
        %v2773 = vadd.f32 0.0, %v2772
        %2774 = vmatprep.mubr.bf16.mxu0 %v2471
        %2775 = vmatmul.mubr.bf16.gmra.mrb[0].mxu0 %v2470
        %v2776 = vpop.f32.mrb[0].mxu0
        %v2777 = vadd.f32 0.0, %v2776
        %v2778 = vpop.f32.mrb[0].mxu0
        %v2779 = vadd.f32 0.0, %v2778
        %v2780 = vpop.f32.mrb[0].mxu0
        %v2781 = vadd.f32 0.0, %v2780
        %v2782 = vpop.f32.mrb[0].mxu0
        %v2783 = vadd.f32 0.0, %v2782
        %2784 = vmatprep.mubr.bf16.mxu0 %v2473
        %2785 = vmatmul.mubr.bf16.gmra.mrb[0].mxu0 %v2472
        %v2786 = vpop.f32.mrb[0].mxu0
        %v2787 = vadd.f32 0.0, %v2786
        %v2788 = vpop.f32.mrb[0].mxu0
        %v2789 = vadd.f32 0.0, %v2788
        %v2790 = vpop.f32.mrb[0].mxu0
        %v2791 = vadd.f32 0.0, %v2790
        %v2792 = vpop.f32.mrb[0].mxu0
        %v2793 = vadd.f32 0.0, %v2792
        %2794 = vmatprep.mubr.bf16.mxu0 %v2475
        %2795 = vmatmul.mubr.bf16.gmra.mrb[0].mxu0 %v2474
        %v2796 = vpop.f32.mrb[0].mxu0
        %v2797 = vadd.f32 0.0, %v2796
        %v2798 = vpop.f32.mrb[0].mxu0
        %v2799 = vadd.f32 0.0, %v2798
        %v2800 = vpop.f32.mrb[0].mxu0
        %v2801 = vadd.f32 0.0, %v2800
        %v2802 = vpop.f32.mrb[0].mxu0
        %v2803 = vadd.f32 0.0, %v2802
        %2804 = vmatprep.mubr.bf16.mxu0 %v2477
        %2805 = vmatmul.mubr.bf16.gmra.mrb[0].mxu0 %v2476
        %v2806 = vpop.f32.mrb[0].mxu0
        %v2807 = vadd.f32 0.0, %v2806
        %v2808 = vpop.f32.mrb[0].mxu0
        %v2809 = vadd.f32 0.0, %v2808
        %v2810 = vpop.f32.mrb[0].mxu0
        %v2811 = vadd.f32 0.0, %v2810
        %v2812 = vpop.f32.mrb[0].mxu0
        %v2813 = vadd.f32 0.0, %v2812
        %2814 = vmatprep.mubr.bf16.mxu0 %v2479
        %2815 = vmatmul.mubr.bf16.gmra.mrb[0].mxu0 %v2478
        %v2816 = vpop.f32.mrb[0].mxu0
        %v2817 = vadd.f32 0.0, %v2816
        %v2818 = vpop.f32.mrb[0].mxu0
        %v2819 = vadd.f32 0.0, %v2818
        %v2820 = vpop.f32.mrb[0].mxu0
        %v2821 = vadd.f32 0.0, %v2820
        %v2822 = vpop.f32.mrb[0].mxu0
        %v2823 = vadd.f32 0.0, %v2822
        %2824 = vmatprep.mubr.bf16.mxu0 %v2481
        %2825 = vmatmul.mubr.bf16.gmra.mrb[0].mxu0 %v2480
        %v2826 = vpop.f32.mrb[0].mxu0
        %v2827 = vadd.f32 0.0, %v2826
        %v2828 = vpop.f32.mrb[0].mxu0
        %v2829 = vadd.f32 0.0, %v2828
        %v2830 = vpop.f32.mrb[0].mxu0
        %v2831 = vadd.f32 0.0, %v2830
        %v2832 = vpop.f32.mrb[0].mxu0
        %v2833 = vadd.f32 0.0, %v2832
        %2834 = vmatprep.mubr.bf16.mxu0 %v2483
        %2835 = vmatmul.mubr.bf16.gmra.mrb[0].mxu0 %v2482
        %v2836 = vpop.f32.mrb[0].mxu0
        %v2837 = vadd.f32 0.0, %v2836
        %v2838 = vpop.f32.mrb[0].mxu0
        %v2839 = vadd.f32 0.0, %v2838
        %v2840 = vpop.f32.mrb[0].mxu0
        %v2841 = vadd.f32 0.0, %v2840
        %v2842 = vpop.f32.mrb[0].mxu0
        %v2843 = vadd.f32 0.0, %v2842
        %2844 = vmatprep.mubr.bf16.mxu0 %v2485
        %2845 = vmatmul.mubr.bf16.gmra.mrb[0].mxu0 %v2484
        %v2846 = vpop.f32.mrb[0].mxu0
        %v2847 = vadd.f32 0.0, %v2846
        %v2848 = vpop.f32.mrb[0].mxu0
        %v2849 = vadd.f32 0.0, %v2848
        %v2850 = vpop.f32.mrb[0].mxu0
        %v2851 = vadd.f32 0.0, %v2850
        %v2852 = vpop.f32.mrb[0].mxu0
        %v2853 = vadd.f32 0.0, %v2852
        %2854 = vmatprep.mubr.bf16.mxu0 %v2487
        %2855 = vmatmul.mubr.bf16.gmra.mrb[0].mxu0 %v2486
        %v2856 = vpop.f32.mrb[0].mxu0
        %v2857 = vadd.f32 0.0, %v2856
        %v2858 = vpop.f32.mrb[0].mxu0
        %v2859 = vadd.f32 0.0, %v2858
        %v2860 = vpop.f32.mrb[0].mxu0
        %v2861 = vadd.f32 0.0, %v2860
        %v2862 = vpop.f32.mrb[0].mxu0
        %v2863 = vadd.f32 0.0, %v2862
        %2864 = vmatprep.mubr.bf16.mxu0 %v2489
        %2865 = vmatmul.mubr.bf16.gmra.mrb[0].mxu0 %v2488
        %v2866 = vpop.f32.mrb[0].mxu0
        %v2867 = vadd.f32 0.0, %v2866
        %v2868 = vpop.f32.mrb[0].mxu0
        %v2869 = vadd.f32 0.0, %v2868
        %v2870 = vpop.f32.mrb[0].mxu0
        %v2871 = vadd.f32 0.0, %v2870
        %v2872 = vpop.f32.mrb[0].mxu0
        %v2873 = vadd.f32 0.0, %v2872
        %2874 = vdwg.mxu0
        %v2875 = vpack.c.bf16 %v2721, %v2717
        %v2876 = vpack.c.bf16 %v2723, %v2719
        %v2877 = vpack.c.bf16 %v2731, %v2727
        %v2878 = vpack.c.bf16 %v2733, %v2729
        %v2879 = vpack.c.bf16 %v2741, %v2737
        %v2880 = vpack.c.bf16 %v2743, %v2739
        %v2881 = vpack.c.bf16 %v2751, %v2747
        %v2882 = vpack.c.bf16 %v2753, %v2749
        %v2883 = vpack.c.bf16 %v2761, %v2757
        %v2884 = vpack.c.bf16 %v2763, %v2759
        %v2885 = vpack.c.bf16 %v2771, %v2767
        %v2886 = vpack.c.bf16 %v2773, %v2769
        %v2887 = vpack.c.bf16 %v2781, %v2777
        %v2888 = vpack.c.bf16 %v2783, %v2779
        %v2889 = vpack.c.bf16 %v2791, %v2787
        %v2890 = vpack.c.bf16 %v2793, %v2789
        %v2891 = vpack.c.bf16 %v2801, %v2797
        %v2892 = vpack.c.bf16 %v2803, %v2799
        %v2893 = vpack.c.bf16 %v2811, %v2807
        %v2894 = vpack.c.bf16 %v2813, %v2809
        %v2895 = vpack.c.bf16 %v2821, %v2817
        %v2896 = vpack.c.bf16 %v2823, %v2819
        %v2897 = vpack.c.bf16 %v2831, %v2827
        %v2898 = vpack.c.bf16 %v2833, %v2829
        %v2899 = vpack.c.bf16 %v2841, %v2837
        %v2900 = vpack.c.bf16 %v2843, %v2839
        %v2901 = vpack.c.bf16 %v2851, %v2847
        %v2902 = vpack.c.bf16 %v2853, %v2849
        %v2903 = vpack.c.bf16 %v2861, %v2857
        %v2904 = vpack.c.bf16 %v2863, %v2859
        %v2905 = vpack.c.bf16 %v2871, %v2867
        %v2906 = vpack.c.bf16 %v2873, %v2869
        %v2923 = vunpack.c.l.b16 %v2875
        %v2924 = vunpack.c.h.b16 %v2875
        %v2925 = vunpack.c.l.b16 %v2877
        %v2926 = vunpack.c.h.b16 %v2877
        %v2927 = vunpack.c.l.b16 %v2879
        %v2928 = vunpack.c.h.b16 %v2879
        %v2929 = vunpack.c.l.b16 %v2881
        %v2930 = vunpack.c.h.b16 %v2881
        %v2931 = vunpack.c.l.b16 %v2883
        %v2932 = vunpack.c.h.b16 %v2883
        %v2933 = vunpack.c.l.b16 %v2885
        %v2934 = vunpack.c.h.b16 %v2885
        %v2935 = vunpack.c.l.b16 %v2887
        %v2936 = vunpack.c.h.b16 %v2887
        %v2937 = vunpack.c.l.b16 %v2889
        %v2938 = vunpack.c.h.b16 %v2889
        %v2939 = vunpack.c.l.b16 %v2891
        %v2940 = vunpack.c.h.b16 %v2891
        %v2941 = vunpack.c.l.b16 %v2893
        %v2942 = vunpack.c.h.b16 %v2893
        %v2943 = vunpack.c.l.b16 %v2895
        %v2944 = vunpack.c.h.b16 %v2895
        %v2945 = vunpack.c.l.b16 %v2897
        %v2946 = vunpack.c.h.b16 %v2897
        %v2947 = vunpack.c.l.b16 %v2899
        %v2948 = vunpack.c.h.b16 %v2899
        %v2949 = vunpack.c.l.b16 %v2901
        %v2950 = vunpack.c.h.b16 %v2901
        %v2951 = vunpack.c.l.b16 %v2903
        %v2952 = vunpack.c.h.b16 %v2903
        %v2953 = vunpack.c.l.b16 %v2905
        %v2954 = vunpack.c.h.b16 %v2905
        %v2955 = vpack.c.b16 %v2923, %v2923
        %v2956 = vpack.c.b16 %v2924, %v2924
        %v2957 = vpack.c.b16 %v2925, %v2925
        %v2958 = vpack.c.b16 %v2926, %v2926
        %v2959 = vpack.c.b16 %v2927, %v2927
        %v2960 = vpack.c.b16 %v2928, %v2928
        %v2961 = vpack.c.b16 %v2929, %v2929
        %v2962 = vpack.c.b16 %v2930, %v2930
        %v2963 = vpack.c.b16 %v2931, %v2931
        %v2964 = vpack.c.b16 %v2932, %v2932
        %v2965 = vpack.c.b16 %v2933, %v2933
        %v2966 = vpack.c.b16 %v2934, %v2934
        %v2967 = vpack.c.b16 %v2935, %v2935
        %v2968 = vpack.c.b16 %v2936, %v2936
        %v2969 = vpack.c.b16 %v2937, %v2937
        %v2970 = vpack.c.b16 %v2938, %v2938
        %v2971 = vpack.c.b16 %v2939, %v2939
        %v2972 = vpack.c.b16 %v2940, %v2940
        %v2973 = vpack.c.b16 %v2941, %v2941
        %v2974 = vpack.c.b16 %v2942, %v2942
        %v2975 = vpack.c.b16 %v2943, %v2943
        %v2976 = vpack.c.b16 %v2944, %v2944
        %v2977 = vpack.c.b16 %v2945, %v2945
        %v2978 = vpack.c.b16 %v2946, %v2946
        %v2979 = vpack.c.b16 %v2947, %v2947
        %v2980 = vpack.c.b16 %v2948, %v2948
        %v2981 = vpack.c.b16 %v2949, %v2949
        %v2982 = vpack.c.b16 %v2950, %v2950
        %v2983 = vpack.c.b16 %v2951, %v2951
        %v2984 = vpack.c.b16 %v2952, %v2952
        %v2985 = vpack.c.b16 %v2953, %v2953
        %v2986 = vpack.c.b16 %v2954, %v2954
        %3019 = vst [vmem:[%s495] sm:$0xf] %v2955
        %3020 = vst [vmem:[%s495 + $0x4] sm:$0xf] %v2956
        %3021 = vst [vmem:[%s495 + $0x8] sm:$0xf] %v2957
        %3022 = vst [vmem:[%s495 + $0xc] sm:$0xf] %v2958
        %3023 = vst [vmem:[%s495 + $0x10] sm:$0xf] %v2959
        %3024 = vst [vmem:[%s495 + $0x14] sm:$0xf] %v2960
        %3025 = vst [vmem:[%s495 + $0x18] sm:$0xf] %v2961
        %3026 = vst [vmem:[%s495 + $0x1c] sm:$0xf] %v2962
        %3027 = vst [vmem:[%s495 + $0x20] sm:$0xf] %v2963
        %3028 = vst [vmem:[%s495 + $0x24] sm:$0xf] %v2964
        %3029 = vst [vmem:[%s495 + $0x28] sm:$0xf] %v2965
        %3030 = vst [vmem:[%s495 + $0x2c] sm:$0xf] %v2966
        %3031 = vst [vmem:[%s495 + $0x30] sm:$0xf] %v2967
        %3032 = vst [vmem:[%s495 + $0x34] sm:$0xf] %v2968
        %3033 = vst [vmem:[%s495 + $0x38] sm:$0xf] %v2969
        %3034 = vst [vmem:[%s495 + $0x3c] sm:$0xf] %v2970
        %3035 = vst [vmem:[%s495 + $0x40] sm:$0xf] %v2971
        %3036 = vst [vmem:[%s495 + $0x44] sm:$0xf] %v2972
        %3037 = vst [vmem:[%s495 + $0x48] sm:$0xf] %v2973
        %3038 = vst [vmem:[%s495 + $0x4c] sm:$0xf] %v2974
        %3039 = vst [vmem:[%s495 + $0x50] sm:$0xf] %v2975
        %3040 = vst [vmem:[%s495 + $0x54] sm:$0xf] %v2976
        %3041 = vst [vmem:[%s495 + $0x58] sm:$0xf] %v2977
        %3042 = vst [vmem:[%s495 + $0x5c] sm:$0xf] %v2978
        %3043 = vst [vmem:[%s495 + $0x60] sm:$0xf] %v2979
        %3044 = vst [vmem:[%s495 + $0x64] sm:$0xf] %v2980
        %3045 = vst [vmem:[%s495 + $0x68] sm:$0xf] %v2981
        %3046 = vst [vmem:[%s495 + $0x6c] sm:$0xf] %v2982
        %3047 = vst [vmem:[%s495 + $0x70] sm:$0xf] %v2983
        %3048 = vst [vmem:[%s495 + $0x74] sm:$0xf] %v2984
        %3049 = vst [vmem:[%s495 + $0x78] sm:$0xf] %v2985
        %3050 = vst [vmem:[%s495 + $0x7c] sm:$0xf] %v2986
        %v3067 = vunpack.c.l.b16 %v2876
        %v3068 = vunpack.c.h.b16 %v2876
        %v3069 = vunpack.c.l.b16 %v2878
        %v3070 = vunpack.c.h.b16 %v2878
        %v3071 = vunpack.c.l.b16 %v2880
        %v3072 = vunpack.c.h.b16 %v2880
        %v3073 = vunpack.c.l.b16 %v2882
        %v3074 = vunpack.c.h.b16 %v2882
        %v3075 = vunpack.c.l.b16 %v2884
        %v3076 = vunpack.c.h.b16 %v2884
        %v3077 = vunpack.c.l.b16 %v2886
        %v3078 = vunpack.c.h.b16 %v2886
        %v3079 = vunpack.c.l.b16 %v2888
        %v3080 = vunpack.c.h.b16 %v2888
        %v3081 = vunpack.c.l.b16 %v2890
        %v3082 = vunpack.c.h.b16 %v2890
        %v3083 = vunpack.c.l.b16 %v2892
        %v3084 = vunpack.c.h.b16 %v2892
        %v3085 = vunpack.c.l.b16 %v2894
        %v3086 = vunpack.c.h.b16 %v2894
        %v3087 = vunpack.c.l.b16 %v2896
        %v3088 = vunpack.c.h.b16 %v2896
        %v3089 = vunpack.c.l.b16 %v2898
        %v3090 = vunpack.c.h.b16 %v2898
        %v3091 = vunpack.c.l.b16 %v2900
        %v3092 = vunpack.c.h.b16 %v2900
        %v3093 = vunpack.c.l.b16 %v2902
        %v3094 = vunpack.c.h.b16 %v2902
        %v3095 = vunpack.c.l.b16 %v2904
        %v3096 = vunpack.c.h.b16 %v2904
        %v3097 = vunpack.c.l.b16 %v2906
        %v3098 = vunpack.c.h.b16 %v2906
        %v3099 = vpack.c.b16 %v3067, %v3067
        %v3100 = vpack.c.b16 %v3068, %v3068
        %v3101 = vpack.c.b16 %v3069, %v3069
        %v3102 = vpack.c.b16 %v3070, %v3070
        %v3103 = vpack.c.b16 %v3071, %v3071
        %v3104 = vpack.c.b16 %v3072, %v3072
        %v3105 = vpack.c.b16 %v3073, %v3073
        %v3106 = vpack.c.b16 %v3074, %v3074
        %v3107 = vpack.c.b16 %v3075, %v3075
        %v3108 = vpack.c.b16 %v3076, %v3076
        %v3109 = vpack.c.b16 %v3077, %v3077
        %v3110 = vpack.c.b16 %v3078, %v3078
        %v3111 = vpack.c.b16 %v3079, %v3079
        %v3112 = vpack.c.b16 %v3080, %v3080
        %v3113 = vpack.c.b16 %v3081, %v3081
        %v3114 = vpack.c.b16 %v3082, %v3082
        %v3115 = vpack.c.b16 %v3083, %v3083
        %v3116 = vpack.c.b16 %v3084, %v3084
        %v3117 = vpack.c.b16 %v3085, %v3085
        %v3118 = vpack.c.b16 %v3086, %v3086
        %v3119 = vpack.c.b16 %v3087, %v3087
        %v3120 = vpack.c.b16 %v3088, %v3088
        %v3121 = vpack.c.b16 %v3089, %v3089
        %v3122 = vpack.c.b16 %v3090, %v3090
        %v3123 = vpack.c.b16 %v3091, %v3091
        %v3124 = vpack.c.b16 %v3092, %v3092
        %v3125 = vpack.c.b16 %v3093, %v3093
        %v3126 = vpack.c.b16 %v3094, %v3094
        %v3127 = vpack.c.b16 %v3095, %v3095
        %v3128 = vpack.c.b16 %v3096, %v3096
        %v3129 = vpack.c.b16 %v3097, %v3097
        %v3130 = vpack.c.b16 %v3098, %v3098
        %s3163 = scalar_lea.vmem %s495, 128 [#allocation16]
        %3164 = vst [vmem:[%s3163] sm:$0xf] %v3099
        %3165 = vst [vmem:[%s3163 + $0x4] sm:$0xf] %v3100
        %3166 = vst [vmem:[%s3163 + $0x8] sm:$0xf] %v3101
        %3167 = vst [vmem:[%s3163 + $0xc] sm:$0xf] %v3102
        %3168 = vst [vmem:[%s3163 + $0x10] sm:$0xf] %v3103
        %3169 = vst [vmem:[%s3163 + $0x14] sm:$0xf] %v3104
        %3170 = vst [vmem:[%s3163 + $0x18] sm:$0xf] %v3105
        %3171 = vst [vmem:[%s3163 + $0x1c] sm:$0xf] %v3106
        %3172 = vst [vmem:[%s3163 + $0x20] sm:$0xf] %v3107
        %3173 = vst [vmem:[%s3163 + $0x24] sm:$0xf] %v3108
        %3174 = vst [vmem:[%s3163 + $0x28] sm:$0xf] %v3109
        %3175 = vst [vmem:[%s3163 + $0x2c] sm:$0xf] %v3110
        %3176 = vst [vmem:[%s3163 + $0x30] sm:$0xf] %v3111
        %3177 = vst [vmem:[%s3163 + $0x34] sm:$0xf] %v3112
        %3178 = vst [vmem:[%s3163 + $0x38] sm:$0xf] %v3113
        %3179 = vst [vmem:[%s3163 + $0x3c] sm:$0xf] %v3114
        %3180 = vst [vmem:[%s3163 + $0x40] sm:$0xf] %v3115
        %3181 = vst [vmem:[%s3163 + $0x44] sm:$0xf] %v3116
        %3182 = vst [vmem:[%s3163 + $0x48] sm:$0xf] %v3117
        %3183 = vst [vmem:[%s3163 + $0x4c] sm:$0xf] %v3118
        %3184 = vst [vmem:[%s3163 + $0x50] sm:$0xf] %v3119
        %3185 = vst [vmem:[%s3163 + $0x54] sm:$0xf] %v3120
        %3186 = vst [vmem:[%s3163 + $0x58] sm:$0xf] %v3121
        %3187 = vst [vmem:[%s3163 + $0x5c] sm:$0xf] %v3122
        %3188 = vst [vmem:[%s3163 + $0x60] sm:$0xf] %v3123
        %3189 = vst [vmem:[%s3163 + $0x64] sm:$0xf] %v3124
        %3190 = vst [vmem:[%s3163 + $0x68] sm:$0xf] %v3125
        %3191 = vst [vmem:[%s3163 + $0x6c] sm:$0xf] %v3126
        %3192 = vst [vmem:[%s3163 + $0x70] sm:$0xf] %v3127
        %3193 = vst [vmem:[%s3163 + $0x74] sm:$0xf] %v3128
        %3194 = vst [vmem:[%s3163 + $0x78] sm:$0xf] %v3129
        %3195 = vst [vmem:[%s3163 + $0x7c] sm:$0xf] %v3130
        %s3196 = sand.u32 %s203, 1
        %s3197 = scalar_lea.sflag [#allocation4], %s3196
        %s3198 = sand.u32 %s203, 1
        %s3199 = smul.addr %s3198, 256
        %s3200 = scalar_lea.vmem [#allocation13], %s3199
        %s3201 = sand.u32 %s34, 1
        %s3202 = scalar_lea.sflag [#allocation15], %s3201
        %s3203 = sand.u32 %s231, 1
        %s3204 = smul.addr %s3203, 256
        %s3205 = scalar_lea.vmem [#allocation14], %s3204
        %s3206 = sand.u32 %s34, 1
        %s3207 = scalar_lea.sflag [#allocation15], %s3206
        %s3208 = sand.u32 %s259, 1
        %s3209 = smul.addr %s3208, 256
        %s3210 = scalar_lea.vmem [#allocation16], %s3209
        // Predicated region
        $region69: #{tpu_custom_call.1} parent=43 // pred_check
          %p3211 = pneg %p213
        $region70: #{tpu_custom_call.1} parent=43 // pred_check_branch
          %3213 = sbr.rel (%p3211) target = $region72
        $region71: #{tpu_custom_call.1} parent=43 // pred_region
          #allocation18 [shape = 'u32[6]{0}', space=smem, size = 0x18, scoped, tag = 'DMA stride descriptor']
          %s3214 = smul.u32 32, %s39
          %s3216 = ssub.s32 4096, 4096
          %3217 = vsyncadd %s3197, %s3216
          %s3218 = smul.addr %s38, 128
          %s3219 = sadd.s32 %s3214, %s3218
          %s3220 = smul.addr %s3219, 64
          %s3221 = scalar_lea.hbm %s6, %s3220
          %s3223 = sshll.u32 1, 14
          %s3224 = sxor.u32 4294967295, %s3223
          %s3227 = sshll.u32 7, 18
          %s3228 = sxor.u32 4294967295, %s3227
          %s3229 = sand.u32 0, %s3228
          %s3231 = sor.u32 %s3229, 0
          %s3233 = sshll.u32 3, 24
          %s3234 = sxor.u32 4294967295, %s3233
          %s3235 = sand.u32 %s3231, %s3234
          %s3237 = sor.u32 %s3235, 0
          %s3238 = sshll.u32 %s3200, 4
          %s3239 = int_to_ptr.vmem [resolvable:$true] %s3238
          %3245 = sst [smem:[#allocation18]] 2048
          %s3246 = scalar_lea.smem [#allocation18], 1
          %3247 = sst [smem:[%s3246]] 4096
          %s3248 = scalar_lea.smem [#allocation18], 2
          %3249 = sst [smem:[%s3248]] 32
          %s3250 = scalar_lea.smem [#allocation18], 3
          %3251 = sst [smem:[%s3250]] 64
          %s3252 = scalar_lea.smem [#allocation18], 4
          %3253 = sst [smem:[%s3252]] 64
          %s3254 = scalar_lea.smem [#allocation18], 5
          %3255 = sst [smem:[%s3254]] 4
          %3257 = dma.general %s3239, 4096, %s3221, %s3197, [#allocation17], [#allocation18], %s3237, 0
        $region72: #{tpu_custom_call.1} parent=43 // pred_fallthru
          _
        // Predicated region
        $region73: #{tpu_custom_call.1} parent=43 // pred_check
          %p3258 = pneg %p241
        $region74: #{tpu_custom_call.1} parent=43 // pred_check_branch
          %3260 = sbr.rel (%p3258) target = $region76
        $region75: #{tpu_custom_call.1} parent=43 // pred_region
          #allocation20 [shape = 'u32[6]{0}', space=smem, size = 0x18, scoped, tag = 'DMA stride descriptor']
          %s3261 = smul.u32 32, %s39
          %s3263 = ssub.s32 4096, 4096
          %3264 = vsyncadd %s3202, %s3263
          %s3265 = smul.addr %s38, 128
          %s3266 = sadd.s32 %s3261, %s3265
          %s3267 = smul.addr %s3266, 64
          %s3268 = scalar_lea.hbm %s7, %s3267
          %s3270 = sshll.u32 1, 14
          %s3271 = sxor.u32 4294967295, %s3270
          %s3274 = sshll.u32 7, 18
          %s3275 = sxor.u32 4294967295, %s3274
          %s3276 = sand.u32 0, %s3275
          %s3278 = sor.u32 %s3276, 0
          %s3280 = sshll.u32 3, 24
          %s3281 = sxor.u32 4294967295, %s3280
          %s3282 = sand.u32 %s3278, %s3281
          %s3284 = sor.u32 %s3282, 0
          %s3285 = sshll.u32 %s3205, 4
          %s3286 = int_to_ptr.vmem [resolvable:$true] %s3285
          %3292 = sst [smem:[#allocation20]] 2048
          %s3293 = scalar_lea.smem [#allocation20], 1
          %3294 = sst [smem:[%s3293]] 4096
          %s3295 = scalar_lea.smem [#allocation20], 2
          %3296 = sst [smem:[%s3295]] 32
          %s3297 = scalar_lea.smem [#allocation20], 3
          %3298 = sst [smem:[%s3297]] 64
          %s3299 = scalar_lea.smem [#allocation20], 4
          %3300 = sst [smem:[%s3299]] 64
          %s3301 = scalar_lea.smem [#allocation20], 5
          %3302 = sst [smem:[%s3301]] 4
          %3304 = dma.general %s3286, 4096, %s3268, %s3202, [#allocation19], [#allocation20], %s3284, 0
        $region76: #{tpu_custom_call.1} parent=43 // pred_fallthru
          _
        // Predicated region
        $region77: #{tpu_custom_call.1} parent=43 // pred_check
          %p3305 = pneg %p269
        $region78: #{tpu_custom_call.1} parent=43 // pred_check_branch
          %3307 = sbr.rel (%p3305) target = $region80
        $region79: #{tpu_custom_call.1} parent=43 // pred_region
          #allocation22 [shape = 'u32[6]{0}', space=smem, size = 0x18, scoped, tag = 'DMA stride descriptor']
          %s3308 = smul.u32 32, %s39
          %s3310 = ssub.s32 4096, 4096
          %3311 = vsyncadd %s3207, %s3310
          %s3312 = smul.addr %s38, 128
          %s3313 = sadd.s32 %s3308, %s3312
          %s3314 = smul.addr %s3313, 64
          %s3315 = scalar_lea.hbm %s8, %s3314
          %s3317 = sshll.u32 1, 14
          %s3318 = sxor.u32 4294967295, %s3317
          %s3321 = sshll.u32 7, 18
          %s3322 = sxor.u32 4294967295, %s3321
          %s3323 = sand.u32 0, %s3322
          %s3325 = sor.u32 %s3323, 0
          %s3327 = sshll.u32 3, 24
          %s3328 = sxor.u32 4294967295, %s3327
          %s3329 = sand.u32 %s3325, %s3328
          %s3331 = sor.u32 %s3329, 0
          %s3332 = sshll.u32 %s3210, 4
          %s3333 = int_to_ptr.vmem [resolvable:$true] %s3332
          %3339 = sst [smem:[#allocation22]] 2048
          %s3340 = scalar_lea.smem [#allocation22], 1
          %3341 = sst [smem:[%s3340]] 4096
          %s3342 = scalar_lea.smem [#allocation22], 2
          %3343 = sst [smem:[%s3342]] 32
          %s3344 = scalar_lea.smem [#allocation22], 3
          %3345 = sst [smem:[%s3344]] 64
          %s3346 = scalar_lea.smem [#allocation22], 4
          %3347 = sst [smem:[%s3346]] 64
          %s3348 = scalar_lea.smem [#allocation22], 5
          %3349 = sst [smem:[%s3348]] 4
          %3351 = dma.general %s3333, 4096, %s3315, %s3207, [#allocation21], [#allocation22], %s3331, 0
        $region80: #{tpu_custom_call.1} parent=43 // pred_fallthru
          _
      $region44: #{tpu_custom_call.1} parent=5 // pred_fallthru
        _
      %p3352 = scmp.le.s32.totalorder 2, %s29
      // Predicated region
      $region81: #{tpu_custom_call.1} parent=5 // pred_check
        %p3353 = pneg %p3352
      $region82: #{tpu_custom_call.1} parent=5 // pred_check_branch
        %3355 = sbr.rel (%p3353) target = $region84
      $region83: #{tpu_custom_call.1} parent=5 // pred_region
        %s3356 = ssub.s32 %s29, 2
        // Predicated region
        $region85: #{tpu_custom_call.1} parent=83 // pred_check
          %p3357 = pneg %p219
        $region86: #{tpu_custom_call.1} parent=83 // pred_check_branch
          %3359 = sbr.rel (%p3357) target = $region88
        $region87: #{tpu_custom_call.1} parent=83 // pred_region
          %s3360 = sand.u32 %s204, 1
          %s3361 = scalar_lea.sflag [#allocation4], %s3360
          %s3362 = sand.u32 %s204, 1
          %s3363 = smul.addr %s3362, 256
          %s3364 = scalar_lea.vmem [#allocation13], %s3363
          %3365 = dma.done %s3361, 4096
        $region88: #{tpu_custom_call.1} parent=83 // pred_fallthru
          _
        // Predicated region
        $region89: #{tpu_custom_call.1} parent=83 // pred_check
          %p3366 = pneg %p247
        $region90: #{tpu_custom_call.1} parent=83 // pred_check_branch
          %3368 = sbr.rel (%p3366) target = $region92
        $region91: #{tpu_custom_call.1} parent=83 // pred_region
          %s3369 = sand.u32 %s35, 1
          %s3370 = scalar_lea.sflag [#allocation15], %s3369
          %s3371 = sand.u32 %s232, 1
          %s3372 = smul.addr %s3371, 256
          %s3373 = scalar_lea.vmem [#allocation14], %s3372
          %3374 = dma.done %s3370, 4096
        $region92: #{tpu_custom_call.1} parent=83 // pred_fallthru
          _
        // Predicated region
        $region93: #{tpu_custom_call.1} parent=83 // pred_check
          %p3375 = pneg %p275
        $region94: #{tpu_custom_call.1} parent=83 // pred_check_branch
          %3377 = sbr.rel (%p3375) target = $region96
        $region95: #{tpu_custom_call.1} parent=83 // pred_region
          %s3378 = sand.u32 %s35, 1
          %s3379 = scalar_lea.sflag [#allocation15], %s3378
          %s3380 = sand.u32 %s260, 1
          %s3381 = smul.addr %s3380, 256
          %s3382 = scalar_lea.vmem [#allocation16], %s3381
          %3383 = dma.done %s3379, 4096
        $region96: #{tpu_custom_call.1} parent=83 // pred_fallthru
          _
      $region84: #{tpu_custom_call.1} parent=5 // pred_fallthru
        _
    $region6: #{tpu_custom_call.1} parent=1 // loop_footer
      %s33 = sadd.s32 1, %s29
    $region7: #{tpu_custom_call.1} parent=1 // loop_footer_branch
      %28 = sbr.rel target = $region3
    $region8: #{tpu_custom_call.1} parent=1 // loop_exit
      _
    %3384 = vsyncpa [#allocation3], 1
    %s3385 = scalar_lea.sflag [#allocation3], 1
    %3386 = vsyncpa %s3385, 1
    %3387 = vsyncpa [#allocation6], 1
    %s3388 = scalar_lea.sflag [#allocation6], 1
    %3389 = vsyncpa %s3388, 1
    %3390 = vsyncpa [#allocation9], 1
    %3391 = vsyncpa [#allocation12], 1
    %3392 = vsyncpa [#allocation4], 1
    %s3393 = scalar_lea.sflag [#allocation4], 1
    %3394 = vsyncpa %s3393, 1
    %3395 = vsyncpa [#allocation15], 1
    %s3396 = scalar_lea.sflag [#allocation15], 1
    %3397 = vsyncpa %s3396, 1

</llo_original>
